<compile_context>
chip_gen: v7x
topology: tpu7x:2x2x1
jax: 0.10.0
libtpu: 0.0.40
codegen_flags: <defaults>
</compile_context>

<pallas_src>
import functools

import jax
import jax.numpy as jnp
from jax import lax
from jax.experimental import pallas as pl

# ----------------------------- model config (small) -----------------------------
B          = 2      # batch
S          = 8      # sequence length
H          = 32     # bert hidden size   (bert_hidden_size)
NH         = 4      # attention heads
HD         = H // NH
FFN        = 64     # intermediate size
N_LAYERS   = 2
VOCAB      = 64
MAX_POS    = 16
TYPE_VOCAB = 2
CLS_HID    = 16     # classifier_hidden_size
LN_EPS     = 1e-12
NEG_INF    = -10000.0


# ------------------------------ fused Pallas kernel ------------------------------
def _bert_fused_kernel(ids_ref, posid_ref, segid_ref, mask_ref,
                       word_ref, pos_ref, type_ref,
                       emb_ln_g_ref, emb_ln_b_ref,
                       qkv_w_ref, qkv_b_ref, o_w_ref, o_b_ref,
                       ln1_g_ref, ln1_b_ref,
                       f1_w_ref, f1_b_ref, f2_w_ref, f2_b_ref,
                       ln2_g_ref, ln2_b_ref,
                       cls_w1_ref, cls_b1_ref, cls_w2_ref, cls_b2_ref,
                       out_ref, *, batch, seq, n_heads):
    f32, bf16 = jnp.float32, jnp.bfloat16
    hidden = word_ref.shape[1]
    head_dim = hidden // n_heads
    n_layers = qkv_w_ref.shape[0]
    bs = batch * seq
    scale = 1.0 / (head_dim ** 0.5)

    def matmul(x, w, b):
        # f32 activations -> bf16 MXU operand (weights already bf16),
        # f32 accumulation, f32 epilogue.
        return jnp.dot(x.astype(bf16), w, preferred_element_type=f32) + b

    def layer_norm(x, g, b):
        # var = E[x^2] - E[x]^2: the two cross-lane reductions issue back-to-back.
        mean = jnp.mean(x, axis=-1, keepdims=True)
        mean_sq = jnp.mean(x * x, axis=-1, keepdims=True)
        var = mean_sq - mean * mean
        return (x - mean) * lax.rsqrt(var + LN_EPS) * g + b

    def one_hot(idx, depth):        # (bs, 1) int32 -> (bs, depth) bf16
        cols = lax.broadcasted_iota(jnp.int32, (bs, depth), 1)
        return jnp.where(idx == cols, 1.0, 0.0).astype(bf16)

    # --- embeddings: one-hot MXU gathers + sum + LayerNorm (dropout = identity) ---
    emb = (jnp.dot(one_hot(ids_ref[...], word_ref.shape[0]), word_ref[...],
                   preferred_element_type=f32)
           + jnp.dot(one_hot(posid_ref[...], pos_ref.shape[0]), pos_ref[...],
                     preferred_element_type=f32)
           + jnp.dot(one_hot(segid_ref[...], type_ref.shape[0]), type_ref[...],
                     preferred_element_type=f32))                       # (bs, H) f32
    x = layer_norm(emb, emb_ln_g_ref[...], emb_ln_b_ref[...])

    # --- block-diagonal additive attention bias (built once, reused every layer) ---
    row_i = lax.broadcasted_iota(jnp.int32, (bs, bs), 0)
    col_i = lax.broadcasted_iota(jnp.int32, (bs, bs), 1)
    same_batch = jnp.zeros((bs, bs), jnp.bool_)
    for bb in range(batch):           # avoids vector int division; batch is tiny/static
        in_r = (row_i >= bb * seq) & (row_i < (bb + 1) * seq)
        in_c = (col_i >= bb * seq) & (col_i < (bb + 1) * seq)
        same_batch = same_batch | (in_r & in_c)
    key_valid = mask_ref[...] > 0.5                                     # (1, bs)
    attn_bias = jnp.where(same_batch & key_valid, 0.0, NEG_INF)         # (bs, bs) f32

    dn_tb = (((1,), (1,)), ((), ()))   # contract last dims: q @ k^T without XLU transpose

    # ------------------------------ transformer layers ---------------------------
    for l in range(n_layers):
        # fused Q/K/V projection: one (bs, 3H) matmul
        qkv = matmul(x, qkv_w_ref[l], qkv_b_ref[l])                     # (bs, 3H) f32
        qkv16 = qkv.astype(bf16)
        o_w_l = o_w_ref[l]                                              # (H, H) bf16

        # one (bs, bs) attention block per head; heads merged directly into the
        # output projection (block matmul) -- no ctx scratch, no concat.
        attn_out = o_b_ref[l]                                           # (1, H) f32
        for h in range(n_heads):
            c0 = h * head_dim
            q = (qkv[:, c0:c0 + head_dim] * scale).astype(bf16)
            k = qkv16[:, hidden + c0:hidden + c0 + head_dim]
            v = qkv16[:, 2 * hidden + c0:2 * hidden + c0 + head_dim]
            s = lax.dot_general(q, k, dn_tb, preferred_element_type=f32) + attn_bias
            s = s - jnp.max(s, axis=-1, keepdims=True)
            p = jnp.exp(s)
            p = p * pl.reciprocal(jnp.sum(p, axis=-1, keepdims=True), approx=True)
            ctx_h = jnp.dot(p.astype(bf16), v, preferred_element_type=f32)   # (bs, HD)
            attn_out = attn_out + jnp.dot(ctx_h.astype(bf16),
                                          o_w_l[c0:c0 + head_dim, :],
                                          preferred_element_type=f32)
        x = layer_norm(attn_out + x, ln1_g_ref[l], ln1_b_ref[l])

        # feed-forward + residual + LayerNorm
        # TODO(synk): HF BERT uses exact erf GELU; tanh approximation used here.
        ffn = jax.nn.gelu(matmul(x, f1_w_ref[l], f1_b_ref[l]), approximate=True)
        ffn = matmul(ffn, f2_w_ref[l], f2_b_ref[l])
        x = layer_norm(ffn + x, ln2_g_ref[l], ln2_b_ref[l])

    # ------------------------------ classifier head ------------------------------
    # Select only the [CLS] rows (0, S, 2S, ...) with a tiny one-hot matmul, then
    # run the head on (batch, H) and write the (batch, 1) result with ONE store.
    # TODO(synk): nn.Dropout(0.1) is identity in eval mode; omitted.
    sel_cols = lax.broadcasted_iota(jnp.int32, (batch, bs), 1)
    sel_rows = lax.broadcasted_iota(jnp.int32, (batch, bs), 0) * seq
    sel = jnp.where(sel_cols == sel_rows, 1.0, 0.0)                     # (batch, bs) f32
    cls_vec = jnp.dot(sel, x, preferred_element_type=f32)               # (batch, H) f32
    h1 = jnp.maximum(matmul(cls_vec, cls_w1_ref[...], cls_b1_ref[...]), 0.0)
    logits = matmul(h1, cls_w2_ref[...], cls_b2_ref[...])               # (batch, 1)
    out_ref[...] = jax.nn.sigmoid(logits).astype(out_ref.dtype)


def _full_spec(a):
    zeros = (0,) * a.ndim
    return pl.BlockSpec(a.shape, lambda zeros=zeros: zeros)


# --------------------------- parameter initialization ---------------------------
def init_params(key):
    def nrm(k, shape, std=0.02):
        # matmul weights are stored pre-cast to bf16 (native MXU input type)
        return (std * jax.random.normal(k, shape, jnp.float32)).astype(jnp.bfloat16)

    keys = iter(jax.random.split(key, 64))

    qkv_w, o_w, f1_w, f2_w = [], [], [], []
    for _ in range(N_LAYERS):
        q_w = nrm(next(keys), (H, H))
        k_w = nrm(next(keys), (H, H))
        v_w = nrm(next(keys), (H, H))
        qkv_w.append(jnp.concatenate([q_w, k_w, v_w], axis=1))          # (H, 3H)
        o_w.append(nrm(next(keys), (H, H)))
        f1_w.append(nrm(next(keys), (H, FFN)))
        f2_w.append(nrm(next(keys), (FFN, H)))

    zeros = lambda *s: jnp.zeros(s, jnp.float32)
    ones = lambda *s: jnp.ones(s, jnp.float32)
    rep = lambda a: jnp.stack([a] * N_LAYERS)

    return {
        # bf16 matmul operands
        "word_emb": nrm(next(keys), (VOCAB, H)),
        "pos_emb": nrm(next(keys), (MAX_POS, H)),
        "type_emb": nrm(next(keys), (TYPE_VOCAB, H)),
        "qkv_w": jnp.stack(qkv_w), "o_w": jnp.stack(o_w),
        "f1_w": jnp.stack(f1_w), "f2_w": jnp.stack(f2_w),
        "cls_w1": nrm(next(keys), (H, CLS_HID)),
        "cls_w2": nrm(next(keys), (CLS_HID, 1)),
        # f32 biases / LayerNorm params (VPU/EUP epilogues stay f32)
        "emb_ln_g": ones(1, H), "emb_ln_b": zeros(1, H),
        "qkv_b": rep(zeros(1, 3 * H)), "o_b": rep(zeros(1, H)),
        "ln1_g": rep(ones(1, H)), "ln1_b": rep(zeros(1, H)),
        "f1_b": rep(zeros(1, FFN)), "f2_b": rep(zeros(1, H)),
        "ln2_g": rep(ones(1, H)), "ln2_b": rep(zeros(1, H)),
        "cls_b1": zeros(1, CLS_HID), "cls_b2": zeros(1, 1),
    }


# --------------------------------- forward pass ----------------------------------
def bert_classification_forward(params, input_ids, attn_mask=None, seg=None):
    b, s = input_ids.shape
    bs = b * s
    if attn_mask is None:
        attn_mask = jnp.ones((b, s), jnp.float32)
    if seg is None:
        seg = jnp.zeros((b, s), jnp.int32)

    # Only reshapes/casts outside the kernel; the entire forward (embedding
    # gather included) runs in ONE pallas_call.
    ids = input_ids.reshape(bs, 1).astype(jnp.int32)
    pos_ids = jnp.tile(jnp.arange(s, dtype=jnp.int32), b).reshape(bs, 1)
    seg_ids = seg.reshape(bs, 1).astype(jnp.int32)
    mask = attn_mask.reshape(1, bs).astype(jnp.float32)

    inputs = [
        ids, pos_ids, seg_ids, mask,
        params["word_emb"], params["pos_emb"], params["type_emb"],
        params["emb_ln_g"], params["emb_ln_b"],
        params["qkv_w"], params["qkv_b"], params["o_w"], params["o_b"],
        params["ln1_g"], params["ln1_b"],
        params["f1_w"], params["f1_b"], params["f2_w"], params["f2_b"],
        params["ln2_g"], params["ln2_b"],
        params["cls_w1"], params["cls_b1"], params["cls_w2"], params["cls_b2"],
    ]

    kernel = functools.partial(_bert_fused_kernel, batch=b, seq=s, n_heads=NH)
    return pl.pallas_call(
        kernel,
        out_shape=jax.ShapeDtypeStruct((b, 1), jnp.float32),
        in_specs=[_full_spec(a) for a in inputs],
        out_specs=pl.BlockSpec((b, 1), lambda: (0, 0)),
    )(*inputs)


# -------------------------------------- main --------------------------------------
if __name__ == "__main__":
    key = jax.random.PRNGKey(0)
    pkey, ikey = jax.random.split(key)
    params = init_params(pkey)

    input_ids = jax.random.randint(ikey, (B, S), 0, VOCAB, dtype=jnp.int32)
    attn_mask = jnp.ones((B, S), jnp.float32)
    seg = jnp.zeros((B, S), jnp.int32)

    out = bert_classification_forward(params, input_ids, attn_mask, seg)
    out = jax.block_until_ready(out)
    assert out.shape == (B, 1)
    assert bool(jnp.all((out >= 0.0) & (out <= 1.0)))
    print("KERNEL_OK")
</pallas_src>

<mosaic_0001>
module attributes {stable_mosaic.version = 11 : i64} {
  func.func @_bert_fused_kernel(%arg0: memref<16x1xi32, #tpu.memory_space<vmem>>, %arg1: memref<16x1xi32, #tpu.memory_space<vmem>>, %arg2: memref<16x1xi32, #tpu.memory_space<vmem>>, %arg3: memref<1x16xf32, #tpu.memory_space<vmem>>, %arg4: memref<64x32xbf16, #tpu.memory_space<vmem>>, %arg5: memref<16x32xbf16, #tpu.memory_space<vmem>>, %arg6: memref<2x32xbf16, #tpu.memory_space<vmem>>, %arg7: memref<1x32xf32, #tpu.memory_space<vmem>>, %arg8: memref<1x32xf32, #tpu.memory_space<vmem>>, %arg9: memref<2x32x96xbf16, #tpu.memory_space<vmem>>, %arg10: memref<2x1x96xf32, #tpu.memory_space<vmem>>, %arg11: memref<2x32x32xbf16, #tpu.memory_space<vmem>>, %arg12: memref<2x1x32xf32, #tpu.memory_space<vmem>>, %arg13: memref<2x1x32xf32, #tpu.memory_space<vmem>>, %arg14: memref<2x1x32xf32, #tpu.memory_space<vmem>>, %arg15: memref<2x32x64xbf16, #tpu.memory_space<vmem>>, %arg16: memref<2x1x64xf32, #tpu.memory_space<vmem>>, %arg17: memref<2x64x32xbf16, #tpu.memory_space<vmem>>, %arg18: memref<2x1x32xf32, #tpu.memory_space<vmem>>, %arg19: memref<2x1x32xf32, #tpu.memory_space<vmem>>, %arg20: memref<2x1x32xf32, #tpu.memory_space<vmem>>, %arg21: memref<32x16xbf16, #tpu.memory_space<vmem>>, %arg22: memref<1x16xf32, #tpu.memory_space<vmem>>, %arg23: memref<16x1xbf16, #tpu.memory_space<vmem>>, %arg24: memref<1x1xf32, #tpu.memory_space<vmem>>, %arg25: memref<2x1xf32, #tpu.memory_space<vmem>>) attributes {dimension_semantics = [], scalar_prefetch = 0 : i64, scratch_operands = 0 : i64, tpu.core_type = #tpu.core_type<tc>} {
    %c0 = arith.constant 0 : index
    %c0_0 = arith.constant 0 : index
    %0 = vector.load %arg0[%c0, %c0_0] : memref<16x1xi32, #tpu.memory_space<vmem>>, vector<16x1xi32>
    %1 = tpu.iota {dimensions = array<i32: 1>} : vector<16x64xi32>
    %2 = vector.broadcast %0 : vector<16x1xi32> to vector<16x64xi32>
    %3 = arith.cmpi eq, %2, %1 : vector<16x64xi32>
    %cst = arith.constant 1.000000e+00 : f32
    %cst_1 = arith.constant 0.000000e+00 : f32
    %4 = vector.broadcast %cst : f32 to vector<16x64xf32>
    %5 = vector.broadcast %cst_1 : f32 to vector<16x64xf32>
    %6 = arith.select %3, %4, %5 : vector<16x64xi1>, vector<16x64xf32>
    %7 = arith.truncf %6 : vector<16x64xf32> to vector<16x64xbf16>
    %c0_2 = arith.constant 0 : index
    %c0_3 = arith.constant 0 : index
    %8 = vector.load %arg4[%c0_2, %c0_3] : memref<64x32xbf16, #tpu.memory_space<vmem>>, vector<64x32xbf16>
    %cst_4 = arith.constant dense<0.000000e+00> : vector<16x32xf32>
    %9 = tpu.matmul %7, %8, %cst_4 {dimension_numbers = #tpu.dot_dimension_numbers<[1], [0], [0], [1], [0, 0, 1, 1], [], []>} : vector<16x64xbf16>, vector<64x32xbf16>, vector<16x32xf32> -> vector<16x32xf32>
    %c0_5 = arith.constant 0 : index
    %c0_6 = arith.constant 0 : index
    %10 = vector.load %arg1[%c0_5, %c0_6] : memref<16x1xi32, #tpu.memory_space<vmem>>, vector<16x1xi32>
    %11 = tpu.iota {dimensions = array<i32: 1>} : vector<16x16xi32>
    %12 = vector.broadcast %10 : vector<16x1xi32> to vector<16x16xi32>
    %13 = arith.cmpi eq, %12, %11 : vector<16x16xi32>
    %cst_7 = arith.constant 1.000000e+00 : f32
    %cst_8 = arith.constant 0.000000e+00 : f32
    %14 = vector.broadcast %cst_7 : f32 to vector<16x16xf32>
    %15 = vector.broadcast %cst_8 : f32 to vector<16x16xf32>
    %16 = arith.select %13, %14, %15 : vector<16x16xi1>, vector<16x16xf32>
    %17 = arith.truncf %16 : vector<16x16xf32> to vector<16x16xbf16>
    %c0_9 = arith.constant 0 : index
    %c0_10 = arith.constant 0 : index
    %18 = vector.load %arg5[%c0_9, %c0_10] : memref<16x32xbf16, #tpu.memory_space<vmem>>, vector<16x32xbf16>
    %cst_11 = arith.constant dense<0.000000e+00> : vector<16x32xf32>
    %19 = tpu.matmul %17, %18, %cst_11 {dimension_numbers = #tpu.dot_dimension_numbers<[1], [0], [0], [1], [0, 0, 1, 1], [], []>} : vector<16x16xbf16>, vector<16x32xbf16>, vector<16x32xf32> -> vector<16x32xf32>
    %20 = arith.addf %9, %19 : vector<16x32xf32>
    %c0_12 = arith.constant 0 : index
    %c0_13 = arith.constant 0 : index
    %21 = vector.load %arg2[%c0_12, %c0_13] : memref<16x1xi32, #tpu.memory_space<vmem>>, vector<16x1xi32>
    %22 = tpu.iota {dimensions = array<i32: 1>} : vector<16x2xi32>
    %23 = vector.broadcast %21 : vector<16x1xi32> to vector<16x2xi32>
    %24 = arith.cmpi eq, %23, %22 : vector<16x2xi32>
    %cst_14 = arith.constant 1.000000e+00 : f32
    %cst_15 = arith.constant 0.000000e+00 : f32
    %25 = vector.broadcast %cst_14 : f32 to vector<16x2xf32>
    %26 = vector.broadcast %cst_15 : f32 to vector<16x2xf32>
    %27 = arith.select %24, %25, %26 : vector<16x2xi1>, vector<16x2xf32>
    %28 = arith.truncf %27 : vector<16x2xf32> to vector<16x2xbf16>
    %c0_16 = arith.constant 0 : index
    %c0_17 = arith.constant 0 : index
    %29 = vector.load %arg6[%c0_16, %c0_17] : memref<2x32xbf16, #tpu.memory_space<vmem>>, vector<2x32xbf16>
    %cst_18 = arith.constant dense<0.000000e+00> : vector<16x32xf32>
    %30 = tpu.matmul %28, %29, %cst_18 {dimension_numbers = #tpu.dot_dimension_numbers<[1], [0], [0], [1], [0, 0, 1, 1], [], []>} : vector<16x2xbf16>, vector<2x32xbf16>, vector<16x32xf32> -> vector<16x32xf32>
    %31 = arith.addf %20, %30 : vector<16x32xf32>
    %c0_19 = arith.constant 0 : index
    %c0_20 = arith.constant 0 : index
    %32 = vector.load %arg7[%c0_19, %c0_20] : memref<1x32xf32, #tpu.memory_space<vmem>>, vector<1x32xf32>
    %c0_21 = arith.constant 0 : index
    %c0_22 = arith.constant 0 : index
    %33 = vector.load %arg8[%c0_21, %c0_22] : memref<1x32xf32, #tpu.memory_space<vmem>>, vector<1x32xf32>
    %cst_23 = arith.constant dense<0.000000e+00> : vector<16xf32>
    %34 = vector.multi_reduction <add>, %31, %cst_23 [1] : vector<16x32xf32> to vector<16xf32>
    %35 = vector.shape_cast %34 : vector<16xf32> to vector<16x1xf32>
    %cst_24 = arith.constant 3.200000e+01 : f32
    %36 = vector.broadcast %cst_24 : f32 to vector<16x1xf32>
    %37 = arith.divf %35, %36 : vector<16x1xf32>
    %38 = arith.mulf %31, %31 : vector<16x32xf32>
    %cst_25 = arith.constant dense<0.000000e+00> : vector<16xf32>
    %39 = vector.multi_reduction <add>, %38, %cst_25 [1] : vector<16x32xf32> to vector<16xf32>
    %40 = vector.shape_cast %39 : vector<16xf32> to vector<16x1xf32>
    %cst_26 = arith.constant 3.200000e+01 : f32
    %41 = vector.broadcast %cst_26 : f32 to vector<16x1xf32>
    %42 = arith.divf %40, %41 : vector<16x1xf32>
    %43 = arith.mulf %37, %37 : vector<16x1xf32>
    %44 = arith.subf %42, %43 : vector<16x1xf32>
    %45 = vector.broadcast %37 : vector<16x1xf32> to vector<16x32xf32>
    %46 = arith.subf %31, %45 : vector<16x32xf32>
    %cst_27 = arith.constant 9.99999996E-13 : f32
    %47 = vector.broadcast %cst_27 : f32 to vector<16x1xf32>
    %48 = arith.addf %44, %47 : vector<16x1xf32>
    %49 = math.rsqrt %48 : vector<16x1xf32>
    %50 = vector.broadcast %49 : vector<16x1xf32> to vector<16x32xf32>
    %51 = arith.mulf %46, %50 : vector<16x32xf32>
    %52 = vector.broadcast %32 : vector<1x32xf32> to vector<16x32xf32>
    %53 = arith.mulf %51, %52 : vector<16x32xf32>
    %54 = vector.broadcast %33 : vector<1x32xf32> to vector<16x32xf32>
    %55 = arith.addf %53, %54 : vector<16x32xf32>
    %56 = tpu.iota {dimensions = array<i32: 0>} : vector<16x16xi32>
    %57 = tpu.iota {dimensions = array<i32: 1>} : vector<16x16xi32>
    %false = arith.constant false
    %58 = vector.broadcast %false : i1 to vector<16x16xi1>
    %c0_i32 = arith.constant 0 : i32
    %59 = vector.broadcast %c0_i32 : i32 to vector<16x16xi32>
    %60 = arith.cmpi sge, %56, %59 : vector<16x16xi32>
    %c8_i32 = arith.constant 8 : i32
    %61 = vector.broadcast %c8_i32 : i32 to vector<16x16xi32>
    %62 = arith.cmpi slt, %56, %61 : vector<16x16xi32>
    %63 = arith.andi %60, %62 : vector<16x16xi1>
    %c0_i32_28 = arith.constant 0 : i32
    %64 = vector.broadcast %c0_i32_28 : i32 to vector<16x16xi32>
    %65 = arith.cmpi sge, %57, %64 : vector<16x16xi32>
    %c8_i32_29 = arith.constant 8 : i32
    %66 = vector.broadcast %c8_i32_29 : i32 to vector<16x16xi32>
    %67 = arith.cmpi slt, %57, %66 : vector<16x16xi32>
    %68 = arith.andi %65, %67 : vector<16x16xi1>
    %69 = arith.andi %63, %68 : vector<16x16xi1>
    %70 = arith.ori %58, %69 : vector<16x16xi1>
    %c8_i32_30 = arith.constant 8 : i32
    %71 = vector.broadcast %c8_i32_30 : i32 to vector<16x16xi32>
    %72 = arith.cmpi sge, %56, %71 : vector<16x16xi32>
    %c16_i32 = arith.constant 16 : i32
    %73 = vector.broadcast %c16_i32 : i32 to vector<16x16xi32>
    %74 = arith.cmpi slt, %56, %73 : vector<16x16xi32>
    %75 = arith.andi %72, %74 : vector<16x16xi1>
    %c8_i32_31 = arith.constant 8 : i32
    %76 = vector.broadcast %c8_i32_31 : i32 to vector<16x16xi32>
    %77 = arith.cmpi sge, %57, %76 : vector<16x16xi32>
    %c16_i32_32 = arith.constant 16 : i32
    %78 = vector.broadcast %c16_i32_32 : i32 to vector<16x16xi32>
    %79 = arith.cmpi slt, %57, %78 : vector<16x16xi32>
    %80 = arith.andi %77, %79 : vector<16x16xi1>
    %81 = arith.andi %75, %80 : vector<16x16xi1>
    %82 = arith.ori %70, %81 : vector<16x16xi1>
    %c0_33 = arith.constant 0 : index
    %c0_34 = arith.constant 0 : index
    %83 = vector.load %arg3[%c0_33, %c0_34] : memref<1x16xf32, #tpu.memory_space<vmem>>, vector<1x16xf32>
    %cst_35 = arith.constant 5.000000e-01 : f32
    %84 = vector.broadcast %cst_35 : f32 to vector<1x16xf32>
    %85 = arith.cmpf ogt, %83, %84 : vector<1x16xf32>
    %86 = vector.broadcast %85 : vector<1x16xi1> to vector<16x16xi1>
    %87 = arith.andi %82, %86 : vector<16x16xi1>
    %cst_36 = arith.constant 0.000000e+00 : f32
    %cst_37 = arith.constant -1.000000e+04 : f32
    %88 = vector.broadcast %cst_36 : f32 to vector<16x16xf32>
    %89 = vector.broadcast %cst_37 : f32 to vector<16x16xf32>
    %90 = arith.select %87, %88, %89 : vector<16x16xi1>, vector<16x16xf32>
    %c0_38 = arith.constant 0 : index
    %c0_39 = arith.constant 0 : index
    %c0_40 = arith.constant 0 : index
    %91 = vector.load %arg9[%c0_38, %c0_39, %c0_40] : memref<2x32x96xbf16, #tpu.memory_space<vmem>>, vector<1x32x96xbf16>
    %92 = vector.shape_cast %91 : vector<1x32x96xbf16> to vector<32x96xbf16>
    %c0_41 = arith.constant 0 : index
    %c0_42 = arith.constant 0 : index
    %c0_43 = arith.constant 0 : index
    %93 = vector.load %arg10[%c0_41, %c0_42, %c0_43] : memref<2x1x96xf32, #tpu.memory_space<vmem>>, vector<1x1x96xf32>
    %94 = vector.shape_cast %93 : vector<1x1x96xf32> to vector<1x96xf32>
    %95 = arith.truncf %55 : vector<16x32xf32> to vector<16x32xbf16>
    %cst_44 = arith.constant dense<0.000000e+00> : vector<16x96xf32>
    %96 = tpu.matmul %95, %92, %cst_44 {dimension_numbers = #tpu.dot_dimension_numbers<[1], [0], [0], [1], [0, 0, 1, 1], [], []>} : vector<16x32xbf16>, vector<32x96xbf16>, vector<16x96xf32> -> vector<16x96xf32>
    %97 = vector.broadcast %94 : vector<1x96xf32> to vector<16x96xf32>
    %98 = arith.addf %96, %97 : vector<16x96xf32>
    %99 = arith.truncf %98 : vector<16x96xf32> to vector<16x96xbf16>
    %c0_45 = arith.constant 0 : index
    %c0_46 = arith.constant 0 : index
    %c0_47 = arith.constant 0 : index
    %100 = vector.load %arg11[%c0_45, %c0_46, %c0_47] : memref<2x32x32xbf16, #tpu.memory_space<vmem>>, vector<1x32x32xbf16>
    %101 = vector.shape_cast %100 : vector<1x32x32xbf16> to vector<32x32xbf16>
    %c0_48 = arith.constant 0 : index
    %c0_49 = arith.constant 0 : index
    %c0_50 = arith.constant 0 : index
    %102 = vector.load %arg12[%c0_48, %c0_49, %c0_50] : memref<2x1x32xf32, #tpu.memory_space<vmem>>, vector<1x1x32xf32>
    %103 = vector.shape_cast %102 : vector<1x1x32xf32> to vector<1x32xf32>
    %104 = vector.extract_strided_slice %98 {offsets = [0, 0], sizes = [16, 8], strides = [1, 1]} : vector<16x96xf32> to vector<16x8xf32>
    %cst_51 = arith.constant 0.353553385 : f32
    %105 = vector.broadcast %cst_51 : f32 to vector<16x8xf32>
    %106 = arith.mulf %104, %105 : vector<16x8xf32>
    %107 = arith.truncf %106 : vector<16x8xf32> to vector<16x8xbf16>
    %108 = vector.extract_strided_slice %99 {offsets = [0, 32], sizes = [16, 8], strides = [1, 1]} : vector<16x96xbf16> to vector<16x8xbf16>
    %109 = vector.extract_strided_slice %99 {offsets = [0, 64], sizes = [16, 8], strides = [1, 1]} : vector<16x96xbf16> to vector<16x8xbf16>
    %cst_52 = arith.constant dense<0.000000e+00> : vector<16x16xf32>
    %110 = tpu.matmul %107, %108, %cst_52 {dimension_numbers = #tpu.dot_dimension_numbers<[1], [1], [0], [0], [0, 0, 1, 0], [], []>} : vector<16x8xbf16>, vector<16x8xbf16>, vector<16x16xf32> -> vector<16x16xf32>
    %111 = arith.addf %110, %90 : vector<16x16xf32>
    %cst_53 = arith.constant dense<0xFF800000> : vector<16xf32>
    %112 = vector.multi_reduction <maximumf>, %111, %cst_53 [1] : vector<16x16xf32> to vector<16xf32>
    %113 = vector.shape_cast %112 : vector<16xf32> to vector<16x1xf32>
    %114 = vector.broadcast %113 : vector<16x1xf32> to vector<16x16xf32>
    %115 = arith.subf %111, %114 : vector<16x16xf32>
    %116 = math.exp %115 : vector<16x16xf32>
    %cst_54 = arith.constant dense<0.000000e+00> : vector<16xf32>
    %117 = vector.multi_reduction <add>, %116, %cst_54 [1] : vector<16x16xf32> to vector<16xf32>
    %118 = vector.shape_cast %117 : vector<16xf32> to vector<16x1xf32>
    %119 = tpu.reciprocal %118 {approx = true} : vector<16x1xf32> -> vector<16x1xf32>
    %120 = vector.broadcast %119 : vector<16x1xf32> to vector<16x16xf32>
    %121 = arith.mulf %116, %120 : vector<16x16xf32>
    %122 = arith.truncf %121 : vector<16x16xf32> to vector<16x16xbf16>
    %cst_55 = arith.constant dense<0.000000e+00> : vector<16x8xf32>
    %123 = tpu.matmul %122, %109, %cst_55 {dimension_numbers = #tpu.dot_dimension_numbers<[1], [0], [0], [1], [0, 0, 1, 1], [], []>} : vector<16x16xbf16>, vector<16x8xbf16>, vector<16x8xf32> -> vector<16x8xf32>
    %124 = arith.truncf %123 : vector<16x8xf32> to vector<16x8xbf16>
    %125 = vector.extract_strided_slice %101 {offsets = [0, 0], sizes = [8, 32], strides = [1, 1]} : vector<32x32xbf16> to vector<8x32xbf16>
    %cst_56 = arith.constant dense<0.000000e+00> : vector<16x32xf32>
    %126 = tpu.matmul %124, %125, %cst_56 {dimension_numbers = #tpu.dot_dimension_numbers<[1], [0], [0], [1], [0, 0, 1, 1], [], []>} : vector<16x8xbf16>, vector<8x32xbf16>, vector<16x32xf32> -> vector<16x32xf32>
    %127 = vector.broadcast %103 : vector<1x32xf32> to vector<16x32xf32>
    %128 = arith.addf %127, %126 : vector<16x32xf32>
    %129 = vector.extract_strided_slice %98 {offsets = [0, 8], sizes = [16, 8], strides = [1, 1]} : vector<16x96xf32> to vector<16x8xf32>
    %cst_57 = arith.constant 0.353553385 : f32
    %130 = vector.broadcast %cst_57 : f32 to vector<16x8xf32>
    %131 = arith.mulf %129, %130 : vector<16x8xf32>
    %132 = arith.truncf %131 : vector<16x8xf32> to vector<16x8xbf16>
    %133 = vector.extract_strided_slice %99 {offsets = [0, 40], sizes = [16, 8], strides = [1, 1]} : vector<16x96xbf16> to vector<16x8xbf16>
    %134 = vector.extract_strided_slice %99 {offsets = [0, 72], sizes = [16, 8], strides = [1, 1]} : vector<16x96xbf16> to vector<16x8xbf16>
    %cst_58 = arith.constant dense<0.000000e+00> : vector<16x16xf32>
    %135 = tpu.matmul %132, %133, %cst_58 {dimension_numbers = #tpu.dot_dimension_numbers<[1], [1], [0], [0], [0, 0, 1, 0], [], []>} : vector<16x8xbf16>, vector<16x8xbf16>, vector<16x16xf32> -> vector<16x16xf32>
    %136 = arith.addf %135, %90 : vector<16x16xf32>
    %cst_59 = arith.constant dense<0xFF800000> : vector<16xf32>
    %137 = vector.multi_reduction <maximumf>, %136, %cst_59 [1] : vector<16x16xf32> to vector<16xf32>
    %138 = vector.shape_cast %137 : vector<16xf32> to vector<16x1xf32>
    %139 = vector.broadcast %138 : vector<16x1xf32> to vector<16x16xf32>
    %140 = arith.subf %136, %139 : vector<16x16xf32>
    %141 = math.exp %140 : vector<16x16xf32>
    %cst_60 = arith.constant dense<0.000000e+00> : vector<16xf32>
    %142 = vector.multi_reduction <add>, %141, %cst_60 [1] : vector<16x16xf32> to vector<16xf32>
    %143 = vector.shape_cast %142 : vector<16xf32> to vector<16x1xf32>
    %144 = tpu.reciprocal %143 {approx = true} : vector<16x1xf32> -> vector<16x1xf32>
    %145 = vector.broadcast %144 : vector<16x1xf32> to vector<16x16xf32>
    %146 = arith.mulf %141, %145 : vector<16x16xf32>
    %147 = arith.truncf %146 : vector<16x16xf32> to vector<16x16xbf16>
    %cst_61 = arith.constant dense<0.000000e+00> : vector<16x8xf32>
    %148 = tpu.matmul %147, %134, %cst_61 {dimension_numbers = #tpu.dot_dimension_numbers<[1], [0], [0], [1], [0, 0, 1, 1], [], []>} : vector<16x16xbf16>, vector<16x8xbf16>, vector<16x8xf32> -> vector<16x8xf32>
    %149 = arith.truncf %148 : vector<16x8xf32> to vector<16x8xbf16>
    %150 = vector.extract_strided_slice %101 {offsets = [8, 0], sizes = [8, 32], strides = [1, 1]} : vector<32x32xbf16> to vector<8x32xbf16>
    %cst_62 = arith.constant dense<0.000000e+00> : vector<16x32xf32>
    %151 = tpu.matmul %149, %150, %cst_62 {dimension_numbers = #tpu.dot_dimension_numbers<[1], [0], [0], [1], [0, 0, 1, 1], [], []>} : vector<16x8xbf16>, vector<8x32xbf16>, vector<16x32xf32> -> vector<16x32xf32>
    %152 = arith.addf %128, %151 : vector<16x32xf32>
    %153 = vector.extract_strided_slice %98 {offsets = [0, 16], sizes = [16, 8], strides = [1, 1]} : vector<16x96xf32> to vector<16x8xf32>
    %cst_63 = arith.constant 0.353553385 : f32
    %154 = vector.broadcast %cst_63 : f32 to vector<16x8xf32>
    %155 = arith.mulf %153, %154 : vector<16x8xf32>
    %156 = arith.truncf %155 : vector<16x8xf32> to vector<16x8xbf16>
    %157 = vector.extract_strided_slice %99 {offsets = [0, 48], sizes = [16, 8], strides = [1, 1]} : vector<16x96xbf16> to vector<16x8xbf16>
    %158 = vector.extract_strided_slice %99 {offsets = [0, 80], sizes = [16, 8], strides = [1, 1]} : vector<16x96xbf16> to vector<16x8xbf16>
    %cst_64 = arith.constant dense<0.000000e+00> : vector<16x16xf32>
    %159 = tpu.matmul %156, %157, %cst_64 {dimension_numbers = #tpu.dot_dimension_numbers<[1], [1], [0], [0], [0, 0, 1, 0], [], []>} : vector<16x8xbf16>, vector<16x8xbf16>, vector<16x16xf32> -> vector<16x16xf32>
    %160 = arith.addf %159, %90 : vector<16x16xf32>
    %cst_65 = arith.constant dense<0xFF800000> : vector<16xf32>
    %161 = vector.multi_reduction <maximumf>, %160, %cst_65 [1] : vector<16x16xf32> to vector<16xf32>
    %162 = vector.shape_cast %161 : vector<16xf32> to vector<16x1xf32>
    %163 = vector.broadcast %162 : vector<16x1xf32> to vector<16x16xf32>
    %164 = arith.subf %160, %163 : vector<16x16xf32>
    %165 = math.exp %164 : vector<16x16xf32>
    %cst_66 = arith.constant dense<0.000000e+00> : vector<16xf32>
    %166 = vector.multi_reduction <add>, %165, %cst_66 [1] : vector<16x16xf32> to vector<16xf32>
    %167 = vector.shape_cast %166 : vector<16xf32> to vector<16x1xf32>
    %168 = tpu.reciprocal %167 {approx = true} : vector<16x1xf32> -> vector<16x1xf32>
    %169 = vector.broadcast %168 : vector<16x1xf32> to vector<16x16xf32>
    %170 = arith.mulf %165, %169 : vector<16x16xf32>
    %171 = arith.truncf %170 : vector<16x16xf32> to vector<16x16xbf16>
    %cst_67 = arith.constant dense<0.000000e+00> : vector<16x8xf32>
    %172 = tpu.matmul %171, %158, %cst_67 {dimension_numbers = #tpu.dot_dimension_numbers<[1], [0], [0], [1], [0, 0, 1, 1], [], []>} : vector<16x16xbf16>, vector<16x8xbf16>, vector<16x8xf32> -> vector<16x8xf32>
    %173 = arith.truncf %172 : vector<16x8xf32> to vector<16x8xbf16>
    %174 = vector.extract_strided_slice %101 {offsets = [16, 0], sizes = [8, 32], strides = [1, 1]} : vector<32x32xbf16> to vector<8x32xbf16>
    %cst_68 = arith.constant dense<0.000000e+00> : vector<16x32xf32>
    %175 = tpu.matmul %173, %174, %cst_68 {dimension_numbers = #tpu.dot_dimension_numbers<[1], [0], [0], [1], [0, 0, 1, 1], [], []>} : vector<16x8xbf16>, vector<8x32xbf16>, vector<16x32xf32> -> vector<16x32xf32>
    %176 = arith.addf %152, %175 : vector<16x32xf32>
    %177 = vector.extract_strided_slice %98 {offsets = [0, 24], sizes = [16, 8], strides = [1, 1]} : vector<16x96xf32> to vector<16x8xf32>
    %cst_69 = arith.constant 0.353553385 : f32
    %178 = vector.broadcast %cst_69 : f32 to vector<16x8xf32>
    %179 = arith.mulf %177, %178 : vector<16x8xf32>
    %180 = arith.truncf %179 : vector<16x8xf32> to vector<16x8xbf16>
    %181 = vector.extract_strided_slice %99 {offsets = [0, 56], sizes = [16, 8], strides = [1, 1]} : vector<16x96xbf16> to vector<16x8xbf16>
    %182 = vector.extract_strided_slice %99 {offsets = [0, 88], sizes = [16, 8], strides = [1, 1]} : vector<16x96xbf16> to vector<16x8xbf16>
    %cst_70 = arith.constant dense<0.000000e+00> : vector<16x16xf32>
    %183 = tpu.matmul %180, %181, %cst_70 {dimension_numbers = #tpu.dot_dimension_numbers<[1], [1], [0], [0], [0, 0, 1, 0], [], []>} : vector<16x8xbf16>, vector<16x8xbf16>, vector<16x16xf32> -> vector<16x16xf32>
    %184 = arith.addf %183, %90 : vector<16x16xf32>
    %cst_71 = arith.constant dense<0xFF800000> : vector<16xf32>
    %185 = vector.multi_reduction <maximumf>, %184, %cst_71 [1] : vector<16x16xf32> to vector<16xf32>
    %186 = vector.shape_cast %185 : vector<16xf32> to vector<16x1xf32>
    %187 = vector.broadcast %186 : vector<16x1xf32> to vector<16x16xf32>
    %188 = arith.subf %184, %187 : vector<16x16xf32>
    %189 = math.exp %188 : vector<16x16xf32>
    %cst_72 = arith.constant dense<0.000000e+00> : vector<16xf32>
    %190 = vector.multi_reduction <add>, %189, %cst_72 [1] : vector<16x16xf32> to vector<16xf32>
    %191 = vector.shape_cast %190 : vector<16xf32> to vector<16x1xf32>
    %192 = tpu.reciprocal %191 {approx = true} : vector<16x1xf32> -> vector<16x1xf32>
    %193 = vector.broadcast %192 : vector<16x1xf32> to vector<16x16xf32>
    %194 = arith.mulf %189, %193 : vector<16x16xf32>
    %195 = arith.truncf %194 : vector<16x16xf32> to vector<16x16xbf16>
    %cst_73 = arith.constant dense<0.000000e+00> : vector<16x8xf32>
    %196 = tpu.matmul %195, %182, %cst_73 {dimension_numbers = #tpu.dot_dimension_numbers<[1], [0], [0], [1], [0, 0, 1, 1], [], []>} : vector<16x16xbf16>, vector<16x8xbf16>, vector<16x8xf32> -> vector<16x8xf32>
    %197 = arith.truncf %196 : vector<16x8xf32> to vector<16x8xbf16>
    %198 = vector.extract_strided_slice %101 {offsets = [24, 0], sizes = [8, 32], strides = [1, 1]} : vector<32x32xbf16> to vector<8x32xbf16>
    %cst_74 = arith.constant dense<0.000000e+00> : vector<16x32xf32>
    %199 = tpu.matmul %197, %198, %cst_74 {dimension_numbers = #tpu.dot_dimension_numbers<[1], [0], [0], [1], [0, 0, 1, 1], [], []>} : vector<16x8xbf16>, vector<8x32xbf16>, vector<16x32xf32> -> vector<16x32xf32>
    %200 = arith.addf %176, %199 : vector<16x32xf32>
    %201 = arith.addf %200, %55 : vector<16x32xf32>
    %c0_75 = arith.constant 0 : index
    %c0_76 = arith.constant 0 : index
    %c0_77 = arith.constant 0 : index
    %202 = vector.load %arg13[%c0_75, %c0_76, %c0_77] : memref<2x1x32xf32, #tpu.memory_space<vmem>>, vector<1x1x32xf32>
    %203 = vector.shape_cast %202 : vector<1x1x32xf32> to vector<1x32xf32>
    %c0_78 = arith.constant 0 : index
    %c0_79 = arith.constant 0 : index
    %c0_80 = arith.constant 0 : index
    %204 = vector.load %arg14[%c0_78, %c0_79, %c0_80] : memref<2x1x32xf32, #tpu.memory_space<vmem>>, vector<1x1x32xf32>
    %205 = vector.shape_cast %204 : vector<1x1x32xf32> to vector<1x32xf32>
    %cst_81 = arith.constant dense<0.000000e+00> : vector<16xf32>
    %206 = vector.multi_reduction <add>, %201, %cst_81 [1] : vector<16x32xf32> to vector<16xf32>
    %207 = vector.shape_cast %206 : vector<16xf32> to vector<16x1xf32>
    %cst_82 = arith.constant 3.200000e+01 : f32
    %208 = vector.broadcast %cst_82 : f32 to vector<16x1xf32>
    %209 = arith.divf %207, %208 : vector<16x1xf32>
    %210 = arith.mulf %201, %201 : vector<16x32xf32>
    %cst_83 = arith.constant dense<0.000000e+00> : vector<16xf32>
    %211 = vector.multi_reduction <add>, %210, %cst_83 [1] : vector<16x32xf32> to vector<16xf32>
    %212 = vector.shape_cast %211 : vector<16xf32> to vector<16x1xf32>
    %cst_84 = arith.constant 3.200000e+01 : f32
    %213 = vector.broadcast %cst_84 : f32 to vector<16x1xf32>
    %214 = arith.divf %212, %213 : vector<16x1xf32>
    %215 = arith.mulf %209, %209 : vector<16x1xf32>
    %216 = arith.subf %214, %215 : vector<16x1xf32>
    %217 = vector.broadcast %209 : vector<16x1xf32> to vector<16x32xf32>
    %218 = arith.subf %201, %217 : vector<16x32xf32>
    %cst_85 = arith.constant 9.99999996E-13 : f32
    %219 = vector.broadcast %cst_85 : f32 to vector<16x1xf32>
    %220 = arith.addf %216, %219 : vector<16x1xf32>
    %221 = math.rsqrt %220 : vector<16x1xf32>
    %222 = vector.broadcast %221 : vector<16x1xf32> to vector<16x32xf32>
    %223 = arith.mulf %218, %222 : vector<16x32xf32>
    %224 = vector.broadcast %203 : vector<1x32xf32> to vector<16x32xf32>
    %225 = arith.mulf %223, %224 : vector<16x32xf32>
    %226 = vector.broadcast %205 : vector<1x32xf32> to vector<16x32xf32>
    %227 = arith.addf %225, %226 : vector<16x32xf32>
    %c0_86 = arith.constant 0 : index
    %c0_87 = arith.constant 0 : index
    %c0_88 = arith.constant 0 : index
    %228 = vector.load %arg15[%c0_86, %c0_87, %c0_88] : memref<2x32x64xbf16, #tpu.memory_space<vmem>>, vector<1x32x64xbf16>
    %229 = vector.shape_cast %228 : vector<1x32x64xbf16> to vector<32x64xbf16>
    %c0_89 = arith.constant 0 : index
    %c0_90 = arith.constant 0 : index
    %c0_91 = arith.constant 0 : index
    %230 = vector.load %arg16[%c0_89, %c0_90, %c0_91] : memref<2x1x64xf32, #tpu.memory_space<vmem>>, vector<1x1x64xf32>
    %231 = vector.shape_cast %230 : vector<1x1x64xf32> to vector<1x64xf32>
    %232 = arith.truncf %227 : vector<16x32xf32> to vector<16x32xbf16>
    %cst_92 = arith.constant dense<0.000000e+00> : vector<16x64xf32>
    %233 = tpu.matmul %232, %229, %cst_92 {dimension_numbers = #tpu.dot_dimension_numbers<[1], [0], [0], [1], [0, 0, 1, 1], [], []>} : vector<16x32xbf16>, vector<32x64xbf16>, vector<16x64xf32> -> vector<16x64xf32>
    %234 = vector.broadcast %231 : vector<1x64xf32> to vector<16x64xf32>
    %235 = arith.addf %233, %234 : vector<16x64xf32>
    %236 = arith.mulf %235, %235 : vector<16x64xf32>
    %237 = arith.mulf %235, %236 : vector<16x64xf32>
    %cst_93 = arith.constant 4.471500e-02 : f32
    %238 = vector.broadcast %cst_93 : f32 to vector<16x64xf32>
    %239 = arith.mulf %238, %237 : vector<16x64xf32>
    %240 = arith.addf %235, %239 : vector<16x64xf32>
    %cst_94 = arith.constant 0.797884583 : f32
    %241 = vector.broadcast %cst_94 : f32 to vector<16x64xf32>
    %242 = arith.mulf %241, %240 : vector<16x64xf32>
    %243 = math.tanh %242 : vector<16x64xf32>
    %cst_95 = arith.constant 1.000000e+00 : f32
    %244 = vector.broadcast %cst_95 : f32 to vector<16x64xf32>
    %245 = arith.addf %244, %243 : vector<16x64xf32>
    %cst_96 = arith.constant 5.000000e-01 : f32
    %246 = vector.broadcast %cst_96 : f32 to vector<16x64xf32>
    %247 = arith.mulf %246, %245 : vector<16x64xf32>
    %248 = arith.mulf %235, %247 : vector<16x64xf32>
    %c0_97 = arith.constant 0 : index
    %c0_98 = arith.constant 0 : index
    %c0_99 = arith.constant 0 : index
    %249 = vector.load %arg17[%c0_97, %c0_98, %c0_99] : memref<2x64x32xbf16, #tpu.memory_space<vmem>>, vector<1x64x32xbf16>
    %250 = vector.shape_cast %249 : vector<1x64x32xbf16> to vector<64x32xbf16>
    %c0_100 = arith.constant 0 : index
    %c0_101 = arith.constant 0 : index
    %c0_102 = arith.constant 0 : index
    %251 = vector.load %arg18[%c0_100, %c0_101, %c0_102] : memref<2x1x32xf32, #tpu.memory_space<vmem>>, vector<1x1x32xf32>
    %252 = vector.shape_cast %251 : vector<1x1x32xf32> to vector<1x32xf32>
    %253 = arith.truncf %248 : vector<16x64xf32> to vector<16x64xbf16>
    %cst_103 = arith.constant dense<0.000000e+00> : vector<16x32xf32>
    %254 = tpu.matmul %253, %250, %cst_103 {dimension_numbers = #tpu.dot_dimension_numbers<[1], [0], [0], [1], [0, 0, 1, 1], [], []>} : vector<16x64xbf16>, vector<64x32xbf16>, vector<16x32xf32> -> vector<16x32xf32>
    %255 = vector.broadcast %252 : vector<1x32xf32> to vector<16x32xf32>
    %256 = arith.addf %254, %255 : vector<16x32xf32>
    %257 = arith.addf %256, %227 : vector<16x32xf32>
    %c0_104 = arith.constant 0 : index
    %c0_105 = arith.constant 0 : index
    %c0_106 = arith.constant 0 : index
    %258 = vector.load %arg19[%c0_104, %c0_105, %c0_106] : memref<2x1x32xf32, #tpu.memory_space<vmem>>, vector<1x1x32xf32>
    %259 = vector.shape_cast %258 : vector<1x1x32xf32> to vector<1x32xf32>
    %c0_107 = arith.constant 0 : index
    %c0_108 = arith.constant 0 : index
    %c0_109 = arith.constant 0 : index
    %260 = vector.load %arg20[%c0_107, %c0_108, %c0_109] : memref<2x1x32xf32, #tpu.memory_space<vmem>>, vector<1x1x32xf32>
    %261 = vector.shape_cast %260 : vector<1x1x32xf32> to vector<1x32xf32>
    %cst_110 = arith.constant dense<0.000000e+00> : vector<16xf32>
    %262 = vector.multi_reduction <add>, %257, %cst_110 [1] : vector<16x32xf32> to vector<16xf32>
    %263 = vector.shape_cast %262 : vector<16xf32> to vector<16x1xf32>
    %cst_111 = arith.constant 3.200000e+01 : f32
    %264 = vector.broadcast %cst_111 : f32 to vector<16x1xf32>
    %265 = arith.divf %263, %264 : vector<16x1xf32>
    %266 = arith.mulf %257, %257 : vector<16x32xf32>
    %cst_112 = arith.constant dense<0.000000e+00> : vector<16xf32>
    %267 = vector.multi_reduction <add>, %266, %cst_112 [1] : vector<16x32xf32> to vector<16xf32>
    %268 = vector.shape_cast %267 : vector<16xf32> to vector<16x1xf32>
    %cst_113 = arith.constant 3.200000e+01 : f32
    %269 = vector.broadcast %cst_113 : f32 to vector<16x1xf32>
    %270 = arith.divf %268, %269 : vector<16x1xf32>
    %271 = arith.mulf %265, %265 : vector<16x1xf32>
    %272 = arith.subf %270, %271 : vector<16x1xf32>
    %273 = vector.broadcast %265 : vector<16x1xf32> to vector<16x32xf32>
    %274 = arith.subf %257, %273 : vector<16x32xf32>
    %cst_114 = arith.constant 9.99999996E-13 : f32
    %275 = vector.broadcast %cst_114 : f32 to vector<16x1xf32>
    %276 = arith.addf %272, %275 : vector<16x1xf32>
    %277 = math.rsqrt %276 : vector<16x1xf32>
    %278 = vector.broadcast %277 : vector<16x1xf32> to vector<16x32xf32>
    %279 = arith.mulf %274, %278 : vector<16x32xf32>
    %280 = vector.broadcast %259 : vector<1x32xf32> to vector<16x32xf32>
    %281 = arith.mulf %279, %280 : vector<16x32xf32>
    %282 = vector.broadcast %261 : vector<1x32xf32> to vector<16x32xf32>
    %283 = arith.addf %281, %282 : vector<16x32xf32>
    %c1 = arith.constant 1 : index
    %c0_115 = arith.constant 0 : index
    %c0_116 = arith.constant 0 : index
    %284 = vector.load %arg9[%c1, %c0_115, %c0_116] : memref<2x32x96xbf16, #tpu.memory_space<vmem>>, vector<1x32x96xbf16>
    %285 = vector.shape_cast %284 : vector<1x32x96xbf16> to vector<32x96xbf16>
    %c1_117 = arith.constant 1 : index
    %c0_118 = arith.constant 0 : index
    %c0_119 = arith.constant 0 : index
    %286 = vector.load %arg10[%c1_117, %c0_118, %c0_119] : memref<2x1x96xf32, #tpu.memory_space<vmem>>, vector<1x1x96xf32>
    %287 = vector.shape_cast %286 : vector<1x1x96xf32> to vector<1x96xf32>
    %288 = arith.truncf %283 : vector<16x32xf32> to vector<16x32xbf16>
    %cst_120 = arith.constant dense<0.000000e+00> : vector<16x96xf32>
    %289 = tpu.matmul %288, %285, %cst_120 {dimension_numbers = #tpu.dot_dimension_numbers<[1], [0], [0], [1], [0, 0, 1, 1], [], []>} : vector<16x32xbf16>, vector<32x96xbf16>, vector<16x96xf32> -> vector<16x96xf32>
    %290 = vector.broadcast %287 : vector<1x96xf32> to vector<16x96xf32>
    %291 = arith.addf %289, %290 : vector<16x96xf32>
    %292 = arith.truncf %291 : vector<16x96xf32> to vector<16x96xbf16>
    %c1_121 = arith.constant 1 : index
    %c0_122 = arith.constant 0 : index
    %c0_123 = arith.constant 0 : index
    %293 = vector.load %arg11[%c1_121, %c0_122, %c0_123] : memref<2x32x32xbf16, #tpu.memory_space<vmem>>, vector<1x32x32xbf16>
    %294 = vector.shape_cast %293 : vector<1x32x32xbf16> to vector<32x32xbf16>
    %c1_124 = arith.constant 1 : index
    %c0_125 = arith.constant 0 : index
    %c0_126 = arith.constant 0 : index
    %295 = vector.load %arg12[%c1_124, %c0_125, %c0_126] : memref<2x1x32xf32, #tpu.memory_space<vmem>>, vector<1x1x32xf32>
    %296 = vector.shape_cast %295 : vector<1x1x32xf32> to vector<1x32xf32>
    %297 = vector.extract_strided_slice %291 {offsets = [0, 0], sizes = [16, 8], strides = [1, 1]} : vector<16x96xf32> to vector<16x8xf32>
    %cst_127 = arith.constant 0.353553385 : f32
    %298 = vector.broadcast %cst_127 : f32 to vector<16x8xf32>
    %299 = arith.mulf %297, %298 : vector<16x8xf32>
    %300 = arith.truncf %299 : vector<16x8xf32> to vector<16x8xbf16>
    %301 = vector.extract_strided_slice %292 {offsets = [0, 32], sizes = [16, 8], strides = [1, 1]} : vector<16x96xbf16> to vector<16x8xbf16>
    %302 = vector.extract_strided_slice %292 {offsets = [0, 64], sizes = [16, 8], strides = [1, 1]} : vector<16x96xbf16> to vector<16x8xbf16>
    %cst_128 = arith.constant dense<0.000000e+00> : vector<16x16xf32>
    %303 = tpu.matmul %300, %301, %cst_128 {dimension_numbers = #tpu.dot_dimension_numbers<[1], [1], [0], [0], [0, 0, 1, 0], [], []>} : vector<16x8xbf16>, vector<16x8xbf16>, vector<16x16xf32> -> vector<16x16xf32>
    %304 = arith.addf %303, %90 : vector<16x16xf32>
    %cst_129 = arith.constant dense<0xFF800000> : vector<16xf32>
    %305 = vector.multi_reduction <maximumf>, %304, %cst_129 [1] : vector<16x16xf32> to vector<16xf32>
    %306 = vector.shape_cast %305 : vector<16xf32> to vector<16x1xf32>
    %307 = vector.broadcast %306 : vector<16x1xf32> to vector<16x16xf32>
    %308 = arith.subf %304, %307 : vector<16x16xf32>
    %309 = math.exp %308 : vector<16x16xf32>
    %cst_130 = arith.constant dense<0.000000e+00> : vector<16xf32>
    %310 = vector.multi_reduction <add>, %309, %cst_130 [1] : vector<16x16xf32> to vector<16xf32>
    %311 = vector.shape_cast %310 : vector<16xf32> to vector<16x1xf32>
    %312 = tpu.reciprocal %311 {approx = true} : vector<16x1xf32> -> vector<16x1xf32>
    %313 = vector.broadcast %312 : vector<16x1xf32> to vector<16x16xf32>
    %314 = arith.mulf %309, %313 : vector<16x16xf32>
    %315 = arith.truncf %314 : vector<16x16xf32> to vector<16x16xbf16>
    %cst_131 = arith.constant dense<0.000000e+00> : vector<16x8xf32>
    %316 = tpu.matmul %315, %302, %cst_131 {dimension_numbers = #tpu.dot_dimension_numbers<[1], [0], [0], [1], [0, 0, 1, 1], [], []>} : vector<16x16xbf16>, vector<16x8xbf16>, vector<16x8xf32> -> vector<16x8xf32>
    %317 = arith.truncf %316 : vector<16x8xf32> to vector<16x8xbf16>
    %318 = vector.extract_strided_slice %294 {offsets = [0, 0], sizes = [8, 32], strides = [1, 1]} : vector<32x32xbf16> to vector<8x32xbf16>
    %cst_132 = arith.constant dense<0.000000e+00> : vector<16x32xf32>
    %319 = tpu.matmul %317, %318, %cst_132 {dimension_numbers = #tpu.dot_dimension_numbers<[1], [0], [0], [1], [0, 0, 1, 1], [], []>} : vector<16x8xbf16>, vector<8x32xbf16>, vector<16x32xf32> -> vector<16x32xf32>
    %320 = vector.broadcast %296 : vector<1x32xf32> to vector<16x32xf32>
    %321 = arith.addf %320, %319 : vector<16x32xf32>
    %322 = vector.extract_strided_slice %291 {offsets = [0, 8], sizes = [16, 8], strides = [1, 1]} : vector<16x96xf32> to vector<16x8xf32>
    %cst_133 = arith.constant 0.353553385 : f32
    %323 = vector.broadcast %cst_133 : f32 to vector<16x8xf32>
    %324 = arith.mulf %322, %323 : vector<16x8xf32>
    %325 = arith.truncf %324 : vector<16x8xf32> to vector<16x8xbf16>
    %326 = vector.extract_strided_slice %292 {offsets = [0, 40], sizes = [16, 8], strides = [1, 1]} : vector<16x96xbf16> to vector<16x8xbf16>
    %327 = vector.extract_strided_slice %292 {offsets = [0, 72], sizes = [16, 8], strides = [1, 1]} : vector<16x96xbf16> to vector<16x8xbf16>
    %cst_134 = arith.constant dense<0.000000e+00> : vector<16x16xf32>
    %328 = tpu.matmul %325, %326, %cst_134 {dimension_numbers = #tpu.dot_dimension_numbers<[1], [1], [0], [0], [0, 0, 1, 0], [], []>} : vector<16x8xbf16>, vector<16x8xbf16>, vector<16x16xf32> -> vector<16x16xf32>
    %329 = arith.addf %328, %90 : vector<16x16xf32>
    %cst_135 = arith.constant dense<0xFF800000> : vector<16xf32>
    %330 = vector.multi_reduction <maximumf>, %329, %cst_135 [1] : vector<16x16xf32> to vector<16xf32>
    %331 = vector.shape_cast %330 : vector<16xf32> to vector<16x1xf32>
    %332 = vector.broadcast %331 : vector<16x1xf32> to vector<16x16xf32>
    %333 = arith.subf %329, %332 : vector<16x16xf32>
    %334 = math.exp %333 : vector<16x16xf32>
    %cst_136 = arith.constant dense<0.000000e+00> : vector<16xf32>
    %335 = vector.multi_reduction <add>, %334, %cst_136 [1] : vector<16x16xf32> to vector<16xf32>
    %336 = vector.shape_cast %335 : vector<16xf32> to vector<16x1xf32>
    %337 = tpu.reciprocal %336 {approx = true} : vector<16x1xf32> -> vector<16x1xf32>
    %338 = vector.broadcast %337 : vector<16x1xf32> to vector<16x16xf32>
    %339 = arith.mulf %334, %338 : vector<16x16xf32>
    %340 = arith.truncf %339 : vector<16x16xf32> to vector<16x16xbf16>
    %cst_137 = arith.constant dense<0.000000e+00> : vector<16x8xf32>
    %341 = tpu.matmul %340, %327, %cst_137 {dimension_numbers = #tpu.dot_dimension_numbers<[1], [0], [0], [1], [0, 0, 1, 1], [], []>} : vector<16x16xbf16>, vector<16x8xbf16>, vector<16x8xf32> -> vector<16x8xf32>
    %342 = arith.truncf %341 : vector<16x8xf32> to vector<16x8xbf16>
    %343 = vector.extract_strided_slice %294 {offsets = [8, 0], sizes = [8, 32], strides = [1, 1]} : vector<32x32xbf16> to vector<8x32xbf16>
    %cst_138 = arith.constant dense<0.000000e+00> : vector<16x32xf32>
    %344 = tpu.matmul %342, %343, %cst_138 {dimension_numbers = #tpu.dot_dimension_numbers<[1], [0], [0], [1], [0, 0, 1, 1], [], []>} : vector<16x8xbf16>, vector<8x32xbf16>, vector<16x32xf32> -> vector<16x32xf32>
    %345 = arith.addf %321, %344 : vector<16x32xf32>
    %346 = vector.extract_strided_slice %291 {offsets = [0, 16], sizes = [16, 8], strides = [1, 1]} : vector<16x96xf32> to vector<16x8xf32>
    %cst_139 = arith.constant 0.353553385 : f32
    %347 = vector.broadcast %cst_139 : f32 to vector<16x8xf32>
    %348 = arith.mulf %346, %347 : vector<16x8xf32>
    %349 = arith.truncf %348 : vector<16x8xf32> to vector<16x8xbf16>
    %350 = vector.extract_strided_slice %292 {offsets = [0, 48], sizes = [16, 8], strides = [1, 1]} : vector<16x96xbf16> to vector<16x8xbf16>
    %351 = vector.extract_strided_slice %292 {offsets = [0, 80], sizes = [16, 8], strides = [1, 1]} : vector<16x96xbf16> to vector<16x8xbf16>
    %cst_140 = arith.constant dense<0.000000e+00> : vector<16x16xf32>
    %352 = tpu.matmul %349, %350, %cst_140 {dimension_numbers = #tpu.dot_dimension_numbers<[1], [1], [0], [0], [0, 0, 1, 0], [], []>} : vector<16x8xbf16>, vector<16x8xbf16>, vector<16x16xf32> -> vector<16x16xf32>
    %353 = arith.addf %352, %90 : vector<16x16xf32>
    %cst_141 = arith.constant dense<0xFF800000> : vector<16xf32>
    %354 = vector.multi_reduction <maximumf>, %353, %cst_141 [1] : vector<16x16xf32> to vector<16xf32>
    %355 = vector.shape_cast %354 : vector<16xf32> to vector<16x1xf32>
    %356 = vector.broadcast %355 : vector<16x1xf32> to vector<16x16xf32>
    %357 = arith.subf %353, %356 : vector<16x16xf32>
    %358 = math.exp %357 : vector<16x16xf32>
    %cst_142 = arith.constant dense<0.000000e+00> : vector<16xf32>
    %359 = vector.multi_reduction <add>, %358, %cst_142 [1] : vector<16x16xf32> to vector<16xf32>
    %360 = vector.shape_cast %359 : vector<16xf32> to vector<16x1xf32>
    %361 = tpu.reciprocal %360 {approx = true} : vector<16x1xf32> -> vector<16x1xf32>
    %362 = vector.broadcast %361 : vector<16x1xf32> to vector<16x16xf32>
    %363 = arith.mulf %358, %362 : vector<16x16xf32>
    %364 = arith.truncf %363 : vector<16x16xf32> to vector<16x16xbf16>
    %cst_143 = arith.constant dense<0.000000e+00> : vector<16x8xf32>
    %365 = tpu.matmul %364, %351, %cst_143 {dimension_numbers = #tpu.dot_dimension_numbers<[1], [0], [0], [1], [0, 0, 1, 1], [], []>} : vector<16x16xbf16>, vector<16x8xbf16>, vector<16x8xf32> -> vector<16x8xf32>
    %366 = arith.truncf %365 : vector<16x8xf32> to vector<16x8xbf16>
    %367 = vector.extract_strided_slice %294 {offsets = [16, 0], sizes = [8, 32], strides = [1, 1]} : vector<32x32xbf16> to vector<8x32xbf16>
    %cst_144 = arith.constant dense<0.000000e+00> : vector<16x32xf32>
    %368 = tpu.matmul %366, %367, %cst_144 {dimension_numbers = #tpu.dot_dimension_numbers<[1], [0], [0], [1], [0, 0, 1, 1], [], []>} : vector<16x8xbf16>, vector<8x32xbf16>, vector<16x32xf32> -> vector<16x32xf32>
    %369 = arith.addf %345, %368 : vector<16x32xf32>
    %370 = vector.extract_strided_slice %291 {offsets = [0, 24], sizes = [16, 8], strides = [1, 1]} : vector<16x96xf32> to vector<16x8xf32>
    %cst_145 = arith.constant 0.353553385 : f32
    %371 = vector.broadcast %cst_145 : f32 to vector<16x8xf32>
    %372 = arith.mulf %370, %371 : vector<16x8xf32>
    %373 = arith.truncf %372 : vector<16x8xf32> to vector<16x8xbf16>
    %374 = vector.extract_strided_slice %292 {offsets = [0, 56], sizes = [16, 8], strides = [1, 1]} : vector<16x96xbf16> to vector<16x8xbf16>
    %375 = vector.extract_strided_slice %292 {offsets = [0, 88], sizes = [16, 8], strides = [1, 1]} : vector<16x96xbf16> to vector<16x8xbf16>
    %cst_146 = arith.constant dense<0.000000e+00> : vector<16x16xf32>
    %376 = tpu.matmul %373, %374, %cst_146 {dimension_numbers = #tpu.dot_dimension_numbers<[1], [1], [0], [0], [0, 0, 1, 0], [], []>} : vector<16x8xbf16>, vector<16x8xbf16>, vector<16x16xf32> -> vector<16x16xf32>
    %377 = arith.addf %376, %90 : vector<16x16xf32>
    %cst_147 = arith.constant dense<0xFF800000> : vector<16xf32>
    %378 = vector.multi_reduction <maximumf>, %377, %cst_147 [1] : vector<16x16xf32> to vector<16xf32>
    %379 = vector.shape_cast %378 : vector<16xf32> to vector<16x1xf32>
    %380 = vector.broadcast %379 : vector<16x1xf32> to vector<16x16xf32>
    %381 = arith.subf %377, %380 : vector<16x16xf32>
    %382 = math.exp %381 : vector<16x16xf32>
    %cst_148 = arith.constant dense<0.000000e+00> : vector<16xf32>
    %383 = vector.multi_reduction <add>, %382, %cst_148 [1] : vector<16x16xf32> to vector<16xf32>
    %384 = vector.shape_cast %383 : vector<16xf32> to vector<16x1xf32>
    %385 = tpu.reciprocal %384 {approx = true} : vector<16x1xf32> -> vector<16x1xf32>
    %386 = vector.broadcast %385 : vector<16x1xf32> to vector<16x16xf32>
    %387 = arith.mulf %382, %386 : vector<16x16xf32>
    %388 = arith.truncf %387 : vector<16x16xf32> to vector<16x16xbf16>
    %cst_149 = arith.constant dense<0.000000e+00> : vector<16x8xf32>
    %389 = tpu.matmul %388, %375, %cst_149 {dimension_numbers = #tpu.dot_dimension_numbers<[1], [0], [0], [1], [0, 0, 1, 1], [], []>} : vector<16x16xbf16>, vector<16x8xbf16>, vector<16x8xf32> -> vector<16x8xf32>
    %390 = arith.truncf %389 : vector<16x8xf32> to vector<16x8xbf16>
    %391 = vector.extract_strided_slice %294 {offsets = [24, 0], sizes = [8, 32], strides = [1, 1]} : vector<32x32xbf16> to vector<8x32xbf16>
    %cst_150 = arith.constant dense<0.000000e+00> : vector<16x32xf32>
    %392 = tpu.matmul %390, %391, %cst_150 {dimension_numbers = #tpu.dot_dimension_numbers<[1], [0], [0], [1], [0, 0, 1, 1], [], []>} : vector<16x8xbf16>, vector<8x32xbf16>, vector<16x32xf32> -> vector<16x32xf32>
    %393 = arith.addf %369, %392 : vector<16x32xf32>
    %394 = arith.addf %393, %283 : vector<16x32xf32>
    %c1_151 = arith.constant 1 : index
    %c0_152 = arith.constant 0 : index
    %c0_153 = arith.constant 0 : index
    %395 = vector.load %arg13[%c1_151, %c0_152, %c0_153] : memref<2x1x32xf32, #tpu.memory_space<vmem>>, vector<1x1x32xf32>
    %396 = vector.shape_cast %395 : vector<1x1x32xf32> to vector<1x32xf32>
    %c1_154 = arith.constant 1 : index
    %c0_155 = arith.constant 0 : index
    %c0_156 = arith.constant 0 : index
    %397 = vector.load %arg14[%c1_154, %c0_155, %c0_156] : memref<2x1x32xf32, #tpu.memory_space<vmem>>, vector<1x1x32xf32>
    %398 = vector.shape_cast %397 : vector<1x1x32xf32> to vector<1x32xf32>
    %cst_157 = arith.constant dense<0.000000e+00> : vector<16xf32>
    %399 = vector.multi_reduction <add>, %394, %cst_157 [1] : vector<16x32xf32> to vector<16xf32>
    %400 = vector.shape_cast %399 : vector<16xf32> to vector<16x1xf32>
    %cst_158 = arith.constant 3.200000e+01 : f32
    %401 = vector.broadcast %cst_158 : f32 to vector<16x1xf32>
    %402 = arith.divf %400, %401 : vector<16x1xf32>
    %403 = arith.mulf %394, %394 : vector<16x32xf32>
    %cst_159 = arith.constant dense<0.000000e+00> : vector<16xf32>
    %404 = vector.multi_reduction <add>, %403, %cst_159 [1] : vector<16x32xf32> to vector<16xf32>
    %405 = vector.shape_cast %404 : vector<16xf32> to vector<16x1xf32>
    %cst_160 = arith.constant 3.200000e+01 : f32
    %406 = vector.broadcast %cst_160 : f32 to vector<16x1xf32>
    %407 = arith.divf %405, %406 : vector<16x1xf32>
    %408 = arith.mulf %402, %402 : vector<16x1xf32>
    %409 = arith.subf %407, %408 : vector<16x1xf32>
    %410 = vector.broadcast %402 : vector<16x1xf32> to vector<16x32xf32>
    %411 = arith.subf %394, %410 : vector<16x32xf32>
    %cst_161 = arith.constant 9.99999996E-13 : f32
    %412 = vector.broadcast %cst_161 : f32 to vector<16x1xf32>
    %413 = arith.addf %409, %412 : vector<16x1xf32>
    %414 = math.rsqrt %413 : vector<16x1xf32>
    %415 = vector.broadcast %414 : vector<16x1xf32> to vector<16x32xf32>
    %416 = arith.mulf %411, %415 : vector<16x32xf32>
    %417 = vector.broadcast %396 : vector<1x32xf32> to vector<16x32xf32>
    %418 = arith.mulf %416, %417 : vector<16x32xf32>
    %419 = vector.broadcast %398 : vector<1x32xf32> to vector<16x32xf32>
    %420 = arith.addf %418, %419 : vector<16x32xf32>
    %c1_162 = arith.constant 1 : index
    %c0_163 = arith.constant 0 : index
    %c0_164 = arith.constant 0 : index
    %421 = vector.load %arg15[%c1_162, %c0_163, %c0_164] : memref<2x32x64xbf16, #tpu.memory_space<vmem>>, vector<1x32x64xbf16>
    %422 = vector.shape_cast %421 : vector<1x32x64xbf16> to vector<32x64xbf16>
    %c1_165 = arith.constant 1 : index
    %c0_166 = arith.constant 0 : index
    %c0_167 = arith.constant 0 : index
    %423 = vector.load %arg16[%c1_165, %c0_166, %c0_167] : memref<2x1x64xf32, #tpu.memory_space<vmem>>, vector<1x1x64xf32>
    %424 = vector.shape_cast %423 : vector<1x1x64xf32> to vector<1x64xf32>
    %425 = arith.truncf %420 : vector<16x32xf32> to vector<16x32xbf16>
    %cst_168 = arith.constant dense<0.000000e+00> : vector<16x64xf32>
    %426 = tpu.matmul %425, %422, %cst_168 {dimension_numbers = #tpu.dot_dimension_numbers<[1], [0], [0], [1], [0, 0, 1, 1], [], []>} : vector<16x32xbf16>, vector<32x64xbf16>, vector<16x64xf32> -> vector<16x64xf32>
    %427 = vector.broadcast %424 : vector<1x64xf32> to vector<16x64xf32>
    %428 = arith.addf %426, %427 : vector<16x64xf32>
    %429 = arith.mulf %428, %428 : vector<16x64xf32>
    %430 = arith.mulf %428, %429 : vector<16x64xf32>
    %cst_169 = arith.constant 4.471500e-02 : f32
    %431 = vector.broadcast %cst_169 : f32 to vector<16x64xf32>
    %432 = arith.mulf %431, %430 : vector<16x64xf32>
    %433 = arith.addf %428, %432 : vector<16x64xf32>
    %cst_170 = arith.constant 0.797884583 : f32
    %434 = vector.broadcast %cst_170 : f32 to vector<16x64xf32>
    %435 = arith.mulf %434, %433 : vector<16x64xf32>
    %436 = math.tanh %435 : vector<16x64xf32>
    %cst_171 = arith.constant 1.000000e+00 : f32
    %437 = vector.broadcast %cst_171 : f32 to vector<16x64xf32>
    %438 = arith.addf %437, %436 : vector<16x64xf32>
    %cst_172 = arith.constant 5.000000e-01 : f32
    %439 = vector.broadcast %cst_172 : f32 to vector<16x64xf32>
    %440 = arith.mulf %439, %438 : vector<16x64xf32>
    %441 = arith.mulf %428, %440 : vector<16x64xf32>
    %c1_173 = arith.constant 1 : index
    %c0_174 = arith.constant 0 : index
    %c0_175 = arith.constant 0 : index
    %442 = vector.load %arg17[%c1_173, %c0_174, %c0_175] : memref<2x64x32xbf16, #tpu.memory_space<vmem>>, vector<1x64x32xbf16>
    %443 = vector.shape_cast %442 : vector<1x64x32xbf16> to vector<64x32xbf16>
    %c1_176 = arith.constant 1 : index
    %c0_177 = arith.constant 0 : index
    %c0_178 = arith.constant 0 : index
    %444 = vector.load %arg18[%c1_176, %c0_177, %c0_178] : memref<2x1x32xf32, #tpu.memory_space<vmem>>, vector<1x1x32xf32>
    %445 = vector.shape_cast %444 : vector<1x1x32xf32> to vector<1x32xf32>
    %446 = arith.truncf %441 : vector<16x64xf32> to vector<16x64xbf16>
    %cst_179 = arith.constant dense<0.000000e+00> : vector<16x32xf32>
    %447 = tpu.matmul %446, %443, %cst_179 {dimension_numbers = #tpu.dot_dimension_numbers<[1], [0], [0], [1], [0, 0, 1, 1], [], []>} : vector<16x64xbf16>, vector<64x32xbf16>, vector<16x32xf32> -> vector<16x32xf32>
    %448 = vector.broadcast %445 : vector<1x32xf32> to vector<16x32xf32>
    %449 = arith.addf %447, %448 : vector<16x32xf32>
    %450 = arith.addf %449, %420 : vector<16x32xf32>
    %c1_180 = arith.constant 1 : index
    %c0_181 = arith.constant 0 : index
    %c0_182 = arith.constant 0 : index
    %451 = vector.load %arg19[%c1_180, %c0_181, %c0_182] : memref<2x1x32xf32, #tpu.memory_space<vmem>>, vector<1x1x32xf32>
    %452 = vector.shape_cast %451 : vector<1x1x32xf32> to vector<1x32xf32>
    %c1_183 = arith.constant 1 : index
    %c0_184 = arith.constant 0 : index
    %c0_185 = arith.constant 0 : index
    %453 = vector.load %arg20[%c1_183, %c0_184, %c0_185] : memref<2x1x32xf32, #tpu.memory_space<vmem>>, vector<1x1x32xf32>
    %454 = vector.shape_cast %453 : vector<1x1x32xf32> to vector<1x32xf32>
    %cst_186 = arith.constant dense<0.000000e+00> : vector<16xf32>
    %455 = vector.multi_reduction <add>, %450, %cst_186 [1] : vector<16x32xf32> to vector<16xf32>
    %456 = vector.shape_cast %455 : vector<16xf32> to vector<16x1xf32>
    %cst_187 = arith.constant 3.200000e+01 : f32
    %457 = vector.broadcast %cst_187 : f32 to vector<16x1xf32>
    %458 = arith.divf %456, %457 : vector<16x1xf32>
    %459 = arith.mulf %450, %450 : vector<16x32xf32>
    %cst_188 = arith.constant dense<0.000000e+00> : vector<16xf32>
    %460 = vector.multi_reduction <add>, %459, %cst_188 [1] : vector<16x32xf32> to vector<16xf32>
    %461 = vector.shape_cast %460 : vector<16xf32> to vector<16x1xf32>
    %cst_189 = arith.constant 3.200000e+01 : f32
    %462 = vector.broadcast %cst_189 : f32 to vector<16x1xf32>
    %463 = arith.divf %461, %462 : vector<16x1xf32>
    %464 = arith.mulf %458, %458 : vector<16x1xf32>
    %465 = arith.subf %463, %464 : vector<16x1xf32>
    %466 = vector.broadcast %458 : vector<16x1xf32> to vector<16x32xf32>
    %467 = arith.subf %450, %466 : vector<16x32xf32>
    %cst_190 = arith.constant 9.99999996E-13 : f32
    %468 = vector.broadcast %cst_190 : f32 to vector<16x1xf32>
    %469 = arith.addf %465, %468 : vector<16x1xf32>
    %470 = math.rsqrt %469 : vector<16x1xf32>
    %471 = vector.broadcast %470 : vector<16x1xf32> to vector<16x32xf32>
    %472 = arith.mulf %467, %471 : vector<16x32xf32>
    %473 = vector.broadcast %452 : vector<1x32xf32> to vector<16x32xf32>
    %474 = arith.mulf %472, %473 : vector<16x32xf32>
    %475 = vector.broadcast %454 : vector<1x32xf32> to vector<16x32xf32>
    %476 = arith.addf %474, %475 : vector<16x32xf32>
    %477 = tpu.iota {dimensions = array<i32: 1>} : vector<2x16xi32>
    %478 = tpu.iota {dimensions = array<i32: 0>} : vector<2x16xi32>
    %c8_i32_191 = arith.constant 8 : i32
    %479 = vector.broadcast %c8_i32_191 : i32 to vector<2x16xi32>
    %480 = arith.muli %478, %479 : vector<2x16xi32>
    %481 = arith.cmpi eq, %477, %480 : vector<2x16xi32>
    %cst_192 = arith.constant 1.000000e+00 : f32
    %cst_193 = arith.constant 0.000000e+00 : f32
    %482 = vector.broadcast %cst_192 : f32 to vector<2x16xf32>
    %483 = vector.broadcast %cst_193 : f32 to vector<2x16xf32>
    %484 = arith.select %481, %482, %483 : vector<2x16xi1>, vector<2x16xf32>
    %cst_194 = arith.constant dense<0.000000e+00> : vector<2x32xf32>
    %485 = tpu.matmul %484, %476, %cst_194 {dimension_numbers = #tpu.dot_dimension_numbers<[1], [0], [0], [1], [0, 0, 1, 1], [], []>} : vector<2x16xf32>, vector<16x32xf32>, vector<2x32xf32> -> vector<2x32xf32>
    %c0_195 = arith.constant 0 : index
    %c0_196 = arith.constant 0 : index
    %486 = vector.load %arg21[%c0_195, %c0_196] : memref<32x16xbf16, #tpu.memory_space<vmem>>, vector<32x16xbf16>
    %c0_197 = arith.constant 0 : index
    %c0_198 = arith.constant 0 : index
    %487 = vector.load %arg22[%c0_197, %c0_198] : memref<1x16xf32, #tpu.memory_space<vmem>>, vector<1x16xf32>
    %488 = arith.truncf %485 : vector<2x32xf32> to vector<2x32xbf16>
    %cst_199 = arith.constant dense<0.000000e+00> : vector<2x16xf32>
    %489 = tpu.matmul %488, %486, %cst_199 {dimension_numbers = #tpu.dot_dimension_numbers<[1], [0], [0], [1], [0, 0, 1, 1], [], []>} : vector<2x32xbf16>, vector<32x16xbf16>, vector<2x16xf32> -> vector<2x16xf32>
    %490 = vector.broadcast %487 : vector<1x16xf32> to vector<2x16xf32>
    %491 = arith.addf %489, %490 : vector<2x16xf32>
    %cst_200 = arith.constant 0.000000e+00 : f32
    %492 = vector.broadcast %cst_200 : f32 to vector<2x16xf32>
    %493 = arith.maximumf %491, %492 : vector<2x16xf32>
    %c0_201 = arith.constant 0 : index
    %c0_202 = arith.constant 0 : index
    %494 = vector.load %arg23[%c0_201, %c0_202] : memref<16x1xbf16, #tpu.memory_space<vmem>>, vector<16x1xbf16>
    %c0_203 = arith.constant 0 : index
    %c0_204 = arith.constant 0 : index
    %495 = vector.load %arg24[%c0_203, %c0_204] : memref<1x1xf32, #tpu.memory_space<vmem>>, vector<1x1xf32>
    %496 = arith.truncf %493 : vector<2x16xf32> to vector<2x16xbf16>
    %cst_205 = arith.constant dense<0.000000e+00> : vector<2x1xf32>
    %497 = tpu.matmul %496, %494, %cst_205 {dimension_numbers = #tpu.dot_dimension_numbers<[1], [0], [0], [1], [0, 0, 1, 1], [], []>} : vector<2x16xbf16>, vector<16x1xbf16>, vector<2x1xf32> -> vector<2x1xf32>
    %498 = vector.broadcast %495 : vector<1x1xf32> to vector<2x1xf32>
    %499 = arith.addf %497, %498 : vector<2x1xf32>
    %500 = arith.negf %499 : vector<2x1xf32>
    %501 = math.exp %500 : vector<2x1xf32>
    %cst_206 = arith.constant 1.000000e+00 : f32
    %502 = vector.broadcast %cst_206 : f32 to vector<2x1xf32>
    %503 = arith.addf %502, %501 : vector<2x1xf32>
    %504 = arith.divf %502, %503 : vector<2x1xf32>
    %c0_207 = arith.constant 0 : index
    %c0_208 = arith.constant 0 : index
    %505 = vector.load %arg25[%c0_207, %c0_208] : memref<2x1xf32, #tpu.memory_space<vmem>>, vector<2x1xf32>
    tpu.vector_store %arg25[%c0_207, %c0_208], %504 {strides = array<i32>} : memref<2x1xf32, #tpu.memory_space<vmem>>, vector<2x1xf32>,
    return
  }
}

</mosaic_0001>

<llo_original>
// kernel: tpu_custom_call.1
$region0: #{tpu_custom_call.1}
  #allocation0 [shape = 'u32[]', space=smem, size = 0x4, offset = 0x4, fixed_abs, tag = 'smem constant byte address 0x4 - core index']
  #allocation1 [shape = 'u32[144,128]{1,0:T(1,128)}', space=vmem, size = 0x12000, scoped, tag = 'internal scratch']
  #allocation2 [shape = 'f32[1,1]{1,0:T(1,128)S(1)}', space=vmem, size = 0x200, scoped, tag = 'scoped memory for tpu_custom_call.1']
  %s0 = inlined_call_operand.vmem [shape: s32[16,1], index: 0, kind: input, shape index: {}]
  %s1 = inlined_call_operand.vmem [shape: s32[16,1], index: 1, kind: input, shape index: {}]
  %s2 = inlined_call_operand.vmem [shape: s32[16,1], index: 2, kind: input, shape index: {}]
  %s3 = inlined_call_operand.vmem [shape: f32[1,16], index: 3, kind: input, shape index: {}]
  %s4 = inlined_call_operand.vmem [shape: bf16[64,32], index: 4, kind: input, shape index: {}]
  %s5 = inlined_call_operand.vmem [shape: bf16[16,32], index: 5, kind: input, shape index: {}]
  %s6 = inlined_call_operand.vmem [shape: bf16[2,32], index: 6, kind: input, shape index: {}]
  %s7 = inlined_call_operand.vmem [shape: f32[1,32], index: 7, kind: input, shape index: {}]
  %s8 = inlined_call_operand.vmem [shape: f32[1,32], index: 8, kind: input, shape index: {}]
  %s9 = inlined_call_operand.vmem [shape: bf16[2,32,96], index: 9, kind: input, shape index: {}]
  %s10 = inlined_call_operand.vmem [shape: f32[2,1,96], index: 10, kind: input, shape index: {}]
  %s11 = inlined_call_operand.vmem [shape: bf16[2,32,32], index: 11, kind: input, shape index: {}]
  %s12 = inlined_call_operand.vmem [shape: f32[2,1,32], index: 12, kind: input, shape index: {}]
  %s13 = inlined_call_operand.vmem [shape: f32[2,1,32], index: 13, kind: input, shape index: {}]
  %s14 = inlined_call_operand.vmem [shape: f32[2,1,32], index: 14, kind: input, shape index: {}]
  %s15 = inlined_call_operand.vmem [shape: bf16[2,32,64], index: 15, kind: input, shape index: {}]
  %s16 = inlined_call_operand.vmem [shape: f32[2,1,64], index: 16, kind: input, shape index: {}]
  %s17 = inlined_call_operand.vmem [shape: bf16[2,64,32], index: 17, kind: input, shape index: {}]
  %s18 = inlined_call_operand.vmem [shape: f32[2,1,32], index: 18, kind: input, shape index: {}]
  %s19 = inlined_call_operand.vmem [shape: f32[2,1,32], index: 19, kind: input, shape index: {}]
  %s20 = inlined_call_operand.vmem [shape: f32[2,1,32], index: 20, kind: input, shape index: {}]
  %s21 = inlined_call_operand.vmem [shape: bf16[32,16], index: 21, kind: input, shape index: {}]
  %s22 = inlined_call_operand.vmem [shape: f32[1,16], index: 22, kind: input, shape index: {}]
  %s23 = inlined_call_operand.vmem [shape: bf16[16,1], index: 23, kind: input, shape index: {}]
  %s24 = inlined_call_operand.<no memory space> [shape: f32[1,1], index: 24, kind: input, shape index: {}]
  %s25 = inlined_call_operand.vmem [shape: f32[2,1], index: 25, kind: output, shape index: {}]
  %s26 = sld [smem:[#allocation0]]
  $region110: #{tpu_custom_call.1} parent=0
    _
  %s28 = ssub.s32 1, %s26
  %s29 = scalar_select 0, %s28, %s26
  %v30 = vstv %s24
  %31 = vst [vmem:[#allocation2] sm:$0x1] %v30
  // Predicated region
  $region2: #{tpu_custom_call.1} parent=0 // pred_check
    _
  $region3: #{tpu_custom_call.1} parent=0 // pred_check_branch
    %33 = sbr.rel (0) target = $region5
  $region4: #{tpu_custom_call.1} parent=0 // pred_region
    _
  $region5: #{tpu_custom_call.1} parent=0 // pred_fallthru
    _
  // Predicated region
  $region6: #{tpu_custom_call.1} parent=0 // pred_check
    _
  $region7: #{tpu_custom_call.1} parent=0 // pred_check_branch
    %35 = sbr.rel (0) target = $region9
  $region8: #{tpu_custom_call.1} parent=0 // pred_region
    _
  $region9: #{tpu_custom_call.1} parent=0 // pred_fallthru
    _
  // Predicated region
  $region10: #{tpu_custom_call.1} parent=0 // pred_check
    _
  $region11: #{tpu_custom_call.1} parent=0 // pred_check_branch
    %37 = sbr.rel (0) target = $region13
  $region12: #{tpu_custom_call.1} parent=0 // pred_region
    _
  $region13: #{tpu_custom_call.1} parent=0 // pred_fallthru
    _
  // Predicated region
  $region14: #{tpu_custom_call.1} parent=0 // pred_check
    _
  $region15: #{tpu_custom_call.1} parent=0 // pred_check_branch
    %39 = sbr.rel (0) target = $region17
  $region16: #{tpu_custom_call.1} parent=0 // pred_region
    _
  $region17: #{tpu_custom_call.1} parent=0 // pred_fallthru
    _
  // Predicated region
  $region18: #{tpu_custom_call.1} parent=0 // pred_check
    _
  $region19: #{tpu_custom_call.1} parent=0 // pred_check_branch
    %41 = sbr.rel (0) target = $region21
  $region20: #{tpu_custom_call.1} parent=0 // pred_region
    _
  $region21: #{tpu_custom_call.1} parent=0 // pred_fallthru
    _
  // Predicated region
  $region22: #{tpu_custom_call.1} parent=0 // pred_check
    _
  $region23: #{tpu_custom_call.1} parent=0 // pred_check_branch
    %43 = sbr.rel (0) target = $region25
  $region24: #{tpu_custom_call.1} parent=0 // pred_region
    _
  $region25: #{tpu_custom_call.1} parent=0 // pred_fallthru
    _
  // Predicated region
  $region26: #{tpu_custom_call.1} parent=0 // pred_check
    _
  $region27: #{tpu_custom_call.1} parent=0 // pred_check_branch
    %45 = sbr.rel (0) target = $region29
  $region28: #{tpu_custom_call.1} parent=0 // pred_region
    _
  $region29: #{tpu_custom_call.1} parent=0 // pred_fallthru
    _
  // Predicated region
  $region30: #{tpu_custom_call.1} parent=0 // pred_check
    _
  $region31: #{tpu_custom_call.1} parent=0 // pred_check_branch
    %47 = sbr.rel (0) target = $region33
  $region32: #{tpu_custom_call.1} parent=0 // pred_region
    _
  $region33: #{tpu_custom_call.1} parent=0 // pred_fallthru
    _
  // Predicated region
  $region34: #{tpu_custom_call.1} parent=0 // pred_check
    _
  $region35: #{tpu_custom_call.1} parent=0 // pred_check_branch
    %49 = sbr.rel (0) target = $region37
  $region36: #{tpu_custom_call.1} parent=0 // pred_region
    _
  $region37: #{tpu_custom_call.1} parent=0 // pred_fallthru
    _
  // Predicated region
  $region38: #{tpu_custom_call.1} parent=0 // pred_check
    _
  $region39: #{tpu_custom_call.1} parent=0 // pred_check_branch
    %51 = sbr.rel (0) target = $region41
  $region40: #{tpu_custom_call.1} parent=0 // pred_region
    _
  $region41: #{tpu_custom_call.1} parent=0 // pred_fallthru
    _
  // Predicated region
  $region42: #{tpu_custom_call.1} parent=0 // pred_check
    _
  $region43: #{tpu_custom_call.1} parent=0 // pred_check_branch
    %53 = sbr.rel (0) target = $region45
  $region44: #{tpu_custom_call.1} parent=0 // pred_region
    _
  $region45: #{tpu_custom_call.1} parent=0 // pred_fallthru
    _
  // Predicated region
  $region46: #{tpu_custom_call.1} parent=0 // pred_check
    _
  $region47: #{tpu_custom_call.1} parent=0 // pred_check_branch
    %55 = sbr.rel (0) target = $region49
  $region48: #{tpu_custom_call.1} parent=0 // pred_region
    _
  $region49: #{tpu_custom_call.1} parent=0 // pred_fallthru
    _
  // Predicated region
  $region50: #{tpu_custom_call.1} parent=0 // pred_check
    _
  $region51: #{tpu_custom_call.1} parent=0 // pred_check_branch
    %57 = sbr.rel (0) target = $region53
  $region52: #{tpu_custom_call.1} parent=0 // pred_region
    _
  $region53: #{tpu_custom_call.1} parent=0 // pred_fallthru
    _
  // Predicated region
  $region54: #{tpu_custom_call.1} parent=0 // pred_check
    _
  $region55: #{tpu_custom_call.1} parent=0 // pred_check_branch
    %59 = sbr.rel (0) target = $region57
  $region56: #{tpu_custom_call.1} parent=0 // pred_region
    _
  $region57: #{tpu_custom_call.1} parent=0 // pred_fallthru
    _
  // Predicated region
  $region58: #{tpu_custom_call.1} parent=0 // pred_check
    _
  $region59: #{tpu_custom_call.1} parent=0 // pred_check_branch
    %61 = sbr.rel (0) target = $region61
  $region60: #{tpu_custom_call.1} parent=0 // pred_region
    _
  $region61: #{tpu_custom_call.1} parent=0 // pred_fallthru
    _
  // Predicated region
  $region62: #{tpu_custom_call.1} parent=0 // pred_check
    _
  $region63: #{tpu_custom_call.1} parent=0 // pred_check_branch
    %63 = sbr.rel (0) target = $region65
  $region64: #{tpu_custom_call.1} parent=0 // pred_region
    _
  $region65: #{tpu_custom_call.1} parent=0 // pred_fallthru
    _
  // Predicated region
  $region66: #{tpu_custom_call.1} parent=0 // pred_check
    _
  $region67: #{tpu_custom_call.1} parent=0 // pred_check_branch
    %65 = sbr.rel (0) target = $region69
  $region68: #{tpu_custom_call.1} parent=0 // pred_region
    _
  $region69: #{tpu_custom_call.1} parent=0 // pred_fallthru
    _
  // Predicated region
  $region70: #{tpu_custom_call.1} parent=0 // pred_check
    _
  $region71: #{tpu_custom_call.1} parent=0 // pred_check_branch
    %67 = sbr.rel (0) target = $region73
  $region72: #{tpu_custom_call.1} parent=0 // pred_region
    _
  $region73: #{tpu_custom_call.1} parent=0 // pred_fallthru
    _
  // Predicated region
  $region74: #{tpu_custom_call.1} parent=0 // pred_check
    _
  $region75: #{tpu_custom_call.1} parent=0 // pred_check_branch
    %69 = sbr.rel (0) target = $region77
  $region76: #{tpu_custom_call.1} parent=0 // pred_region
    _
  $region77: #{tpu_custom_call.1} parent=0 // pred_fallthru
    _
  // Predicated region
  $region78: #{tpu_custom_call.1} parent=0 // pred_check
    _
  $region79: #{tpu_custom_call.1} parent=0 // pred_check_branch
    %71 = sbr.rel (0) target = $region81
  $region80: #{tpu_custom_call.1} parent=0 // pred_region
    _
  $region81: #{tpu_custom_call.1} parent=0 // pred_fallthru
    _
  // Predicated region
  $region82: #{tpu_custom_call.1} parent=0 // pred_check
    _
  $region83: #{tpu_custom_call.1} parent=0 // pred_check_branch
    %73 = sbr.rel (0) target = $region85
  $region84: #{tpu_custom_call.1} parent=0 // pred_region
    _
  $region85: #{tpu_custom_call.1} parent=0 // pred_fallthru
    _
  // Predicated region
  $region86: #{tpu_custom_call.1} parent=0 // pred_check
    _
  $region87: #{tpu_custom_call.1} parent=0 // pred_check_branch
    %75 = sbr.rel (0) target = $region89
  $region88: #{tpu_custom_call.1} parent=0 // pred_region
    _
  $region89: #{tpu_custom_call.1} parent=0 // pred_fallthru
    _
  // Predicated region
  $region90: #{tpu_custom_call.1} parent=0 // pred_check
    _
  $region91: #{tpu_custom_call.1} parent=0 // pred_check_branch
    %77 = sbr.rel (0) target = $region93
  $region92: #{tpu_custom_call.1} parent=0 // pred_region
    _
  $region93: #{tpu_custom_call.1} parent=0 // pred_fallthru
    _
  // Predicated region
  $region94: #{tpu_custom_call.1} parent=0 // pred_check
    _
  $region95: #{tpu_custom_call.1} parent=0 // pred_check_branch
    %79 = sbr.rel (0) target = $region97
  $region96: #{tpu_custom_call.1} parent=0 // pred_region
    _
  $region97: #{tpu_custom_call.1} parent=0 // pred_fallthru
    _
  // Predicated region
  $region98: #{tpu_custom_call.1} parent=0 // pred_check
    _
  $region99: #{tpu_custom_call.1} parent=0 // pred_check_branch
    %81 = sbr.rel (0) target = $region101
  $region100: #{tpu_custom_call.1} parent=0 // pred_region
    _
  $region101: #{tpu_custom_call.1} parent=0 // pred_fallthru
    _
  %v83 = vld [vmem:[%s0] sm:$0xff]
  %v84 = vld [vmem:[%s0 + $0x8] sm:$0xff]
  %v85 = vlaneseq
  %v86 = vand.u32 %v85, 127
  %87 = vset.pattern.permute.xlu0 0
  %88 = vperm.xlu0 %87, %v83
  %v89 = vpop.permute.xlu0 %88
  %90 = vset.pattern.permute.xlu0 0
  %91 = vperm.xlu0 %90, %v84
  %v92 = vpop.permute.xlu0 %91
  %vm93 = vcmp.eq.s32.totalorder %v89, %v86
  %vm94 = vcmp.eq.s32.totalorder %v92, %v86
  %v95 = vsel %vm93, 1.0, 0.0
  %v96 = vsel %vm94, 1.0, 0.0
  %v97 = vpack.c.bf16 %v96, %v95
  %v98 = vld [vmem:[%s4] sm:$0xf]
  %v99 = vld [vmem:[%s4 + $0x4] sm:$0xf]
  %v100 = vld [vmem:[%s4 + $0x8] sm:$0xf]
  %v101 = vld [vmem:[%s4 + $0xc] sm:$0xf]
  %v102 = vld [vmem:[%s4 + $0x10] sm:$0xf]
  %v103 = vld [vmem:[%s4 + $0x14] sm:$0xf]
  %v104 = vld [vmem:[%s4 + $0x18] sm:$0xf]
  %v105 = vld [vmem:[%s4 + $0x1c] sm:$0xf]
  %v106 = vld [vmem:[%s1] sm:$0xff]
  %v107 = vld [vmem:[%s1 + $0x8] sm:$0xff]
  %108 = vset.pattern.permute.xlu0 0
  %109 = vperm.xlu0 %108, %v106
  %v110 = vpop.permute.xlu0 %109
  %111 = vset.pattern.permute.xlu0 0
  %112 = vperm.xlu0 %111, %v107
  %v113 = vpop.permute.xlu0 %112
  %vm114 = vcmp.eq.s32.totalorder %v110, %v86
  %vm115 = vcmp.eq.s32.totalorder %v113, %v86
  %v116 = vsel %vm114, 1.0, 0.0
  %v117 = vsel %vm115, 1.0, 0.0
  %v118 = vpack.c.bf16 %v117, %v116
  %v119 = vld [vmem:[%s5] sm:$0xf]
  %v120 = vld [vmem:[%s5 + $0x4] sm:$0xf]
  %v123 = vunpack.c.l.b16 %v119
  %v124 = vunpack.c.l.b16 %v120
  %v125 = vpack.c.b16 %v124, %v123
  %vm127 = vcmask 130048
  %v129 = vsel %vm127, %v118, 0
  %131 = vmatprep.subr.bf16.mxu0 0
  %132 = vmatpush1.bf16.msra.mxu0 %v125
  %133 = vmatprep.subr.bf16.mxu0 0
  %134 = vmatpush1.bf16.msra.mxu0 0
  %135 = vmatprep.subr.bf16.mxu0 0
  %136 = vmatpush1.bf16.msra.mxu0 0
  %137 = vmatprep.subr.bf16.mxu0 0
  %138 = vmatpush1.bf16.msra.mxu0 0
  %139 = vmatprep.subr.bf16.mxu0 0
  %140 = vmatpush1.bf16.msra.mxu0 0
  %141 = vmatprep.subr.bf16.mxu0 0
  %142 = vmatpush1.bf16.msra.mxu0 0
  %143 = vmatprep.subr.bf16.mxu0 0
  %144 = vmatpush1.bf16.msra.mxu0 0
  %145 = vmatprep.subr.bf16.mxu0 0
  %146 = vmatpush1.bf16.msra.mxu0 0
  %147 = vmatprep.subr.bf16.mxu0 0
  %148 = vmatpush1.bf16.msra.mxu0 0
  %149 = vmatprep.subr.bf16.mxu0 0
  %150 = vmatpush1.bf16.msra.mxu0 0
  %151 = vmatprep.subr.bf16.mxu0 0
  %152 = vmatpush1.bf16.msra.mxu0 0
  %153 = vmatprep.subr.bf16.mxu0 0
  %154 = vmatpush1.bf16.msra.mxu0 0
  %155 = vmatprep.subr.bf16.mxu0 0
  %156 = vmatpush1.bf16.msra.mxu0 0
  %157 = vmatprep.subr.bf16.mxu0 0
  %158 = vmatpush1.bf16.msra.mxu0 0
  %159 = vmatprep.subr.bf16.mxu0 0
  %160 = vmatpush1.bf16.msra.mxu0 0
  %161 = vmatprep.subr.bf16.mxu0 0
  %162 = vmatpush1.bf16.msra.mxu0 0
  %163 = vmatprep.mubr.bf16.mxu0 0
  %164 = vmatmul.mubr.bf16.gmra.mrb[0].mxu0 %v129
  %v165 = vpop.f32.mrb[0].mxu0
  %v166 = vadd.f32 0.0, %v165
  %v167 = vpop.f32.mrb[0].mxu0
  %v168 = vpop.f32.mrb[0].mxu0
  %v169 = vadd.f32 0.0, %v168
  %v170 = vpop.f32.mrb[0].mxu0
  %171 = vdwg.mxu0
  %v180 = vunpack.c.l.b16 %v98
  %v181 = vunpack.c.l.b16 %v99
  %v182 = vunpack.c.l.b16 %v100
  %v183 = vunpack.c.l.b16 %v101
  %v184 = vunpack.c.l.b16 %v102
  %v185 = vunpack.c.l.b16 %v103
  %v186 = vunpack.c.l.b16 %v104
  %v187 = vunpack.c.l.b16 %v105
  %v188 = vpack.c.b16 %v181, %v180
  %v189 = vpack.c.b16 %v183, %v182
  %v190 = vpack.c.b16 %v185, %v184
  %v191 = vpack.c.b16 %v187, %v186
  %vm196 = vcmask 523264
  %v198 = vsel %vm196, %v97, 0
  %200 = vmatprep.subr.bf16.mxu0 0
  %201 = vmatpush1.bf16.msra.mxu0 %v188
  %202 = vmatprep.subr.bf16.mxu0 0
  %203 = vmatpush1.bf16.msra.mxu0 %v189
  %204 = vmatprep.subr.bf16.mxu0 0
  %205 = vmatpush1.bf16.msra.mxu0 %v190
  %206 = vmatprep.subr.bf16.mxu0 0
  %207 = vmatpush1.bf16.msra.mxu0 %v191
  %208 = vmatprep.subr.bf16.mxu0 0
  %209 = vmatpush1.bf16.msra.mxu0 0
  %210 = vmatprep.subr.bf16.mxu0 0
  %211 = vmatpush1.bf16.msra.mxu0 0
  %212 = vmatprep.subr.bf16.mxu0 0
  %213 = vmatpush1.bf16.msra.mxu0 0
  %214 = vmatprep.subr.bf16.mxu0 0
  %215 = vmatpush1.bf16.msra.mxu0 0
  %216 = vmatprep.subr.bf16.mxu0 0
  %217 = vmatpush1.bf16.msra.mxu0 0
  %218 = vmatprep.subr.bf16.mxu0 0
  %219 = vmatpush1.bf16.msra.mxu0 0
  %220 = vmatprep.subr.bf16.mxu0 0
  %221 = vmatpush1.bf16.msra.mxu0 0
  %222 = vmatprep.subr.bf16.mxu0 0
  %223 = vmatpush1.bf16.msra.mxu0 0
  %224 = vmatprep.subr.bf16.mxu0 0
  %225 = vmatpush1.bf16.msra.mxu0 0
  %226 = vmatprep.subr.bf16.mxu0 0
  %227 = vmatpush1.bf16.msra.mxu0 0
  %228 = vmatprep.subr.bf16.mxu0 0
  %229 = vmatpush1.bf16.msra.mxu0 0
  %230 = vmatprep.subr.bf16.mxu0 0
  %231 = vmatpush1.bf16.msra.mxu0 0
  %232 = vmatprep.mubr.bf16.mxu0 0
  %233 = vmatmul.mubr.bf16.gmra.mrb[0].mxu0 %v198
  %v234 = vpop.f32.mrb[0].mxu0
  %v235 = vadd.f32 %v166, %v234
  %v236 = vpop.f32.mrb[0].mxu0
  %v237 = vpop.f32.mrb[0].mxu0
  %v238 = vadd.f32 %v169, %v237
  %v239 = vpop.f32.mrb[0].mxu0
  %240 = vdwg.mxu0
  %v241 = vld [vmem:[%s2] sm:$0xff]
  %v242 = vld [vmem:[%s2 + $0x8] sm:$0xff]
  %243 = vset.pattern.permute.xlu0 0
  %244 = vperm.xlu0 %243, %v241
  %v245 = vpop.permute.xlu0 %244
  %246 = vset.pattern.permute.xlu0 0
  %247 = vperm.xlu0 %246, %v242
  %v248 = vpop.permute.xlu0 %247
  %vm249 = vcmp.eq.s32.totalorder %v245, %v86
  %vm250 = vcmp.eq.s32.totalorder %v248, %v86
  %v251 = vsel %vm249, 1.0, 0.0
  %v252 = vsel %vm250, 1.0, 0.0
  %v253 = vpack.c.bf16 %v252, %v251
  %v254 = vld [vmem:[%s6] sm:$0x1]
  %vm255 = vcmask 15360
  %v257 = vsel %vm255, %v253, 0
  %vm259 = vcmask 1040384
  %v261 = vsel %vm259, %v254, 0
  %263 = vmatprep.subr.bf16.mxu0 0
  %264 = vmatpush1.bf16.msra.mxu0 %v261
  %265 = vmatprep.subr.bf16.mxu0 0
  %266 = vmatpush1.bf16.msra.mxu0 0
  %267 = vmatprep.subr.bf16.mxu0 0
  %268 = vmatpush1.bf16.msra.mxu0 0
  %269 = vmatprep.subr.bf16.mxu0 0
  %270 = vmatpush1.bf16.msra.mxu0 0
  %271 = vmatprep.subr.bf16.mxu0 0
  %272 = vmatpush1.bf16.msra.mxu0 0
  %273 = vmatprep.subr.bf16.mxu0 0
  %274 = vmatpush1.bf16.msra.mxu0 0
  %275 = vmatprep.subr.bf16.mxu0 0
  %276 = vmatpush1.bf16.msra.mxu0 0
  %277 = vmatprep.subr.bf16.mxu0 0
  %278 = vmatpush1.bf16.msra.mxu0 0
  %279 = vmatprep.subr.bf16.mxu0 0
  %280 = vmatpush1.bf16.msra.mxu0 0
  %281 = vmatprep.subr.bf16.mxu0 0
  %282 = vmatpush1.bf16.msra.mxu0 0
  %283 = vmatprep.subr.bf16.mxu0 0
  %284 = vmatpush1.bf16.msra.mxu0 0
  %285 = vmatprep.subr.bf16.mxu0 0
  %286 = vmatpush1.bf16.msra.mxu0 0
  %287 = vmatprep.subr.bf16.mxu0 0
  %288 = vmatpush1.bf16.msra.mxu0 0
  %289 = vmatprep.subr.bf16.mxu0 0
  %290 = vmatpush1.bf16.msra.mxu0 0
  %291 = vmatprep.subr.bf16.mxu0 0
  %292 = vmatpush1.bf16.msra.mxu0 0
  %293 = vmatprep.subr.bf16.mxu0 0
  %294 = vmatpush1.bf16.msra.mxu0 0
  %295 = vmatprep.mubr.bf16.mxu0 0
  %296 = vmatmul.mubr.bf16.gmra.mrb[0].mxu0 %v257
  %v297 = vpop.f32.mrb[0].mxu0
  %v298 = vadd.f32 0.0, %v297
  %v299 = vpop.f32.mrb[0].mxu0
  %v300 = vpop.f32.mrb[0].mxu0
  %v301 = vadd.f32 0.0, %v300
  %v302 = vpop.f32.mrb[0].mxu0
  %303 = vdwg.mxu0
  %v304 = vadd.f32 %v235, %v298
  %v305 = vadd.f32 %v238, %v301
  %v306 = vld [vmem:[%s7] sm:$0x1]
  %v307 = vld [vmem:[%s8] sm:$0x1]
  %vm308 = vcmask 261120
  %v309 = vsel %vm308, %v304, 0.0
  %310 = vadd.xlane.f32.xlu0 %v309
  %v311 = vpop.xlane.xlu0 %310
  %v312 = vsel %vm308, %v305, 0.0
  %313 = vadd.xlane.f32.xlu0 %v312
  %v314 = vpop.xlane.xlu0 %313
  %v315 = vrcp.pop 32.0
  %v316 = vmul.f32 %v311, %v315
  %v317 = vmul.f32 %v314, %v315
  %v318 = vmul.f32 %v304, %v304
  %v319 = vmul.f32 %v305, %v305
  %v320 = vsel %vm308, %v318, 0.0
  %321 = vadd.xlane.f32.xlu0 %v320
  %v322 = vpop.xlane.xlu0 %321
  %v323 = vsel %vm308, %v319, 0.0
  %324 = vadd.xlane.f32.xlu0 %v323
  %v325 = vpop.xlane.xlu0 %324
  %v326 = vmul.f32 %v322, %v315
  %v327 = vmul.f32 %v325, %v315
  %v328 = vmul.f32 %v316, %v316
  %v329 = vmul.f32 %v317, %v317
  %v330 = vsub.f32 %v326, %v328
  %v331 = vsub.f32 %v327, %v329
  %v332 = vsub.f32 %v304, %v316
  %v333 = vsub.f32 %v305, %v317
  %v334 = vadd.f32 %v330, 1e-12
  %v335 = vadd.f32 %v331, 1e-12
  %v336 = vrsqrt.pop %v334
  %v337 = vrsqrt.pop %v335
  %v338 = vmul.f32 %v332, %v336
  %v339 = vmul.f32 %v333, %v337
  %v341 = vlaneseq
  %v342 = vshrl.u32 %v341, 7
  %v343 = vsub.s32 0, %v342
  %v344 = vrot.slane %v306, %v343
  %v346 = vmul.f32 %v338, %v344
  %v347 = vmul.f32 %v339, %v344
  %v349 = vlaneseq
  %v350 = vshrl.u32 %v349, 7
  %v351 = vsub.s32 0, %v350
  %v352 = vrot.slane %v307, %v351
  %v354 = vadd.f32 %v346, %v352
  %v355 = vadd.f32 %v347, %v352
  %v356 = vlaneseq
  %v357 = vshrl.u32 %v356, 7
  %v358 = vadd.s32 %v357, 8
  %vm359 = vcmp.ge.s32.totalorder %v357, 0
  %vm360 = vcmp.ge.s32.totalorder %v358, 0
  %vm361 = vcmp.lt.s32.totalorder %v357, 8
  %vm362 = vcmp.lt.s32.totalorder %v358, 8
  %vm363 = vmand %vm359, %vm361
  %vm364 = vmand %vm360, %vm362
  %vm365 = vcmp.ge.s32.totalorder %v86, 0
  %vm366 = vcmp.lt.s32.totalorder %v86, 8
  %vm367 = vmand %vm365, %vm366
  %vm368 = vmand %vm363, %vm367
  %vm369 = vmand %vm364, %vm367
  %vm370 = vcmp.ge.s32.totalorder %v357, 8
  %vm371 = vcmp.ge.s32.totalorder %v358, 8
  %vm372 = vcmp.lt.s32.totalorder %v357, 16
  %vm373 = vcmp.lt.s32.totalorder %v358, 16
  %vm374 = vmand %vm370, %vm372
  %vm375 = vmand %vm371, %vm373
  %vm376 = vcmp.ge.s32.totalorder %v86, 8
  %vm377 = vcmp.lt.s32.totalorder %v86, 16
  %vm378 = vmand %vm376, %vm377
  %vm379 = vmand %vm374, %vm378
  %vm380 = vmand %vm375, %vm378
  %vm381 = vmor %vm368, %vm379
  %vm382 = vmor %vm369, %vm380
  %v383 = vld [vmem:[%s3] sm:$0x1]
  %vm384 = vcmp.gt.f32.partialorder %v383, 0.5
  %v385 = vsel %vm384, 1, 0
  %v386 = vlaneseq
  %v387 = vshrl.u32 %v386, 7
  %v388 = vsub.s32 0, %v387
  %v389 = vrot.slane %v385, %v388
  %vm390 = vcmp.eq.s32.totalorder %v389, 1
  %vm391 = vmand %vm381, %vm390
  %vm392 = vmand %vm382, %vm390
  %v393 = vsel %vm391, 0.0, -10000.0
  %v394 = vsel %vm392, 0.0, -10000.0
  %v395 = vld [vmem:[%s9] sm:$0xf]
  %v396 = vld [vmem:[%s9 + $0x4] sm:$0xf]
  %v397 = vld [vmem:[%s9 + $0x8] sm:$0xf]
  %v398 = vld [vmem:[%s9 + $0xc] sm:$0xf]
  %v399 = vld [vmem:[%s10] sm:$0x1]
  %v400 = vpack.c.bf16 %v355, %v354
  %v402 = vlaneseq
  %v403 = vshrl.u32 %v402, 7
  %v404 = vsub.s32 0, %v403
  %v405 = vrot.slane %v399, %v404
  %v411 = vunpack.c.l.b16 %v395
  %v412 = vunpack.c.l.b16 %v396
  %v413 = vunpack.c.l.b16 %v397
  %v414 = vunpack.c.l.b16 %v398
  %v415 = vpack.c.b16 %v412, %v411
  %v416 = vpack.c.b16 %v414, %v413
  %v420 = vsel %vm308, %v400, 0
  %422 = vmatprep.subr.bf16.mxu0 0
  %423 = vmatpush1.bf16.msra.mxu0 %v415
  %424 = vmatprep.subr.bf16.mxu0 0
  %425 = vmatpush1.bf16.msra.mxu0 %v416
  %426 = vmatprep.subr.bf16.mxu0 0
  %427 = vmatpush1.bf16.msra.mxu0 0
  %428 = vmatprep.subr.bf16.mxu0 0
  %429 = vmatpush1.bf16.msra.mxu0 0
  %430 = vmatprep.subr.bf16.mxu0 0
  %431 = vmatpush1.bf16.msra.mxu0 0
  %432 = vmatprep.subr.bf16.mxu0 0
  %433 = vmatpush1.bf16.msra.mxu0 0
  %434 = vmatprep.subr.bf16.mxu0 0
  %435 = vmatpush1.bf16.msra.mxu0 0
  %436 = vmatprep.subr.bf16.mxu0 0
  %437 = vmatpush1.bf16.msra.mxu0 0
  %438 = vmatprep.subr.bf16.mxu0 0
  %439 = vmatpush1.bf16.msra.mxu0 0
  %440 = vmatprep.subr.bf16.mxu0 0
  %441 = vmatpush1.bf16.msra.mxu0 0
  %442 = vmatprep.subr.bf16.mxu0 0
  %443 = vmatpush1.bf16.msra.mxu0 0
  %444 = vmatprep.subr.bf16.mxu0 0
  %445 = vmatpush1.bf16.msra.mxu0 0
  %446 = vmatprep.subr.bf16.mxu0 0
  %447 = vmatpush1.bf16.msra.mxu0 0
  %448 = vmatprep.subr.bf16.mxu0 0
  %449 = vmatpush1.bf16.msra.mxu0 0
  %450 = vmatprep.subr.bf16.mxu0 0
  %451 = vmatpush1.bf16.msra.mxu0 0
  %452 = vmatprep.subr.bf16.mxu0 0
  %453 = vmatpush1.bf16.msra.mxu0 0
  %454 = vmatprep.mubr.bf16.mxu0 0
  %455 = vmatmul.mubr.bf16.gmra.mrb[0].mxu0 %v420
  %v456 = vpop.f32.mrb[0].mxu0
  %v457 = vadd.f32 %v405, %v456
  %v458 = vpop.f32.mrb[0].mxu0
  %v459 = vpop.f32.mrb[0].mxu0
  %v460 = vadd.f32 %v405, %v459
  %v461 = vpop.f32.mrb[0].mxu0
  %462 = vdwg.mxu0
  %v463 = vpack.c.bf16 %v460, %v457
  %v464 = vld [vmem:[%s11] sm:$0xf]
  %v465 = vld [vmem:[%s11 + $0x4] sm:$0xf]
  %v466 = vld [vmem:[%s11 + $0x8] sm:$0xf]
  %v467 = vld [vmem:[%s11 + $0xc] sm:$0xf]
  %v468 = vld [vmem:[%s12] sm:$0x1]
  %v469 = vmul.f32 %v457, 0.35355338
  %v470 = vmul.f32 %v460, 0.35355338
  %v471 = vpack.c.bf16 %v470, %v469
  %473 = vrot.lane.b32.xlu0 %v463, 96
  %v474 = vpop.permute.xlu0 %473
  %vm475 = vcmask 64512
  %v477 = vsel %vm475, %v471, 0
  %v480 = vsel %vm475, %v474, 0
  %482 = vmatprep.subr.bf16.mxu0 0
  %483 = vmatpush1.bf16.xpose.msra.mxu0 %v480
  %484 = vmatprep.subr.bf16.mxu0 0
  %485 = vmatpush1.bf16.xpose.msra.mxu0 0
  %486 = vmatprep.subr.bf16.mxu0 0
  %487 = vmatpush1.bf16.xpose.msra.mxu0 0
  %488 = vmatprep.subr.bf16.mxu0 0
  %489 = vmatpush1.bf16.xpose.msra.mxu0 0
  %490 = vmatprep.subr.bf16.mxu0 0
  %491 = vmatpush1.bf16.xpose.msra.mxu0 0
  %492 = vmatprep.subr.bf16.mxu0 0
  %493 = vmatpush1.bf16.xpose.msra.mxu0 0
  %494 = vmatprep.subr.bf16.mxu0 0
  %495 = vmatpush1.bf16.xpose.msra.mxu0 0
  %496 = vmatprep.subr.bf16.mxu0 0
  %497 = vmatpush1.bf16.xpose.msra.mxu0 0
  %498 = vmatprep.subr.bf16.mxu0 0
  %499 = vmatpush1.bf16.xpose.msra.mxu0 0
  %500 = vmatprep.subr.bf16.mxu0 0
  %501 = vmatpush1.bf16.xpose.msra.mxu0 0
  %502 = vmatprep.subr.bf16.mxu0 0
  %503 = vmatpush1.bf16.xpose.msra.mxu0 0
  %504 = vmatprep.subr.bf16.mxu0 0
  %505 = vmatpush1.bf16.xpose.msra.mxu0 0
  %506 = vmatprep.subr.bf16.mxu0 0
  %507 = vmatpush1.bf16.xpose.msra.mxu0 0
  %508 = vmatprep.subr.bf16.mxu0 0
  %509 = vmatpush1.bf16.xpose.msra.mxu0 0
  %510 = vmatprep.subr.bf16.mxu0 0
  %511 = vmatpush1.bf16.xpose.msra.mxu0 0
  %512 = vmatprep.subr.bf16.mxu0 0
  %513 = vmatpush1.bf16.xpose.msra.mxu0 0
  %514 = vmatprep.mubr.bf16.mxu0 0
  %515 = vmatmul.mubr.bf16.gmra.mrb[0].mxu0 %v477
  %v516 = vpop.f32.mrb[0].mxu0
  %v517 = vadd.f32 %v393, %v516
  %v518 = vpop.f32.mrb[0].mxu0
  %v519 = vpop.f32.mrb[0].mxu0
  %v520 = vadd.f32 %v394, %v519
  %v521 = vpop.f32.mrb[0].mxu0
  %522 = vdwg.mxu0
  %v523 = vsel %vm127, %v517, -inf
  %524 = vmax.xlane.f32.xlu0 %v523
  %v525 = vpop.xlane.xlu0 %524
  %v526 = vsel %vm127, %v520, -inf
  %527 = vmax.xlane.f32.xlu0 %v526
  %v528 = vpop.xlane.xlu0 %527
  %v529 = vsub.f32 %v517, %v525
  %v530 = vsub.f32 %v520, %v528
  %v531 = vmul.f32 %v529, 1.442695
  %v532 = vpow.pop %v531
  %v533 = vmul.f32 %v530, 1.442695
  %v534 = vpow.pop %v533
  %v535 = vsel %vm127, %v532, 0.0
  %536 = vadd.xlane.f32.xlu0 %v535
  %v537 = vpop.xlane.xlu0 %536
  %v538 = vsel %vm127, %v534, 0.0
  %539 = vadd.xlane.f32.xlu0 %v538
  %v540 = vpop.xlane.xlu0 %539
  %v541 = vrcp.pop %v537
  %v542 = vrcp.pop %v540
  %v543 = vmul.f32 %v532, %v541
  %v544 = vmul.f32 %v534, %v542
  %v545 = vpack.c.bf16 %v544, %v543
  %546 = vrot.lane.b32.xlu0 %v463, 64
  %v547 = vpop.permute.xlu0 %546
  %v550 = vsel %vm127, %v545, 0
  %552 = vmatprep.subr.bf16.mxu0 0
  %553 = vmatpush1.bf16.msra.mxu0 %v547
  %554 = vmatprep.subr.bf16.mxu0 0
  %555 = vmatpush1.bf16.msra.mxu0 0
  %556 = vmatprep.subr.bf16.mxu0 0
  %557 = vmatpush1.bf16.msra.mxu0 0
  %558 = vmatprep.subr.bf16.mxu0 0
  %559 = vmatpush1.bf16.msra.mxu0 0
  %560 = vmatprep.subr.bf16.mxu0 0
  %561 = vmatpush1.bf16.msra.mxu0 0
  %562 = vmatprep.subr.bf16.mxu0 0
  %563 = vmatpush1.bf16.msra.mxu0 0
  %564 = vmatprep.subr.bf16.mxu0 0
  %565 = vmatpush1.bf16.msra.mxu0 0
  %566 = vmatprep.subr.bf16.mxu0 0
  %567 = vmatpush1.bf16.msra.mxu0 0
  %568 = vmatprep.subr.bf16.mxu0 0
  %569 = vmatpush1.bf16.msra.mxu0 0
  %570 = vmatprep.subr.bf16.mxu0 0
  %571 = vmatpush1.bf16.msra.mxu0 0
  %572 = vmatprep.subr.bf16.mxu0 0
  %573 = vmatpush1.bf16.msra.mxu0 0
  %574 = vmatprep.subr.bf16.mxu0 0
  %575 = vmatpush1.bf16.msra.mxu0 0
  %576 = vmatprep.subr.bf16.mxu0 0
  %577 = vmatpush1.bf16.msra.mxu0 0
  %578 = vmatprep.subr.bf16.mxu0 0
  %579 = vmatpush1.bf16.msra.mxu0 0
  %580 = vmatprep.subr.bf16.mxu0 0
  %581 = vmatpush1.bf16.msra.mxu0 0
  %582 = vmatprep.subr.bf16.mxu0 0
  %583 = vmatpush1.bf16.msra.mxu0 0
  %584 = vmatprep.mubr.bf16.mxu0 0
  %585 = vmatmul.mubr.bf16.gmra.mrb[0].mxu0 %v550
  %v586 = vpop.f32.mrb[0].mxu0
  %v587 = vadd.f32 0.0, %v586
  %v588 = vpop.f32.mrb[0].mxu0
  %v589 = vpop.f32.mrb[0].mxu0
  %v590 = vadd.f32 0.0, %v589
  %v591 = vpop.f32.mrb[0].mxu0
  %592 = vdwg.mxu0
  %v593 = vpack.c.bf16 %v590, %v587
  %v595 = vsel %vm475, %v593, 0
  %vm597 = vcmask 1043456
  %v599 = vsel %vm597, %v464, 0
  %601 = vmatprep.subr.bf16.mxu0 0
  %602 = vmatpush1.bf16.msra.mxu0 %v599
  %603 = vmatprep.subr.bf16.mxu0 0
  %604 = vmatpush1.bf16.msra.mxu0 0
  %605 = vmatprep.subr.bf16.mxu0 0
  %606 = vmatpush1.bf16.msra.mxu0 0
  %607 = vmatprep.subr.bf16.mxu0 0
  %608 = vmatpush1.bf16.msra.mxu0 0
  %609 = vmatprep.subr.bf16.mxu0 0
  %610 = vmatpush1.bf16.msra.mxu0 0
  %611 = vmatprep.subr.bf16.mxu0 0
  %612 = vmatpush1.bf16.msra.mxu0 0
  %613 = vmatprep.subr.bf16.mxu0 0
  %614 = vmatpush1.bf16.msra.mxu0 0
  %615 = vmatprep.subr.bf16.mxu0 0
  %616 = vmatpush1.bf16.msra.mxu0 0
  %617 = vmatprep.subr.bf16.mxu0 0
  %618 = vmatpush1.bf16.msra.mxu0 0
  %619 = vmatprep.subr.bf16.mxu0 0
  %620 = vmatpush1.bf16.msra.mxu0 0
  %621 = vmatprep.subr.bf16.mxu0 0
  %622 = vmatpush1.bf16.msra.mxu0 0
  %623 = vmatprep.subr.bf16.mxu0 0
  %624 = vmatpush1.bf16.msra.mxu0 0
  %625 = vmatprep.subr.bf16.mxu0 0
  %626 = vmatpush1.bf16.msra.mxu0 0
  %627 = vmatprep.subr.bf16.mxu0 0
  %628 = vmatpush1.bf16.msra.mxu0 0
  %629 = vmatprep.subr.bf16.mxu0 0
  %630 = vmatpush1.bf16.msra.mxu0 0
  %631 = vmatprep.subr.bf16.mxu0 0
  %632 = vmatpush1.bf16.msra.mxu0 0
  %633 = vmatprep.mubr.bf16.mxu0 0
  %634 = vmatmul.mubr.bf16.gmra.mrb[0].mxu0 %v595
  %v635 = vpop.f32.mrb[0].mxu0
  %v636 = vadd.f32 0.0, %v635
  %v637 = vpop.f32.mrb[0].mxu0
  %v638 = vpop.f32.mrb[0].mxu0
  %v639 = vadd.f32 0.0, %v638
  %v640 = vpop.f32.mrb[0].mxu0
  %641 = vdwg.mxu0
  %v643 = vlaneseq
  %v644 = vshrl.u32 %v643, 7
  %v645 = vsub.s32 0, %v644
  %v646 = vrot.slane %v468, %v645
  %v648 = vadd.f32 %v646, %v636
  %v649 = vadd.f32 %v646, %v639
  %651 = vrot.lane.b32.xlu0 %v471, 120
  %v652 = vpop.permute.xlu0 %651
  %653 = vrot.lane.b32.xlu0 %v463, 88
  %v654 = vpop.permute.xlu0 %653
  %v656 = vsel %vm475, %v652, 0
  %v659 = vsel %vm475, %v654, 0
  %661 = vmatprep.subr.bf16.mxu0 0
  %662 = vmatpush1.bf16.xpose.msra.mxu0 %v659
  %663 = vmatprep.subr.bf16.mxu0 0
  %664 = vmatpush1.bf16.xpose.msra.mxu0 0
  %665 = vmatprep.subr.bf16.mxu0 0
  %666 = vmatpush1.bf16.xpose.msra.mxu0 0
  %667 = vmatprep.subr.bf16.mxu0 0
  %668 = vmatpush1.bf16.xpose.msra.mxu0 0
  %669 = vmatprep.subr.bf16.mxu0 0
  %670 = vmatpush1.bf16.xpose.msra.mxu0 0
  %671 = vmatprep.subr.bf16.mxu0 0
  %672 = vmatpush1.bf16.xpose.msra.mxu0 0
  %673 = vmatprep.subr.bf16.mxu0 0
  %674 = vmatpush1.bf16.xpose.msra.mxu0 0
  %675 = vmatprep.subr.bf16.mxu0 0
  %676 = vmatpush1.bf16.xpose.msra.mxu0 0
  %677 = vmatprep.subr.bf16.mxu0 0
  %678 = vmatpush1.bf16.xpose.msra.mxu0 0
  %679 = vmatprep.subr.bf16.mxu0 0
  %680 = vmatpush1.bf16.xpose.msra.mxu0 0
  %681 = vmatprep.subr.bf16.mxu0 0
  %682 = vmatpush1.bf16.xpose.msra.mxu0 0
  %683 = vmatprep.subr.bf16.mxu0 0
  %684 = vmatpush1.bf16.xpose.msra.mxu0 0
  %685 = vmatprep.subr.bf16.mxu0 0
  %686 = vmatpush1.bf16.xpose.msra.mxu0 0
  %687 = vmatprep.subr.bf16.mxu0 0
  %688 = vmatpush1.bf16.xpose.msra.mxu0 0
  %689 = vmatprep.subr.bf16.mxu0 0
  %690 = vmatpush1.bf16.xpose.msra.mxu0 0
  %691 = vmatprep.subr.bf16.mxu0 0
  %692 = vmatpush1.bf16.xpose.msra.mxu0 0
  %693 = vmatprep.mubr.bf16.mxu0 0
  %694 = vmatmul.mubr.bf16.gmra.mrb[0].mxu0 %v656
  %v695 = vpop.f32.mrb[0].mxu0
  %v696 = vadd.f32 %v393, %v695
  %v697 = vpop.f32.mrb[0].mxu0
  %v698 = vpop.f32.mrb[0].mxu0
  %v699 = vadd.f32 %v394, %v698
  %v700 = vpop.f32.mrb[0].mxu0
  %701 = vdwg.mxu0
  %v702 = vsel %vm127, %v696, -inf
  %703 = vmax.xlane.f32.xlu0 %v702
  %v704 = vpop.xlane.xlu0 %703
  %v705 = vsel %vm127, %v699, -inf
  %706 = vmax.xlane.f32.xlu0 %v705
  %v707 = vpop.xlane.xlu0 %706
  %v708 = vsub.f32 %v696, %v704
  %v709 = vsub.f32 %v699, %v707
  %v710 = vmul.f32 %v708, 1.442695
  %v711 = vpow.pop %v710
  %v712 = vmul.f32 %v709, 1.442695
  %v713 = vpow.pop %v712
  %v714 = vsel %vm127, %v711, 0.0
  %715 = vadd.xlane.f32.xlu0 %v714
  %v716 = vpop.xlane.xlu0 %715
  %v717 = vsel %vm127, %v713, 0.0
  %718 = vadd.xlane.f32.xlu0 %v717
  %v719 = vpop.xlane.xlu0 %718
  %v720 = vrcp.pop %v716
  %v721 = vrcp.pop %v719
  %v722 = vmul.f32 %v711, %v720
  %v723 = vmul.f32 %v713, %v721
  %v724 = vpack.c.bf16 %v723, %v722
  %725 = vrot.lane.b32.xlu0 %v463, 56
  %v726 = vpop.permute.xlu0 %725
  %v729 = vsel %vm127, %v724, 0
  %731 = vmatprep.subr.bf16.mxu0 0
  %732 = vmatpush1.bf16.msra.mxu0 %v726
  %733 = vmatprep.subr.bf16.mxu0 0
  %734 = vmatpush1.bf16.msra.mxu0 0
  %735 = vmatprep.subr.bf16.mxu0 0
  %736 = vmatpush1.bf16.msra.mxu0 0
  %737 = vmatprep.subr.bf16.mxu0 0
  %738 = vmatpush1.bf16.msra.mxu0 0
  %739 = vmatprep.subr.bf16.mxu0 0
  %740 = vmatpush1.bf16.msra.mxu0 0
  %741 = vmatprep.subr.bf16.mxu0 0
  %742 = vmatpush1.bf16.msra.mxu0 0
  %743 = vmatprep.subr.bf16.mxu0 0
  %744 = vmatpush1.bf16.msra.mxu0 0
  %745 = vmatprep.subr.bf16.mxu0 0
  %746 = vmatpush1.bf16.msra.mxu0 0
  %747 = vmatprep.subr.bf16.mxu0 0
  %748 = vmatpush1.bf16.msra.mxu0 0
  %749 = vmatprep.subr.bf16.mxu0 0
  %750 = vmatpush1.bf16.msra.mxu0 0
  %751 = vmatprep.subr.bf16.mxu0 0
  %752 = vmatpush1.bf16.msra.mxu0 0
  %753 = vmatprep.subr.bf16.mxu0 0
  %754 = vmatpush1.bf16.msra.mxu0 0
  %755 = vmatprep.subr.bf16.mxu0 0
  %756 = vmatpush1.bf16.msra.mxu0 0
  %757 = vmatprep.subr.bf16.mxu0 0
  %758 = vmatpush1.bf16.msra.mxu0 0
  %759 = vmatprep.subr.bf16.mxu0 0
  %760 = vmatpush1.bf16.msra.mxu0 0
  %761 = vmatprep.subr.bf16.mxu0 0
  %762 = vmatpush1.bf16.msra.mxu0 0
  %763 = vmatprep.mubr.bf16.mxu0 0
  %764 = vmatmul.mubr.bf16.gmra.mrb[0].mxu0 %v729
  %v765 = vpop.f32.mrb[0].mxu0
  %v766 = vadd.f32 0.0, %v765
  %v767 = vpop.f32.mrb[0].mxu0
  %v768 = vpop.f32.mrb[0].mxu0
  %v769 = vadd.f32 0.0, %v768
  %v770 = vpop.f32.mrb[0].mxu0
  %771 = vdwg.mxu0
  %v772 = vpack.c.bf16 %v769, %v766
  %v774 = vsel %vm475, %v772, 0
  %v777 = vsel %vm597, %v465, 0
  %779 = vmatprep.subr.bf16.mxu0 0
  %780 = vmatpush1.bf16.msra.mxu0 %v777
  %781 = vmatprep.subr.bf16.mxu0 0
  %782 = vmatpush1.bf16.msra.mxu0 0
  %783 = vmatprep.subr.bf16.mxu0 0
  %784 = vmatpush1.bf16.msra.mxu0 0
  %785 = vmatprep.subr.bf16.mxu0 0
  %786 = vmatpush1.bf16.msra.mxu0 0
  %787 = vmatprep.subr.bf16.mxu0 0
  %788 = vmatpush1.bf16.msra.mxu0 0
  %789 = vmatprep.subr.bf16.mxu0 0
  %790 = vmatpush1.bf16.msra.mxu0 0
  %791 = vmatprep.subr.bf16.mxu0 0
  %792 = vmatpush1.bf16.msra.mxu0 0
  %793 = vmatprep.subr.bf16.mxu0 0
  %794 = vmatpush1.bf16.msra.mxu0 0
  %795 = vmatprep.subr.bf16.mxu0 0
  %796 = vmatpush1.bf16.msra.mxu0 0
  %797 = vmatprep.subr.bf16.mxu0 0
  %798 = vmatpush1.bf16.msra.mxu0 0
  %799 = vmatprep.subr.bf16.mxu0 0
  %800 = vmatpush1.bf16.msra.mxu0 0
  %801 = vmatprep.subr.bf16.mxu0 0
  %802 = vmatpush1.bf16.msra.mxu0 0
  %803 = vmatprep.subr.bf16.mxu0 0
  %804 = vmatpush1.bf16.msra.mxu0 0
  %805 = vmatprep.subr.bf16.mxu0 0
  %806 = vmatpush1.bf16.msra.mxu0 0
  %807 = vmatprep.subr.bf16.mxu0 0
  %808 = vmatpush1.bf16.msra.mxu0 0
  %809 = vmatprep.subr.bf16.mxu0 0
  %810 = vmatpush1.bf16.msra.mxu0 0
  %811 = vmatprep.mubr.bf16.mxu0 0
  %812 = vmatmul.mubr.bf16.gmra.mrb[0].mxu0 %v774
  %v813 = vpop.f32.mrb[0].mxu0
  %v814 = vadd.f32 0.0, %v813
  %v815 = vpop.f32.mrb[0].mxu0
  %v816 = vpop.f32.mrb[0].mxu0
  %v817 = vadd.f32 0.0, %v816
  %v818 = vpop.f32.mrb[0].mxu0
  %819 = vdwg.mxu0
  %v820 = vadd.f32 %v648, %v814
  %v821 = vadd.f32 %v649, %v817
  %822 = vrot.lane.b32.xlu0 %v471, 112
  %v823 = vpop.permute.xlu0 %822
  %824 = vrot.lane.b32.xlu0 %v463, 80
  %v825 = vpop.permute.xlu0 %824
  %v827 = vsel %vm475, %v823, 0
  %v830 = vsel %vm475, %v825, 0
  %832 = vmatprep.subr.bf16.mxu0 0
  %833 = vmatpush1.bf16.xpose.msra.mxu0 %v830
  %834 = vmatprep.subr.bf16.mxu0 0
  %835 = vmatpush1.bf16.xpose.msra.mxu0 0
  %836 = vmatprep.subr.bf16.mxu0 0
  %837 = vmatpush1.bf16.xpose.msra.mxu0 0
  %838 = vmatprep.subr.bf16.mxu0 0
  %839 = vmatpush1.bf16.xpose.msra.mxu0 0
  %840 = vmatprep.subr.bf16.mxu0 0
  %841 = vmatpush1.bf16.xpose.msra.mxu0 0
  %842 = vmatprep.subr.bf16.mxu0 0
  %843 = vmatpush1.bf16.xpose.msra.mxu0 0
  %844 = vmatprep.subr.bf16.mxu0 0
  %845 = vmatpush1.bf16.xpose.msra.mxu0 0
  %846 = vmatprep.subr.bf16.mxu0 0
  %847 = vmatpush1.bf16.xpose.msra.mxu0 0
  %848 = vmatprep.subr.bf16.mxu0 0
  %849 = vmatpush1.bf16.xpose.msra.mxu0 0
  %850 = vmatprep.subr.bf16.mxu0 0
  %851 = vmatpush1.bf16.xpose.msra.mxu0 0
  %852 = vmatprep.subr.bf16.mxu0 0
  %853 = vmatpush1.bf16.xpose.msra.mxu0 0
  %854 = vmatprep.subr.bf16.mxu0 0
  %855 = vmatpush1.bf16.xpose.msra.mxu0 0
  %856 = vmatprep.subr.bf16.mxu0 0
  %857 = vmatpush1.bf16.xpose.msra.mxu0 0
  %858 = vmatprep.subr.bf16.mxu0 0
  %859 = vmatpush1.bf16.xpose.msra.mxu0 0
  %860 = vmatprep.subr.bf16.mxu0 0
  %861 = vmatpush1.bf16.xpose.msra.mxu0 0
  %862 = vmatprep.subr.bf16.mxu0 0
  %863 = vmatpush1.bf16.xpose.msra.mxu0 0
  %864 = vmatprep.mubr.bf16.mxu0 0
  %865 = vmatmul.mubr.bf16.gmra.mrb[0].mxu0 %v827
  %v866 = vpop.f32.mrb[0].mxu0
  %v867 = vadd.f32 %v393, %v866
  %v868 = vpop.f32.mrb[0].mxu0
  %v869 = vpop.f32.mrb[0].mxu0
  %v870 = vadd.f32 %v394, %v869
  %v871 = vpop.f32.mrb[0].mxu0
  %872 = vdwg.mxu0
  %v873 = vsel %vm127, %v867, -inf
  %874 = vmax.xlane.f32.xlu0 %v873
  %v875 = vpop.xlane.xlu0 %874
  %v876 = vsel %vm127, %v870, -inf
  %877 = vmax.xlane.f32.xlu0 %v876
  %v878 = vpop.xlane.xlu0 %877
  %v879 = vsub.f32 %v867, %v875
  %v880 = vsub.f32 %v870, %v878
  %v881 = vmul.f32 %v879, 1.442695
  %v882 = vpow.pop %v881
  %v883 = vmul.f32 %v880, 1.442695
  %v884 = vpow.pop %v883
  %v885 = vsel %vm127, %v882, 0.0
  %886 = vadd.xlane.f32.xlu0 %v885
  %v887 = vpop.xlane.xlu0 %886
  %v888 = vsel %vm127, %v884, 0.0
  %889 = vadd.xlane.f32.xlu0 %v888
  %v890 = vpop.xlane.xlu0 %889
  %v891 = vrcp.pop %v887
  %v892 = vrcp.pop %v890
  %v893 = vmul.f32 %v882, %v891
  %v894 = vmul.f32 %v884, %v892
  %v895 = vpack.c.bf16 %v894, %v893
  %896 = vrot.lane.b32.xlu0 %v463, 48
  %v897 = vpop.permute.xlu0 %896
  %v900 = vsel %vm127, %v895, 0
  %902 = vmatprep.subr.bf16.mxu0 0
  %903 = vmatpush1.bf16.msra.mxu0 %v897
  %904 = vmatprep.subr.bf16.mxu0 0
  %905 = vmatpush1.bf16.msra.mxu0 0
  %906 = vmatprep.subr.bf16.mxu0 0
  %907 = vmatpush1.bf16.msra.mxu0 0
  %908 = vmatprep.subr.bf16.mxu0 0
  %909 = vmatpush1.bf16.msra.mxu0 0
  %910 = vmatprep.subr.bf16.mxu0 0
  %911 = vmatpush1.bf16.msra.mxu0 0
  %912 = vmatprep.subr.bf16.mxu0 0
  %913 = vmatpush1.bf16.msra.mxu0 0
  %914 = vmatprep.subr.bf16.mxu0 0
  %915 = vmatpush1.bf16.msra.mxu0 0
  %916 = vmatprep.subr.bf16.mxu0 0
  %917 = vmatpush1.bf16.msra.mxu0 0
  %918 = vmatprep.subr.bf16.mxu0 0
  %919 = vmatpush1.bf16.msra.mxu0 0
  %920 = vmatprep.subr.bf16.mxu0 0
  %921 = vmatpush1.bf16.msra.mxu0 0
  %922 = vmatprep.subr.bf16.mxu0 0
  %923 = vmatpush1.bf16.msra.mxu0 0
  %924 = vmatprep.subr.bf16.mxu0 0
  %925 = vmatpush1.bf16.msra.mxu0 0
  %926 = vmatprep.subr.bf16.mxu0 0
  %927 = vmatpush1.bf16.msra.mxu0 0
  %928 = vmatprep.subr.bf16.mxu0 0
  %929 = vmatpush1.bf16.msra.mxu0 0
  %930 = vmatprep.subr.bf16.mxu0 0
  %931 = vmatpush1.bf16.msra.mxu0 0
  %932 = vmatprep.subr.bf16.mxu0 0
  %933 = vmatpush1.bf16.msra.mxu0 0
  %934 = vmatprep.mubr.bf16.mxu0 0
  %935 = vmatmul.mubr.bf16.gmra.mrb[0].mxu0 %v900
  %v936 = vpop.f32.mrb[0].mxu0
  %v937 = vadd.f32 0.0, %v936
  %v938 = vpop.f32.mrb[0].mxu0
  %v939 = vpop.f32.mrb[0].mxu0
  %v940 = vadd.f32 0.0, %v939
  %v941 = vpop.f32.mrb[0].mxu0
  %942 = vdwg.mxu0
  %v943 = vpack.c.bf16 %v940, %v937
  %v945 = vsel %vm475, %v943, 0
  %v948 = vsel %vm597, %v466, 0
  %950 = vmatprep.subr.bf16.mxu0 0
  %951 = vmatpush1.bf16.msra.mxu0 %v948
  %952 = vmatprep.subr.bf16.mxu0 0
  %953 = vmatpush1.bf16.msra.mxu0 0
  %954 = vmatprep.subr.bf16.mxu0 0
  %955 = vmatpush1.bf16.msra.mxu0 0
  %956 = vmatprep.subr.bf16.mxu0 0
  %957 = vmatpush1.bf16.msra.mxu0 0
  %958 = vmatprep.subr.bf16.mxu0 0
  %959 = vmatpush1.bf16.msra.mxu0 0
  %960 = vmatprep.subr.bf16.mxu0 0
  %961 = vmatpush1.bf16.msra.mxu0 0
  %962 = vmatprep.subr.bf16.mxu0 0
  %963 = vmatpush1.bf16.msra.mxu0 0
  %964 = vmatprep.subr.bf16.mxu0 0
  %965 = vmatpush1.bf16.msra.mxu0 0
  %966 = vmatprep.subr.bf16.mxu0 0
  %967 = vmatpush1.bf16.msra.mxu0 0
  %968 = vmatprep.subr.bf16.mxu0 0
  %969 = vmatpush1.bf16.msra.mxu0 0
  %970 = vmatprep.subr.bf16.mxu0 0
  %971 = vmatpush1.bf16.msra.mxu0 0
  %972 = vmatprep.subr.bf16.mxu0 0
  %973 = vmatpush1.bf16.msra.mxu0 0
  %974 = vmatprep.subr.bf16.mxu0 0
  %975 = vmatpush1.bf16.msra.mxu0 0
  %976 = vmatprep.subr.bf16.mxu0 0
  %977 = vmatpush1.bf16.msra.mxu0 0
  %978 = vmatprep.subr.bf16.mxu0 0
  %979 = vmatpush1.bf16.msra.mxu0 0
  %980 = vmatprep.subr.bf16.mxu0 0
  %981 = vmatpush1.bf16.msra.mxu0 0
  %982 = vmatprep.mubr.bf16.mxu0 0
  %983 = vmatmul.mubr.bf16.gmra.mrb[0].mxu0 %v945
  %v984 = vpop.f32.mrb[0].mxu0
  %v985 = vadd.f32 0.0, %v984
  %v986 = vpop.f32.mrb[0].mxu0
  %v987 = vpop.f32.mrb[0].mxu0
  %v988 = vadd.f32 0.0, %v987
  %v989 = vpop.f32.mrb[0].mxu0
  %990 = vdwg.mxu0
  %v991 = vadd.f32 %v820, %v985
  %v992 = vadd.f32 %v821, %v988
  %993 = vrot.lane.b32.xlu0 %v471, 104
  %v994 = vpop.permute.xlu0 %993
  %995 = vrot.lane.b32.xlu0 %v463, 72
  %v996 = vpop.permute.xlu0 %995
  %v998 = vsel %vm475, %v994, 0
  %v1001 = vsel %vm475, %v996, 0
  %1003 = vmatprep.subr.bf16.mxu0 0
  %1004 = vmatpush1.bf16.xpose.msra.mxu0 %v1001
  %1005 = vmatprep.subr.bf16.mxu0 0
  %1006 = vmatpush1.bf16.xpose.msra.mxu0 0
  %1007 = vmatprep.subr.bf16.mxu0 0
  %1008 = vmatpush1.bf16.xpose.msra.mxu0 0
  %1009 = vmatprep.subr.bf16.mxu0 0
  %1010 = vmatpush1.bf16.xpose.msra.mxu0 0
  %1011 = vmatprep.subr.bf16.mxu0 0
  %1012 = vmatpush1.bf16.xpose.msra.mxu0 0
  %1013 = vmatprep.subr.bf16.mxu0 0
  %1014 = vmatpush1.bf16.xpose.msra.mxu0 0
  %1015 = vmatprep.subr.bf16.mxu0 0
  %1016 = vmatpush1.bf16.xpose.msra.mxu0 0
  %1017 = vmatprep.subr.bf16.mxu0 0
  %1018 = vmatpush1.bf16.xpose.msra.mxu0 0
  %1019 = vmatprep.subr.bf16.mxu0 0
  %1020 = vmatpush1.bf16.xpose.msra.mxu0 0
  %1021 = vmatprep.subr.bf16.mxu0 0
  %1022 = vmatpush1.bf16.xpose.msra.mxu0 0
  %1023 = vmatprep.subr.bf16.mxu0 0
  %1024 = vmatpush1.bf16.xpose.msra.mxu0 0
  %1025 = vmatprep.subr.bf16.mxu0 0
  %1026 = vmatpush1.bf16.xpose.msra.mxu0 0
  %1027 = vmatprep.subr.bf16.mxu0 0
  %1028 = vmatpush1.bf16.xpose.msra.mxu0 0
  %1029 = vmatprep.subr.bf16.mxu0 0
  %1030 = vmatpush1.bf16.xpose.msra.mxu0 0
  %1031 = vmatprep.subr.bf16.mxu0 0
  %1032 = vmatpush1.bf16.xpose.msra.mxu0 0
  %1033 = vmatprep.subr.bf16.mxu0 0
  %1034 = vmatpush1.bf16.xpose.msra.mxu0 0
  %1035 = vmatprep.mubr.bf16.mxu0 0
  %1036 = vmatmul.mubr.bf16.gmra.mrb[0].mxu0 %v998
  %v1037 = vpop.f32.mrb[0].mxu0
  %v1038 = vadd.f32 %v393, %v1037
  %v1039 = vpop.f32.mrb[0].mxu0
  %v1040 = vpop.f32.mrb[0].mxu0
  %v1041 = vadd.f32 %v394, %v1040
  %v1042 = vpop.f32.mrb[0].mxu0
  %1043 = vdwg.mxu0
  %v1044 = vsel %vm127, %v1038, -inf
  %1045 = vmax.xlane.f32.xlu0 %v1044
  %v1046 = vpop.xlane.xlu0 %1045
  %v1047 = vsel %vm127, %v1041, -inf
  %1048 = vmax.xlane.f32.xlu0 %v1047
  %v1049 = vpop.xlane.xlu0 %1048
  %v1050 = vsub.f32 %v1038, %v1046
  %v1051 = vsub.f32 %v1041, %v1049
  %v1052 = vmul.f32 %v1050, 1.442695
  %v1053 = vpow.pop %v1052
  %v1054 = vmul.f32 %v1051, 1.442695
  %v1055 = vpow.pop %v1054
  %v1056 = vsel %vm127, %v1053, 0.0
  %1057 = vadd.xlane.f32.xlu0 %v1056
  %v1058 = vpop.xlane.xlu0 %1057
  %v1059 = vsel %vm127, %v1055, 0.0
  %1060 = vadd.xlane.f32.xlu0 %v1059
  %v1061 = vpop.xlane.xlu0 %1060
  %v1062 = vrcp.pop %v1058
  %v1063 = vrcp.pop %v1061
  %v1064 = vmul.f32 %v1053, %v1062
  %v1065 = vmul.f32 %v1055, %v1063
  %v1066 = vpack.c.bf16 %v1065, %v1064
  %1067 = vrot.lane.b32.xlu0 %v463, 40
  %v1068 = vpop.permute.xlu0 %1067
  %v1071 = vsel %vm127, %v1066, 0
  %1073 = vmatprep.subr.bf16.mxu0 0
  %1074 = vmatpush1.bf16.msra.mxu0 %v1068
  %1075 = vmatprep.subr.bf16.mxu0 0
  %1076 = vmatpush1.bf16.msra.mxu0 0
  %1077 = vmatprep.subr.bf16.mxu0 0
  %1078 = vmatpush1.bf16.msra.mxu0 0
  %1079 = vmatprep.subr.bf16.mxu0 0
  %1080 = vmatpush1.bf16.msra.mxu0 0
  %1081 = vmatprep.subr.bf16.mxu0 0
  %1082 = vmatpush1.bf16.msra.mxu0 0
  %1083 = vmatprep.subr.bf16.mxu0 0
  %1084 = vmatpush1.bf16.msra.mxu0 0
  %1085 = vmatprep.subr.bf16.mxu0 0
  %1086 = vmatpush1.bf16.msra.mxu0 0
  %1087 = vmatprep.subr.bf16.mxu0 0
  %1088 = vmatpush1.bf16.msra.mxu0 0
  %1089 = vmatprep.subr.bf16.mxu0 0
  %1090 = vmatpush1.bf16.msra.mxu0 0
  %1091 = vmatprep.subr.bf16.mxu0 0
  %1092 = vmatpush1.bf16.msra.mxu0 0
  %1093 = vmatprep.subr.bf16.mxu0 0
  %1094 = vmatpush1.bf16.msra.mxu0 0
  %1095 = vmatprep.subr.bf16.mxu0 0
  %1096 = vmatpush1.bf16.msra.mxu0 0
  %1097 = vmatprep.subr.bf16.mxu0 0
  %1098 = vmatpush1.bf16.msra.mxu0 0
  %1099 = vmatprep.subr.bf16.mxu0 0
  %1100 = vmatpush1.bf16.msra.mxu0 0
  %1101 = vmatprep.subr.bf16.mxu0 0
  %1102 = vmatpush1.bf16.msra.mxu0 0
  %1103 = vmatprep.subr.bf16.mxu0 0
  %1104 = vmatpush1.bf16.msra.mxu0 0
  %1105 = vmatprep.mubr.bf16.mxu0 0
  %1106 = vmatmul.mubr.bf16.gmra.mrb[0].mxu0 %v1071
  %v1107 = vpop.f32.mrb[0].mxu0
  %v1108 = vadd.f32 0.0, %v1107
  %v1109 = vpop.f32.mrb[0].mxu0
  %v1110 = vpop.f32.mrb[0].mxu0
  %v1111 = vadd.f32 0.0, %v1110
  %v1112 = vpop.f32.mrb[0].mxu0
  %1113 = vdwg.mxu0
  %v1114 = vpack.c.bf16 %v1111, %v1108
  %v1116 = vsel %vm475, %v1114, 0
  %v1119 = vsel %vm597, %v467, 0
  %1121 = vmatprep.subr.bf16.mxu0 0
  %1122 = vmatpush1.bf16.msra.mxu0 %v1119
  %1123 = vmatprep.subr.bf16.mxu0 0
  %1124 = vmatpush1.bf16.msra.mxu0 0
  %1125 = vmatprep.subr.bf16.mxu0 0
  %1126 = vmatpush1.bf16.msra.mxu0 0
  %1127 = vmatprep.subr.bf16.mxu0 0
  %1128 = vmatpush1.bf16.msra.mxu0 0
  %1129 = vmatprep.subr.bf16.mxu0 0
  %1130 = vmatpush1.bf16.msra.mxu0 0
  %1131 = vmatprep.subr.bf16.mxu0 0
  %1132 = vmatpush1.bf16.msra.mxu0 0
  %1133 = vmatprep.subr.bf16.mxu0 0
  %1134 = vmatpush1.bf16.msra.mxu0 0
  %1135 = vmatprep.subr.bf16.mxu0 0
  %1136 = vmatpush1.bf16.msra.mxu0 0
  %1137 = vmatprep.subr.bf16.mxu0 0
  %1138 = vmatpush1.bf16.msra.mxu0 0
  %1139 = vmatprep.subr.bf16.mxu0 0
  %1140 = vmatpush1.bf16.msra.mxu0 0
  %1141 = vmatprep.subr.bf16.mxu0 0
  %1142 = vmatpush1.bf16.msra.mxu0 0
  %1143 = vmatprep.subr.bf16.mxu0 0
  %1144 = vmatpush1.bf16.msra.mxu0 0
  %1145 = vmatprep.subr.bf16.mxu0 0
  %1146 = vmatpush1.bf16.msra.mxu0 0
  %1147 = vmatprep.subr.bf16.mxu0 0
  %1148 = vmatpush1.bf16.msra.mxu0 0
  %1149 = vmatprep.subr.bf16.mxu0 0
  %1150 = vmatpush1.bf16.msra.mxu0 0
  %1151 = vmatprep.subr.bf16.mxu0 0
  %1152 = vmatpush1.bf16.msra.mxu0 0
  %1153 = vmatprep.mubr.bf16.mxu0 0
  %1154 = vmatmul.mubr.bf16.gmra.mrb[0].mxu0 %v1116
  %v1155 = vpop.f32.mrb[0].mxu0
  %v1156 = vadd.f32 0.0, %v1155
  %v1157 = vpop.f32.mrb[0].mxu0
  %v1158 = vpop.f32.mrb[0].mxu0
  %v1159 = vadd.f32 0.0, %v1158
  %v1160 = vpop.f32.mrb[0].mxu0
  %1161 = vdwg.mxu0
  %v1162 = vadd.f32 %v991, %v1156
  %v1163 = vadd.f32 %v992, %v1159
  %v1164 = vadd.f32 %v1162, %v354
  %v1165 = vadd.f32 %v1163, %v355
  %v1166 = vld [vmem:[%s13] sm:$0x1]
  %v1167 = vld [vmem:[%s14] sm:$0x1]
  %v1168 = vsel %vm308, %v1164, 0.0
  %1169 = vadd.xlane.f32.xlu0 %v1168
  %v1170 = vpop.xlane.xlu0 %1169
  %v1171 = vsel %vm308, %v1165, 0.0
  %1172 = vadd.xlane.f32.xlu0 %v1171
  %v1173 = vpop.xlane.xlu0 %1172
  %v1174 = vmul.f32 %v1170, %v315
  %v1175 = vmul.f32 %v1173, %v315
  %v1176 = vmul.f32 %v1164, %v1164
  %v1177 = vmul.f32 %v1165, %v1165
  %v1178 = vsel %vm308, %v1176, 0.0
  %1179 = vadd.xlane.f32.xlu0 %v1178
  %v1180 = vpop.xlane.xlu0 %1179
  %v1181 = vsel %vm308, %v1177, 0.0
  %1182 = vadd.xlane.f32.xlu0 %v1181
  %v1183 = vpop.xlane.xlu0 %1182
  %v1184 = vmul.f32 %v1180, %v315
  %v1185 = vmul.f32 %v1183, %v315
  %v1186 = vmul.f32 %v1174, %v1174
  %v1187 = vmul.f32 %v1175, %v1175
  %v1188 = vsub.f32 %v1184, %v1186
  %v1189 = vsub.f32 %v1185, %v1187
  %v1190 = vsub.f32 %v1164, %v1174
  %v1191 = vsub.f32 %v1165, %v1175
  %v1192 = vadd.f32 %v1188, 1e-12
  %v1193 = vadd.f32 %v1189, 1e-12
  %v1194 = vrsqrt.pop %v1192
  %v1195 = vrsqrt.pop %v1193
  %v1196 = vmul.f32 %v1190, %v1194
  %v1197 = vmul.f32 %v1191, %v1195
  %v1199 = vlaneseq
  %v1200 = vshrl.u32 %v1199, 7
  %v1201 = vsub.s32 0, %v1200
  %v1202 = vrot.slane %v1166, %v1201
  %v1204 = vmul.f32 %v1196, %v1202
  %v1205 = vmul.f32 %v1197, %v1202
  %v1207 = vlaneseq
  %v1208 = vshrl.u32 %v1207, 7
  %v1209 = vsub.s32 0, %v1208
  %v1210 = vrot.slane %v1167, %v1209
  %v1212 = vadd.f32 %v1204, %v1210
  %v1213 = vadd.f32 %v1205, %v1210
  %v1214 = vld [vmem:[%s15] sm:$0xf]
  %v1215 = vld [vmem:[%s15 + $0x4] sm:$0xf]
  %v1216 = vld [vmem:[%s15 + $0x8] sm:$0xf]
  %v1217 = vld [vmem:[%s15 + $0xc] sm:$0xf]
  %v1218 = vld [vmem:[%s16] sm:$0x1]
  %v1219 = vpack.c.bf16 %v1213, %v1212
  %v1221 = vlaneseq
  %v1222 = vshrl.u32 %v1221, 7
  %v1223 = vsub.s32 0, %v1222
  %v1224 = vrot.slane %v1218, %v1223
  %v1230 = vunpack.c.l.b16 %v1214
  %v1231 = vunpack.c.l.b16 %v1215
  %v1232 = vunpack.c.l.b16 %v1216
  %v1233 = vunpack.c.l.b16 %v1217
  %v1234 = vpack.c.b16 %v1231, %v1230
  %v1235 = vpack.c.b16 %v1233, %v1232
  %v1239 = vsel %vm308, %v1219, 0
  %1241 = vmatprep.subr.bf16.mxu0 0
  %1242 = vmatpush1.bf16.msra.mxu0 %v1234
  %1243 = vmatprep.subr.bf16.mxu0 0
  %1244 = vmatpush1.bf16.msra.mxu0 %v1235
  %1245 = vmatprep.subr.bf16.mxu0 0
  %1246 = vmatpush1.bf16.msra.mxu0 0
  %1247 = vmatprep.subr.bf16.mxu0 0
  %1248 = vmatpush1.bf16.msra.mxu0 0
  %1249 = vmatprep.subr.bf16.mxu0 0
  %1250 = vmatpush1.bf16.msra.mxu0 0
  %1251 = vmatprep.subr.bf16.mxu0 0
  %1252 = vmatpush1.bf16.msra.mxu0 0
  %1253 = vmatprep.subr.bf16.mxu0 0
  %1254 = vmatpush1.bf16.msra.mxu0 0
  %1255 = vmatprep.subr.bf16.mxu0 0
  %1256 = vmatpush1.bf16.msra.mxu0 0
  %1257 = vmatprep.subr.bf16.mxu0 0
  %1258 = vmatpush1.bf16.msra.mxu0 0
  %1259 = vmatprep.subr.bf16.mxu0 0
  %1260 = vmatpush1.bf16.msra.mxu0 0
  %1261 = vmatprep.subr.bf16.mxu0 0
  %1262 = vmatpush1.bf16.msra.mxu0 0
  %1263 = vmatprep.subr.bf16.mxu0 0
  %1264 = vmatpush1.bf16.msra.mxu0 0
  %1265 = vmatprep.subr.bf16.mxu0 0
  %1266 = vmatpush1.bf16.msra.mxu0 0
  %1267 = vmatprep.subr.bf16.mxu0 0
  %1268 = vmatpush1.bf16.msra.mxu0 0
  %1269 = vmatprep.subr.bf16.mxu0 0
  %1270 = vmatpush1.bf16.msra.mxu0 0
  %1271 = vmatprep.subr.bf16.mxu0 0
  %1272 = vmatpush1.bf16.msra.mxu0 0
  %1273 = vmatprep.mubr.bf16.mxu0 0
  %1274 = vmatmul.mubr.bf16.gmra.mrb[0].mxu0 %v1239
  %v1275 = vpop.f32.mrb[0].mxu0
  %v1276 = vadd.f32 %v1224, %v1275
  %v1277 = vpop.f32.mrb[0].mxu0
  %v1278 = vpop.f32.mrb[0].mxu0
  %v1279 = vadd.f32 %v1224, %v1278
  %v1280 = vpop.f32.mrb[0].mxu0
  %1281 = vdwg.mxu0
  %v1282 = vmul.f32 %v1276, %v1276
  %v1283 = vmul.f32 %v1279, %v1279
  %v1284 = vmul.f32 %v1276, %v1282
  %v1285 = vmul.f32 %v1279, %v1283
  %v1286 = vmul.f32 %v1284, 0.044715
  %v1287 = vmul.f32 %v1285, 0.044715
  %v1288 = vadd.f32 %v1276, %v1286
  %v1289 = vadd.f32 %v1279, %v1287
  %v1290 = vmul.f32 %v1288, 0.7978846
  %v1291 = vmul.f32 %v1289, 0.7978846
  %v1292 = vtanh.pop %v1290
  %v1293 = vtanh.pop %v1291
  %v1294 = vadd.f32 %v1292, 1.0
  %v1295 = vadd.f32 %v1293, 1.0
  %v1296 = vmul.f32 %v1294, 0.5
  %v1297 = vmul.f32 %v1295, 0.5
  %v1298 = vmul.f32 %v1276, %v1296
  %v1299 = vmul.f32 %v1279, %v1297
  %v1300 = vld [vmem:[%s17] sm:$0xf]
  %v1301 = vld [vmem:[%s17 + $0x4] sm:$0xf]
  %v1302 = vld [vmem:[%s17 + $0x8] sm:$0xf]
  %v1303 = vld [vmem:[%s17 + $0xc] sm:$0xf]
  %v1304 = vld [vmem:[%s17 + $0x10] sm:$0xf]
  %v1305 = vld [vmem:[%s17 + $0x14] sm:$0xf]
  %v1306 = vld [vmem:[%s17 + $0x18] sm:$0xf]
  %v1307 = vld [vmem:[%s17 + $0x1c] sm:$0xf]
  %v1308 = vld [vmem:[%s18] sm:$0x1]
  %v1309 = vpack.c.bf16 %v1299, %v1298
  %v1311 = vlaneseq
  %v1312 = vshrl.u32 %v1311, 7
  %v1313 = vsub.s32 0, %v1312
  %v1314 = vrot.slane %v1308, %v1313
  %v1324 = vunpack.c.l.b16 %v1300
  %v1325 = vunpack.c.l.b16 %v1301
  %v1326 = vunpack.c.l.b16 %v1302
  %v1327 = vunpack.c.l.b16 %v1303
  %v1328 = vunpack.c.l.b16 %v1304
  %v1329 = vunpack.c.l.b16 %v1305
  %v1330 = vunpack.c.l.b16 %v1306
  %v1331 = vunpack.c.l.b16 %v1307
  %v1332 = vpack.c.b16 %v1325, %v1324
  %v1333 = vpack.c.b16 %v1327, %v1326
  %v1334 = vpack.c.b16 %v1329, %v1328
  %v1335 = vpack.c.b16 %v1331, %v1330
  %v1341 = vsel %vm196, %v1309, 0
  %1343 = vmatprep.subr.bf16.mxu0 0
  %1344 = vmatpush1.bf16.msra.mxu0 %v1332
  %1345 = vmatprep.subr.bf16.mxu0 0
  %1346 = vmatpush1.bf16.msra.mxu0 %v1333
  %1347 = vmatprep.subr.bf16.mxu0 0
  %1348 = vmatpush1.bf16.msra.mxu0 %v1334
  %1349 = vmatprep.subr.bf16.mxu0 0
  %1350 = vmatpush1.bf16.msra.mxu0 %v1335
  %1351 = vmatprep.subr.bf16.mxu0 0
  %1352 = vmatpush1.bf16.msra.mxu0 0
  %1353 = vmatprep.subr.bf16.mxu0 0
  %1354 = vmatpush1.bf16.msra.mxu0 0
  %1355 = vmatprep.subr.bf16.mxu0 0
  %1356 = vmatpush1.bf16.msra.mxu0 0
  %1357 = vmatprep.subr.bf16.mxu0 0
  %1358 = vmatpush1.bf16.msra.mxu0 0
  %1359 = vmatprep.subr.bf16.mxu0 0
  %1360 = vmatpush1.bf16.msra.mxu0 0
  %1361 = vmatprep.subr.bf16.mxu0 0
  %1362 = vmatpush1.bf16.msra.mxu0 0
  %1363 = vmatprep.subr.bf16.mxu0 0
  %1364 = vmatpush1.bf16.msra.mxu0 0
  %1365 = vmatprep.subr.bf16.mxu0 0
  %1366 = vmatpush1.bf16.msra.mxu0 0
  %1367 = vmatprep.subr.bf16.mxu0 0
  %1368 = vmatpush1.bf16.msra.mxu0 0
  %1369 = vmatprep.subr.bf16.mxu0 0
  %1370 = vmatpush1.bf16.msra.mxu0 0
  %1371 = vmatprep.subr.bf16.mxu0 0
  %1372 = vmatpush1.bf16.msra.mxu0 0
  %1373 = vmatprep.subr.bf16.mxu0 0
  %1374 = vmatpush1.bf16.msra.mxu0 0
  %1375 = vmatprep.mubr.bf16.mxu0 0
  %1376 = vmatmul.mubr.bf16.gmra.mrb[0].mxu0 %v1341
  %v1377 = vpop.f32.mrb[0].mxu0
  %v1378 = vadd.f32 %v1314, %v1377
  %v1379 = vpop.f32.mrb[0].mxu0
  %v1380 = vpop.f32.mrb[0].mxu0
  %v1381 = vadd.f32 %v1314, %v1380
  %v1382 = vpop.f32.mrb[0].mxu0
  %1383 = vdwg.mxu0
  %v1384 = vadd.f32 %v1378, %v1212
  %v1385 = vadd.f32 %v1381, %v1213
  %v1386 = vld [vmem:[%s19] sm:$0x1]
  %v1387 = vld [vmem:[%s20] sm:$0x1]
  %v1388 = vsel %vm308, %v1384, 0.0
  %1389 = vadd.xlane.f32.xlu0 %v1388
  %v1390 = vpop.xlane.xlu0 %1389
  %v1391 = vsel %vm308, %v1385, 0.0
  %1392 = vadd.xlane.f32.xlu0 %v1391
  %v1393 = vpop.xlane.xlu0 %1392
  %v1394 = vmul.f32 %v1390, %v315
  %v1395 = vmul.f32 %v1393, %v315
  %v1396 = vmul.f32 %v1384, %v1384
  %v1397 = vmul.f32 %v1385, %v1385
  %v1398 = vsel %vm308, %v1396, 0.0
  %1399 = vadd.xlane.f32.xlu0 %v1398
  %v1400 = vpop.xlane.xlu0 %1399
  %v1401 = vsel %vm308, %v1397, 0.0
  %1402 = vadd.xlane.f32.xlu0 %v1401
  %v1403 = vpop.xlane.xlu0 %1402
  %v1404 = vmul.f32 %v1400, %v315
  %v1405 = vmul.f32 %v1403, %v315
  %v1406 = vmul.f32 %v1394, %v1394
  %v1407 = vmul.f32 %v1395, %v1395
  %v1408 = vsub.f32 %v1404, %v1406
  %v1409 = vsub.f32 %v1405, %v1407
  %v1410 = vsub.f32 %v1384, %v1394
  %v1411 = vsub.f32 %v1385, %v1395
  %v1412 = vadd.f32 %v1408, 1e-12
  %v1413 = vadd.f32 %v1409, 1e-12
  %v1414 = vrsqrt.pop %v1412
  %v1415 = vrsqrt.pop %v1413
  %v1416 = vmul.f32 %v1410, %v1414
  %v1417 = vmul.f32 %v1411, %v1415
  %v1419 = vlaneseq
  %v1420 = vshrl.u32 %v1419, 7
  %v1421 = vsub.s32 0, %v1420
  %v1422 = vrot.slane %v1386, %v1421
  %v1424 = vmul.f32 %v1416, %v1422
  %v1425 = vmul.f32 %v1417, %v1422
  %v1427 = vlaneseq
  %v1428 = vshrl.u32 %v1427, 7
  %v1429 = vsub.s32 0, %v1428
  %v1430 = vrot.slane %v1387, %v1429
  %v1432 = vadd.f32 %v1424, %v1430
  %v1433 = vadd.f32 %v1425, %v1430
  %s1434 = scalar_lea.vmem %s9, 16
  %v1435 = vld [vmem:[%s1434] sm:$0xf]
  %v1436 = vld [vmem:[%s1434 + $0x4] sm:$0xf]
  %v1437 = vld [vmem:[%s1434 + $0x8] sm:$0xf]
  %v1438 = vld [vmem:[%s1434 + $0xc] sm:$0xf]
  %s1439 = scalar_lea.vmem %s10, 1
  %v1440 = vld [vmem:[%s1439] sm:$0x1]
  %v1441 = vpack.c.bf16 %v1433, %v1432
  %v1443 = vlaneseq
  %v1444 = vshrl.u32 %v1443, 7
  %v1445 = vsub.s32 0, %v1444
  %v1446 = vrot.slane %v1440, %v1445
  %v1452 = vunpack.c.l.b16 %v1435
  %v1453 = vunpack.c.l.b16 %v1436
  %v1454 = vunpack.c.l.b16 %v1437
  %v1455 = vunpack.c.l.b16 %v1438
  %v1456 = vpack.c.b16 %v1453, %v1452
  %v1457 = vpack.c.b16 %v1455, %v1454
  %v1461 = vsel %vm308, %v1441, 0
  %1463 = vmatprep.subr.bf16.mxu0 0
  %1464 = vmatpush1.bf16.msra.mxu0 %v1456
  %1465 = vmatprep.subr.bf16.mxu0 0
  %1466 = vmatpush1.bf16.msra.mxu0 %v1457
  %1467 = vmatprep.subr.bf16.mxu0 0
  %1468 = vmatpush1.bf16.msra.mxu0 0
  %1469 = vmatprep.subr.bf16.mxu0 0
  %1470 = vmatpush1.bf16.msra.mxu0 0
  %1471 = vmatprep.subr.bf16.mxu0 0
  %1472 = vmatpush1.bf16.msra.mxu0 0
  %1473 = vmatprep.subr.bf16.mxu0 0
  %1474 = vmatpush1.bf16.msra.mxu0 0
  %1475 = vmatprep.subr.bf16.mxu0 0
  %1476 = vmatpush1.bf16.msra.mxu0 0
  %1477 = vmatprep.subr.bf16.mxu0 0
  %1478 = vmatpush1.bf16.msra.mxu0 0
  %1479 = vmatprep.subr.bf16.mxu0 0
  %1480 = vmatpush1.bf16.msra.mxu0 0
  %1481 = vmatprep.subr.bf16.mxu0 0
  %1482 = vmatpush1.bf16.msra.mxu0 0
  %1483 = vmatprep.subr.bf16.mxu0 0
  %1484 = vmatpush1.bf16.msra.mxu0 0
  %1485 = vmatprep.subr.bf16.mxu0 0
  %1486 = vmatpush1.bf16.msra.mxu0 0
  %1487 = vmatprep.subr.bf16.mxu0 0
  %1488 = vmatpush1.bf16.msra.mxu0 0
  %1489 = vmatprep.subr.bf16.mxu0 0
  %1490 = vmatpush1.bf16.msra.mxu0 0
  %1491 = vmatprep.subr.bf16.mxu0 0
  %1492 = vmatpush1.bf16.msra.mxu0 0
  %1493 = vmatprep.subr.bf16.mxu0 0
  %1494 = vmatpush1.bf16.msra.mxu0 0
  %1495 = vmatprep.mubr.bf16.mxu0 0
  %1496 = vmatmul.mubr.bf16.gmra.mrb[0].mxu0 %v1461
  %v1497 = vpop.f32.mrb[0].mxu0
  %v1498 = vadd.f32 %v1446, %v1497
  %v1499 = vpop.f32.mrb[0].mxu0
  %v1500 = vpop.f32.mrb[0].mxu0
  %v1501 = vadd.f32 %v1446, %v1500
  %v1502 = vpop.f32.mrb[0].mxu0
  %1503 = vdwg.mxu0
  %v1504 = vpack.c.bf16 %v1501, %v1498
  %s1505 = scalar_lea.vmem %s11, 16
  %v1506 = vld [vmem:[%s1505] sm:$0xf]
  %v1507 = vld [vmem:[%s1505 + $0x4] sm:$0xf]
  %v1508 = vld [vmem:[%s1505 + $0x8] sm:$0xf]
  %v1509 = vld [vmem:[%s1505 + $0xc] sm:$0xf]
  %s1510 = scalar_lea.vmem %s12, 1
  %v1511 = vld [vmem:[%s1510] sm:$0x1]
  %v1512 = vmul.f32 %v1498, 0.35355338
  %v1513 = vmul.f32 %v1501, 0.35355338
  %v1514 = vpack.c.bf16 %v1513, %v1512
  %1516 = vrot.lane.b32.xlu0 %v1504, 96
  %v1517 = vpop.permute.xlu0 %1516
  %v1519 = vsel %vm475, %v1514, 0
  %v1522 = vsel %vm475, %v1517, 0
  %1524 = vmatprep.subr.bf16.mxu0 0
  %1525 = vmatpush1.bf16.xpose.msra.mxu0 %v1522
  %1526 = vmatprep.subr.bf16.mxu0 0
  %1527 = vmatpush1.bf16.xpose.msra.mxu0 0
  %1528 = vmatprep.subr.bf16.mxu0 0
  %1529 = vmatpush1.bf16.xpose.msra.mxu0 0
  %1530 = vmatprep.subr.bf16.mxu0 0
  %1531 = vmatpush1.bf16.xpose.msra.mxu0 0
  %1532 = vmatprep.subr.bf16.mxu0 0
  %1533 = vmatpush1.bf16.xpose.msra.mxu0 0
  %1534 = vmatprep.subr.bf16.mxu0 0
  %1535 = vmatpush1.bf16.xpose.msra.mxu0 0
  %1536 = vmatprep.subr.bf16.mxu0 0
  %1537 = vmatpush1.bf16.xpose.msra.mxu0 0
  %1538 = vmatprep.subr.bf16.mxu0 0
  %1539 = vmatpush1.bf16.xpose.msra.mxu0 0
  %1540 = vmatprep.subr.bf16.mxu0 0
  %1541 = vmatpush1.bf16.xpose.msra.mxu0 0
  %1542 = vmatprep.subr.bf16.mxu0 0
  %1543 = vmatpush1.bf16.xpose.msra.mxu0 0
  %1544 = vmatprep.subr.bf16.mxu0 0
  %1545 = vmatpush1.bf16.xpose.msra.mxu0 0
  %1546 = vmatprep.subr.bf16.mxu0 0
  %1547 = vmatpush1.bf16.xpose.msra.mxu0 0
  %1548 = vmatprep.subr.bf16.mxu0 0
  %1549 = vmatpush1.bf16.xpose.msra.mxu0 0
  %1550 = vmatprep.subr.bf16.mxu0 0
  %1551 = vmatpush1.bf16.xpose.msra.mxu0 0
  %1552 = vmatprep.subr.bf16.mxu0 0
  %1553 = vmatpush1.bf16.xpose.msra.mxu0 0
  %1554 = vmatprep.subr.bf16.mxu0 0
  %1555 = vmatpush1.bf16.xpose.msra.mxu0 0
  %1556 = vmatprep.mubr.bf16.mxu0 0
  %1557 = vmatmul.mubr.bf16.gmra.mrb[0].mxu0 %v1519
  %v1558 = vpop.f32.mrb[0].mxu0
  %v1559 = vadd.f32 %v393, %v1558
  %v1560 = vpop.f32.mrb[0].mxu0
  %v1561 = vpop.f32.mrb[0].mxu0
  %v1562 = vadd.f32 %v394, %v1561
  %v1563 = vpop.f32.mrb[0].mxu0
  %1564 = vdwg.mxu0
  %v1565 = vsel %vm127, %v1559, -inf
  %1566 = vmax.xlane.f32.xlu0 %v1565
  %v1567 = vpop.xlane.xlu0 %1566
  %v1568 = vsel %vm127, %v1562, -inf
  %1569 = vmax.xlane.f32.xlu0 %v1568
  %v1570 = vpop.xlane.xlu0 %1569
  %v1571 = vsub.f32 %v1559, %v1567
  %v1572 = vsub.f32 %v1562, %v1570
  %v1573 = vmul.f32 %v1571, 1.442695
  %v1574 = vpow.pop %v1573
  %v1575 = vmul.f32 %v1572, 1.442695
  %v1576 = vpow.pop %v1575
  %v1577 = vsel %vm127, %v1574, 0.0
  %1578 = vadd.xlane.f32.xlu0 %v1577
  %v1579 = vpop.xlane.xlu0 %1578
  %v1580 = vsel %vm127, %v1576, 0.0
  %1581 = vadd.xlane.f32.xlu0 %v1580
  %v1582 = vpop.xlane.xlu0 %1581
  %v1583 = vrcp.pop %v1579
  %v1584 = vrcp.pop %v1582
  %v1585 = vmul.f32 %v1574, %v1583
  %v1586 = vmul.f32 %v1576, %v1584
  %v1587 = vpack.c.bf16 %v1586, %v1585
  %1588 = vrot.lane.b32.xlu0 %v1504, 64
  %v1589 = vpop.permute.xlu0 %1588
  %v1592 = vsel %vm127, %v1587, 0
  %1594 = vmatprep.subr.bf16.mxu0 0
  %1595 = vmatpush1.bf16.msra.mxu0 %v1589
  %1596 = vmatprep.subr.bf16.mxu0 0
  %1597 = vmatpush1.bf16.msra.mxu0 0
  %1598 = vmatprep.subr.bf16.mxu0 0
  %1599 = vmatpush1.bf16.msra.mxu0 0
  %1600 = vmatprep.subr.bf16.mxu0 0
  %1601 = vmatpush1.bf16.msra.mxu0 0
  %1602 = vmatprep.subr.bf16.mxu0 0
  %1603 = vmatpush1.bf16.msra.mxu0 0
  %1604 = vmatprep.subr.bf16.mxu0 0
  %1605 = vmatpush1.bf16.msra.mxu0 0
  %1606 = vmatprep.subr.bf16.mxu0 0
  %1607 = vmatpush1.bf16.msra.mxu0 0
  %1608 = vmatprep.subr.bf16.mxu0 0
  %1609 = vmatpush1.bf16.msra.mxu0 0
  %1610 = vmatprep.subr.bf16.mxu0 0
  %1611 = vmatpush1.bf16.msra.mxu0 0
  %1612 = vmatprep.subr.bf16.mxu0 0
  %1613 = vmatpush1.bf16.msra.mxu0 0
  %1614 = vmatprep.subr.bf16.mxu0 0
  %1615 = vmatpush1.bf16.msra.mxu0 0
  %1616 = vmatprep.subr.bf16.mxu0 0
  %1617 = vmatpush1.bf16.msra.mxu0 0
  %1618 = vmatprep.subr.bf16.mxu0 0
  %1619 = vmatpush1.bf16.msra.mxu0 0
  %1620 = vmatprep.subr.bf16.mxu0 0
  %1621 = vmatpush1.bf16.msra.mxu0 0
  %1622 = vmatprep.subr.bf16.mxu0 0
  %1623 = vmatpush1.bf16.msra.mxu0 0
  %1624 = vmatprep.subr.bf16.mxu0 0
  %1625 = vmatpush1.bf16.msra.mxu0 0
  %1626 = vmatprep.mubr.bf16.mxu0 0
  %1627 = vmatmul.mubr.bf16.gmra.mrb[0].mxu0 %v1592
  %v1628 = vpop.f32.mrb[0].mxu0
  %v1629 = vadd.f32 0.0, %v1628
  %v1630 = vpop.f32.mrb[0].mxu0
  %v1631 = vpop.f32.mrb[0].mxu0
  %v1632 = vadd.f32 0.0, %v1631
  %v1633 = vpop.f32.mrb[0].mxu0
  %1634 = vdwg.mxu0
  %v1635 = vpack.c.bf16 %v1632, %v1629
  %v1637 = vsel %vm475, %v1635, 0
  %v1640 = vsel %vm597, %v1506, 0
  %1642 = vmatprep.subr.bf16.mxu0 0
  %1643 = vmatpush1.bf16.msra.mxu0 %v1640
  %1644 = vmatprep.subr.bf16.mxu0 0
  %1645 = vmatpush1.bf16.msra.mxu0 0
  %1646 = vmatprep.subr.bf16.mxu0 0
  %1647 = vmatpush1.bf16.msra.mxu0 0
  %1648 = vmatprep.subr.bf16.mxu0 0
  %1649 = vmatpush1.bf16.msra.mxu0 0
  %1650 = vmatprep.subr.bf16.mxu0 0
  %1651 = vmatpush1.bf16.msra.mxu0 0
  %1652 = vmatprep.subr.bf16.mxu0 0
  %1653 = vmatpush1.bf16.msra.mxu0 0
  %1654 = vmatprep.subr.bf16.mxu0 0
  %1655 = vmatpush1.bf16.msra.mxu0 0
  %1656 = vmatprep.subr.bf16.mxu0 0
  %1657 = vmatpush1.bf16.msra.mxu0 0
  %1658 = vmatprep.subr.bf16.mxu0 0
  %1659 = vmatpush1.bf16.msra.mxu0 0
  %1660 = vmatprep.subr.bf16.mxu0 0
  %1661 = vmatpush1.bf16.msra.mxu0 0
  %1662 = vmatprep.subr.bf16.mxu0 0
  %1663 = vmatpush1.bf16.msra.mxu0 0
  %1664 = vmatprep.subr.bf16.mxu0 0
  %1665 = vmatpush1.bf16.msra.mxu0 0
  %1666 = vmatprep.subr.bf16.mxu0 0
  %1667 = vmatpush1.bf16.msra.mxu0 0
  %1668 = vmatprep.subr.bf16.mxu0 0
  %1669 = vmatpush1.bf16.msra.mxu0 0
  %1670 = vmatprep.subr.bf16.mxu0 0
  %1671 = vmatpush1.bf16.msra.mxu0 0
  %1672 = vmatprep.subr.bf16.mxu0 0
  %1673 = vmatpush1.bf16.msra.mxu0 0
  %1674 = vmatprep.mubr.bf16.mxu0 0
  %1675 = vmatmul.mubr.bf16.gmra.mrb[0].mxu0 %v1637
  %v1676 = vpop.f32.mrb[0].mxu0
  %v1677 = vadd.f32 0.0, %v1676
  %v1678 = vpop.f32.mrb[0].mxu0
  %v1679 = vpop.f32.mrb[0].mxu0
  %v1680 = vadd.f32 0.0, %v1679
  %v1681 = vpop.f32.mrb[0].mxu0
  %1682 = vdwg.mxu0
  %v1684 = vlaneseq
  %v1685 = vshrl.u32 %v1684, 7
  %v1686 = vsub.s32 0, %v1685
  %v1687 = vrot.slane %v1511, %v1686
  %v1689 = vadd.f32 %v1687, %v1677
  %v1690 = vadd.f32 %v1687, %v1680
  %1692 = vrot.lane.b32.xlu0 %v1514, 120
  %v1693 = vpop.permute.xlu0 %1692
  %1694 = vrot.lane.b32.xlu0 %v1504, 88
  %v1695 = vpop.permute.xlu0 %1694
  %v1697 = vsel %vm475, %v1693, 0
  %v1700 = vsel %vm475, %v1695, 0
  %1702 = vmatprep.subr.bf16.mxu0 0
  %1703 = vmatpush1.bf16.xpose.msra.mxu0 %v1700
  %1704 = vmatprep.subr.bf16.mxu0 0
  %1705 = vmatpush1.bf16.xpose.msra.mxu0 0
  %1706 = vmatprep.subr.bf16.mxu0 0
  %1707 = vmatpush1.bf16.xpose.msra.mxu0 0
  %1708 = vmatprep.subr.bf16.mxu0 0
  %1709 = vmatpush1.bf16.xpose.msra.mxu0 0
  %1710 = vmatprep.subr.bf16.mxu0 0
  %1711 = vmatpush1.bf16.xpose.msra.mxu0 0
  %1712 = vmatprep.subr.bf16.mxu0 0
  %1713 = vmatpush1.bf16.xpose.msra.mxu0 0
  %1714 = vmatprep.subr.bf16.mxu0 0
  %1715 = vmatpush1.bf16.xpose.msra.mxu0 0
  %1716 = vmatprep.subr.bf16.mxu0 0
  %1717 = vmatpush1.bf16.xpose.msra.mxu0 0
  %1718 = vmatprep.subr.bf16.mxu0 0
  %1719 = vmatpush1.bf16.xpose.msra.mxu0 0
  %1720 = vmatprep.subr.bf16.mxu0 0
  %1721 = vmatpush1.bf16.xpose.msra.mxu0 0
  %1722 = vmatprep.subr.bf16.mxu0 0
  %1723 = vmatpush1.bf16.xpose.msra.mxu0 0
  %1724 = vmatprep.subr.bf16.mxu0 0
  %1725 = vmatpush1.bf16.xpose.msra.mxu0 0
  %1726 = vmatprep.subr.bf16.mxu0 0
  %1727 = vmatpush1.bf16.xpose.msra.mxu0 0
  %1728 = vmatprep.subr.bf16.mxu0 0
  %1729 = vmatpush1.bf16.xpose.msra.mxu0 0
  %1730 = vmatprep.subr.bf16.mxu0 0
  %1731 = vmatpush1.bf16.xpose.msra.mxu0 0
  %1732 = vmatprep.subr.bf16.mxu0 0
  %1733 = vmatpush1.bf16.xpose.msra.mxu0 0
  %1734 = vmatprep.mubr.bf16.mxu0 0
  %1735 = vmatmul.mubr.bf16.gmra.mrb[0].mxu0 %v1697
  %v1736 = vpop.f32.mrb[0].mxu0
  %v1737 = vadd.f32 %v393, %v1736
  %v1738 = vpop.f32.mrb[0].mxu0
  %v1739 = vpop.f32.mrb[0].mxu0
  %v1740 = vadd.f32 %v394, %v1739
  %v1741 = vpop.f32.mrb[0].mxu0
  %1742 = vdwg.mxu0
  %v1743 = vsel %vm127, %v1737, -inf
  %1744 = vmax.xlane.f32.xlu0 %v1743
  %v1745 = vpop.xlane.xlu0 %1744
  %v1746 = vsel %vm127, %v1740, -inf
  %1747 = vmax.xlane.f32.xlu0 %v1746
  %v1748 = vpop.xlane.xlu0 %1747
  %v1749 = vsub.f32 %v1737, %v1745
  %v1750 = vsub.f32 %v1740, %v1748
  %v1751 = vmul.f32 %v1749, 1.442695
  %v1752 = vpow.pop %v1751
  %v1753 = vmul.f32 %v1750, 1.442695
  %v1754 = vpow.pop %v1753
  %v1755 = vsel %vm127, %v1752, 0.0
  %1756 = vadd.xlane.f32.xlu0 %v1755
  %v1757 = vpop.xlane.xlu0 %1756
  %v1758 = vsel %vm127, %v1754, 0.0
  %1759 = vadd.xlane.f32.xlu0 %v1758
  %v1760 = vpop.xlane.xlu0 %1759
  %v1761 = vrcp.pop %v1757
  %v1762 = vrcp.pop %v1760
  %v1763 = vmul.f32 %v1752, %v1761
  %v1764 = vmul.f32 %v1754, %v1762
  %v1765 = vpack.c.bf16 %v1764, %v1763
  %1766 = vrot.lane.b32.xlu0 %v1504, 56
  %v1767 = vpop.permute.xlu0 %1766
  %v1770 = vsel %vm127, %v1765, 0
  %1772 = vmatprep.subr.bf16.mxu0 0
  %1773 = vmatpush1.bf16.msra.mxu0 %v1767
  %1774 = vmatprep.subr.bf16.mxu0 0
  %1775 = vmatpush1.bf16.msra.mxu0 0
  %1776 = vmatprep.subr.bf16.mxu0 0
  %1777 = vmatpush1.bf16.msra.mxu0 0
  %1778 = vmatprep.subr.bf16.mxu0 0
  %1779 = vmatpush1.bf16.msra.mxu0 0
  %1780 = vmatprep.subr.bf16.mxu0 0
  %1781 = vmatpush1.bf16.msra.mxu0 0
  %1782 = vmatprep.subr.bf16.mxu0 0
  %1783 = vmatpush1.bf16.msra.mxu0 0
  %1784 = vmatprep.subr.bf16.mxu0 0
  %1785 = vmatpush1.bf16.msra.mxu0 0
  %1786 = vmatprep.subr.bf16.mxu0 0
  %1787 = vmatpush1.bf16.msra.mxu0 0
  %1788 = vmatprep.subr.bf16.mxu0 0
  %1789 = vmatpush1.bf16.msra.mxu0 0
  %1790 = vmatprep.subr.bf16.mxu0 0
  %1791 = vmatpush1.bf16.msra.mxu0 0
  %1792 = vmatprep.subr.bf16.mxu0 0
  %1793 = vmatpush1.bf16.msra.mxu0 0
  %1794 = vmatprep.subr.bf16.mxu0 0
  %1795 = vmatpush1.bf16.msra.mxu0 0
  %1796 = vmatprep.subr.bf16.mxu0 0
  %1797 = vmatpush1.bf16.msra.mxu0 0
  %1798 = vmatprep.subr.bf16.mxu0 0
  %1799 = vmatpush1.bf16.msra.mxu0 0
  %1800 = vmatprep.subr.bf16.mxu0 0
  %1801 = vmatpush1.bf16.msra.mxu0 0
  %1802 = vmatprep.subr.bf16.mxu0 0
  %1803 = vmatpush1.bf16.msra.mxu0 0
  %1804 = vmatprep.mubr.bf16.mxu0 0
  %1805 = vmatmul.mubr.bf16.gmra.mrb[0].mxu0 %v1770
  %v1806 = vpop.f32.mrb[0].mxu0
  %v1807 = vadd.f32 0.0, %v1806
  %v1808 = vpop.f32.mrb[0].mxu0
  %v1809 = vpop.f32.mrb[0].mxu0
  %v1810 = vadd.f32 0.0, %v1809
  %v1811 = vpop.f32.mrb[0].mxu0
  %1812 = vdwg.mxu0
  %v1813 = vpack.c.bf16 %v1810, %v1807
  %v1815 = vsel %vm475, %v1813, 0
  %v1818 = vsel %vm597, %v1507, 0
  %1820 = vmatprep.subr.bf16.mxu0 0
  %1821 = vmatpush1.bf16.msra.mxu0 %v1818
  %1822 = vmatprep.subr.bf16.mxu0 0
  %1823 = vmatpush1.bf16.msra.mxu0 0
  %1824 = vmatprep.subr.bf16.mxu0 0
  %1825 = vmatpush1.bf16.msra.mxu0 0
  %1826 = vmatprep.subr.bf16.mxu0 0
  %1827 = vmatpush1.bf16.msra.mxu0 0
  %1828 = vmatprep.subr.bf16.mxu0 0
  %1829 = vmatpush1.bf16.msra.mxu0 0
  %1830 = vmatprep.subr.bf16.mxu0 0
  %1831 = vmatpush1.bf16.msra.mxu0 0
  %1832 = vmatprep.subr.bf16.mxu0 0
  %1833 = vmatpush1.bf16.msra.mxu0 0
  %1834 = vmatprep.subr.bf16.mxu0 0
  %1835 = vmatpush1.bf16.msra.mxu0 0
  %1836 = vmatprep.subr.bf16.mxu0 0
  %1837 = vmatpush1.bf16.msra.mxu0 0
  %1838 = vmatprep.subr.bf16.mxu0 0
  %1839 = vmatpush1.bf16.msra.mxu0 0
  %1840 = vmatprep.subr.bf16.mxu0 0
  %1841 = vmatpush1.bf16.msra.mxu0 0
  %1842 = vmatprep.subr.bf16.mxu0 0
  %1843 = vmatpush1.bf16.msra.mxu0 0
  %1844 = vmatprep.subr.bf16.mxu0 0
  %1845 = vmatpush1.bf16.msra.mxu0 0
  %1846 = vmatprep.subr.bf16.mxu0 0
  %1847 = vmatpush1.bf16.msra.mxu0 0
  %1848 = vmatprep.subr.bf16.mxu0 0
  %1849 = vmatpush1.bf16.msra.mxu0 0
  %1850 = vmatprep.subr.bf16.mxu0 0
  %1851 = vmatpush1.bf16.msra.mxu0 0
  %1852 = vmatprep.mubr.bf16.mxu0 0
  %1853 = vmatmul.mubr.bf16.gmra.mrb[0].mxu0 %v1815
  %v1854 = vpop.f32.mrb[0].mxu0
  %v1855 = vadd.f32 0.0, %v1854
  %v1856 = vpop.f32.mrb[0].mxu0
  %v1857 = vpop.f32.mrb[0].mxu0
  %v1858 = vadd.f32 0.0, %v1857
  %v1859 = vpop.f32.mrb[0].mxu0
  %1860 = vdwg.mxu0
  %v1861 = vadd.f32 %v1689, %v1855
  %v1862 = vadd.f32 %v1690, %v1858
  %1863 = vrot.lane.b32.xlu0 %v1514, 112
  %v1864 = vpop.permute.xlu0 %1863
  %1865 = vrot.lane.b32.xlu0 %v1504, 80
  %v1866 = vpop.permute.xlu0 %1865
  %v1868 = vsel %vm475, %v1864, 0
  %v1871 = vsel %vm475, %v1866, 0
  %1873 = vmatprep.subr.bf16.mxu0 0
  %1874 = vmatpush1.bf16.xpose.msra.mxu0 %v1871
  %1875 = vmatprep.subr.bf16.mxu0 0
  %1876 = vmatpush1.bf16.xpose.msra.mxu0 0
  %1877 = vmatprep.subr.bf16.mxu0 0
  %1878 = vmatpush1.bf16.xpose.msra.mxu0 0
  %1879 = vmatprep.subr.bf16.mxu0 0
  %1880 = vmatpush1.bf16.xpose.msra.mxu0 0
  %1881 = vmatprep.subr.bf16.mxu0 0
  %1882 = vmatpush1.bf16.xpose.msra.mxu0 0
  %1883 = vmatprep.subr.bf16.mxu0 0
  %1884 = vmatpush1.bf16.xpose.msra.mxu0 0
  %1885 = vmatprep.subr.bf16.mxu0 0
  %1886 = vmatpush1.bf16.xpose.msra.mxu0 0
  %1887 = vmatprep.subr.bf16.mxu0 0
  %1888 = vmatpush1.bf16.xpose.msra.mxu0 0
  %1889 = vmatprep.subr.bf16.mxu0 0
  %1890 = vmatpush1.bf16.xpose.msra.mxu0 0
  %1891 = vmatprep.subr.bf16.mxu0 0
  %1892 = vmatpush1.bf16.xpose.msra.mxu0 0
  %1893 = vmatprep.subr.bf16.mxu0 0
  %1894 = vmatpush1.bf16.xpose.msra.mxu0 0
  %1895 = vmatprep.subr.bf16.mxu0 0
  %1896 = vmatpush1.bf16.xpose.msra.mxu0 0
  %1897 = vmatprep.subr.bf16.mxu0 0
  %1898 = vmatpush1.bf16.xpose.msra.mxu0 0
  %1899 = vmatprep.subr.bf16.mxu0 0
  %1900 = vmatpush1.bf16.xpose.msra.mxu0 0
  %1901 = vmatprep.subr.bf16.mxu0 0
  %1902 = vmatpush1.bf16.xpose.msra.mxu0 0
  %1903 = vmatprep.subr.bf16.mxu0 0
  %1904 = vmatpush1.bf16.xpose.msra.mxu0 0
  %1905 = vmatprep.mubr.bf16.mxu0 0
  %1906 = vmatmul.mubr.bf16.gmra.mrb[0].mxu0 %v1868
  %v1907 = vpop.f32.mrb[0].mxu0
  %v1908 = vadd.f32 %v393, %v1907
  %v1909 = vpop.f32.mrb[0].mxu0
  %v1910 = vpop.f32.mrb[0].mxu0
  %v1911 = vadd.f32 %v394, %v1910
  %v1912 = vpop.f32.mrb[0].mxu0
  %1913 = vdwg.mxu0
  %v1914 = vsel %vm127, %v1908, -inf
  %1915 = vmax.xlane.f32.xlu0 %v1914
  %v1916 = vpop.xlane.xlu0 %1915
  %v1917 = vsel %vm127, %v1911, -inf
  %1918 = vmax.xlane.f32.xlu0 %v1917
  %v1919 = vpop.xlane.xlu0 %1918
  %v1920 = vsub.f32 %v1908, %v1916
  %v1921 = vsub.f32 %v1911, %v1919
  %v1922 = vmul.f32 %v1920, 1.442695
  %v1923 = vpow.pop %v1922
  %v1924 = vmul.f32 %v1921, 1.442695
  %v1925 = vpow.pop %v1924
  %v1926 = vsel %vm127, %v1923, 0.0
  %1927 = vadd.xlane.f32.xlu0 %v1926
  %v1928 = vpop.xlane.xlu0 %1927
  %v1929 = vsel %vm127, %v1925, 0.0
  %1930 = vadd.xlane.f32.xlu0 %v1929
  %v1931 = vpop.xlane.xlu0 %1930
  %v1932 = vrcp.pop %v1928
  %v1933 = vrcp.pop %v1931
  %v1934 = vmul.f32 %v1923, %v1932
  %v1935 = vmul.f32 %v1925, %v1933
  %v1936 = vpack.c.bf16 %v1935, %v1934
  %1937 = vrot.lane.b32.xlu0 %v1504, 48
  %v1938 = vpop.permute.xlu0 %1937
  %v1941 = vsel %vm127, %v1936, 0
  %1943 = vmatprep.subr.bf16.mxu0 0
  %1944 = vmatpush1.bf16.msra.mxu0 %v1938
  %1945 = vmatprep.subr.bf16.mxu0 0
  %1946 = vmatpush1.bf16.msra.mxu0 0
  %1947 = vmatprep.subr.bf16.mxu0 0
  %1948 = vmatpush1.bf16.msra.mxu0 0
  %1949 = vmatprep.subr.bf16.mxu0 0
  %1950 = vmatpush1.bf16.msra.mxu0 0
  %1951 = vmatprep.subr.bf16.mxu0 0
  %1952 = vmatpush1.bf16.msra.mxu0 0
  %1953 = vmatprep.subr.bf16.mxu0 0
  %1954 = vmatpush1.bf16.msra.mxu0 0
  %1955 = vmatprep.subr.bf16.mxu0 0
  %1956 = vmatpush1.bf16.msra.mxu0 0
  %1957 = vmatprep.subr.bf16.mxu0 0
  %1958 = vmatpush1.bf16.msra.mxu0 0
  %1959 = vmatprep.subr.bf16.mxu0 0
  %1960 = vmatpush1.bf16.msra.mxu0 0
  %1961 = vmatprep.subr.bf16.mxu0 0
  %1962 = vmatpush1.bf16.msra.mxu0 0
  %1963 = vmatprep.subr.bf16.mxu0 0
  %1964 = vmatpush1.bf16.msra.mxu0 0
  %1965 = vmatprep.subr.bf16.mxu0 0
  %1966 = vmatpush1.bf16.msra.mxu0 0
  %1967 = vmatprep.subr.bf16.mxu0 0
  %1968 = vmatpush1.bf16.msra.mxu0 0
  %1969 = vmatprep.subr.bf16.mxu0 0
  %1970 = vmatpush1.bf16.msra.mxu0 0
  %1971 = vmatprep.subr.bf16.mxu0 0
  %1972 = vmatpush1.bf16.msra.mxu0 0
  %1973 = vmatprep.subr.bf16.mxu0 0
  %1974 = vmatpush1.bf16.msra.mxu0 0
  %1975 = vmatprep.mubr.bf16.mxu0 0
  %1976 = vmatmul.mubr.bf16.gmra.mrb[0].mxu0 %v1941
  %v1977 = vpop.f32.mrb[0].mxu0
  %v1978 = vadd.f32 0.0, %v1977
  %v1979 = vpop.f32.mrb[0].mxu0
  %v1980 = vpop.f32.mrb[0].mxu0
  %v1981 = vadd.f32 0.0, %v1980
  %v1982 = vpop.f32.mrb[0].mxu0
  %1983 = vdwg.mxu0
  %v1984 = vpack.c.bf16 %v1981, %v1978
  %v1986 = vsel %vm475, %v1984, 0
  %v1989 = vsel %vm597, %v1508, 0
  %1991 = vmatprep.subr.bf16.mxu0 0
  %1992 = vmatpush1.bf16.msra.mxu0 %v1989
  %1993 = vmatprep.subr.bf16.mxu0 0
  %1994 = vmatpush1.bf16.msra.mxu0 0
  %1995 = vmatprep.subr.bf16.mxu0 0
  %1996 = vmatpush1.bf16.msra.mxu0 0
  %1997 = vmatprep.subr.bf16.mxu0 0
  %1998 = vmatpush1.bf16.msra.mxu0 0
  %1999 = vmatprep.subr.bf16.mxu0 0
  %2000 = vmatpush1.bf16.msra.mxu0 0
  %2001 = vmatprep.subr.bf16.mxu0 0
  %2002 = vmatpush1.bf16.msra.mxu0 0
  %2003 = vmatprep.subr.bf16.mxu0 0
  %2004 = vmatpush1.bf16.msra.mxu0 0
  %2005 = vmatprep.subr.bf16.mxu0 0
  %2006 = vmatpush1.bf16.msra.mxu0 0
  %2007 = vmatprep.subr.bf16.mxu0 0
  %2008 = vmatpush1.bf16.msra.mxu0 0
  %2009 = vmatprep.subr.bf16.mxu0 0
  %2010 = vmatpush1.bf16.msra.mxu0 0
  %2011 = vmatprep.subr.bf16.mxu0 0
  %2012 = vmatpush1.bf16.msra.mxu0 0
  %2013 = vmatprep.subr.bf16.mxu0 0
  %2014 = vmatpush1.bf16.msra.mxu0 0
  %2015 = vmatprep.subr.bf16.mxu0 0
  %2016 = vmatpush1.bf16.msra.mxu0 0
  %2017 = vmatprep.subr.bf16.mxu0 0
  %2018 = vmatpush1.bf16.msra.mxu0 0
  %2019 = vmatprep.subr.bf16.mxu0 0
  %2020 = vmatpush1.bf16.msra.mxu0 0
  %2021 = vmatprep.subr.bf16.mxu0 0
  %2022 = vmatpush1.bf16.msra.mxu0 0
  %2023 = vmatprep.mubr.bf16.mxu0 0
  %2024 = vmatmul.mubr.bf16.gmra.mrb[0].mxu0 %v1986
  %v2025 = vpop.f32.mrb[0].mxu0
  %v2026 = vadd.f32 0.0, %v2025
  %v2027 = vpop.f32.mrb[0].mxu0
  %v2028 = vpop.f32.mrb[0].mxu0
  %v2029 = vadd.f32 0.0, %v2028
  %v2030 = vpop.f32.mrb[0].mxu0
  %2031 = vdwg.mxu0
  %v2032 = vadd.f32 %v1861, %v2026
  %v2033 = vadd.f32 %v1862, %v2029
  %2034 = vrot.lane.b32.xlu0 %v1514, 104
  %v2035 = vpop.permute.xlu0 %2034
  %2036 = vrot.lane.b32.xlu0 %v1504, 72
  %v2037 = vpop.permute.xlu0 %2036
  %v2039 = vsel %vm475, %v2035, 0
  %v2042 = vsel %vm475, %v2037, 0
  %2044 = vmatprep.subr.bf16.mxu0 0
  %2045 = vmatpush1.bf16.xpose.msra.mxu0 %v2042
  %2046 = vmatprep.subr.bf16.mxu0 0
  %2047 = vmatpush1.bf16.xpose.msra.mxu0 0
  %2048 = vmatprep.subr.bf16.mxu0 0
  %2049 = vmatpush1.bf16.xpose.msra.mxu0 0
  %2050 = vmatprep.subr.bf16.mxu0 0
  %2051 = vmatpush1.bf16.xpose.msra.mxu0 0
  %2052 = vmatprep.subr.bf16.mxu0 0
  %2053 = vmatpush1.bf16.xpose.msra.mxu0 0
  %2054 = vmatprep.subr.bf16.mxu0 0
  %2055 = vmatpush1.bf16.xpose.msra.mxu0 0
  %2056 = vmatprep.subr.bf16.mxu0 0
  %2057 = vmatpush1.bf16.xpose.msra.mxu0 0
  %2058 = vmatprep.subr.bf16.mxu0 0
  %2059 = vmatpush1.bf16.xpose.msra.mxu0 0
  %2060 = vmatprep.subr.bf16.mxu0 0
  %2061 = vmatpush1.bf16.xpose.msra.mxu0 0
  %2062 = vmatprep.subr.bf16.mxu0 0
  %2063 = vmatpush1.bf16.xpose.msra.mxu0 0
  %2064 = vmatprep.subr.bf16.mxu0 0
  %2065 = vmatpush1.bf16.xpose.msra.mxu0 0
  %2066 = vmatprep.subr.bf16.mxu0 0
  %2067 = vmatpush1.bf16.xpose.msra.mxu0 0
  %2068 = vmatprep.subr.bf16.mxu0 0
  %2069 = vmatpush1.bf16.xpose.msra.mxu0 0
  %2070 = vmatprep.subr.bf16.mxu0 0
  %2071 = vmatpush1.bf16.xpose.msra.mxu0 0
  %2072 = vmatprep.subr.bf16.mxu0 0
  %2073 = vmatpush1.bf16.xpose.msra.mxu0 0
  %2074 = vmatprep.subr.bf16.mxu0 0
  %2075 = vmatpush1.bf16.xpose.msra.mxu0 0
  %2076 = vmatprep.mubr.bf16.mxu0 0
  %2077 = vmatmul.mubr.bf16.gmra.mrb[0].mxu0 %v2039
  %v2078 = vpop.f32.mrb[0].mxu0
  %v2079 = vadd.f32 %v393, %v2078
  %v2080 = vpop.f32.mrb[0].mxu0
  %v2081 = vpop.f32.mrb[0].mxu0
  %v2082 = vadd.f32 %v394, %v2081
  %v2083 = vpop.f32.mrb[0].mxu0
  %2084 = vdwg.mxu0
  %v2085 = vsel %vm127, %v2079, -inf
  %2086 = vmax.xlane.f32.xlu0 %v2085
  %v2087 = vpop.xlane.xlu0 %2086
  %v2088 = vsel %vm127, %v2082, -inf
  %2089 = vmax.xlane.f32.xlu0 %v2088
  %v2090 = vpop.xlane.xlu0 %2089
  %v2091 = vsub.f32 %v2079, %v2087
  %v2092 = vsub.f32 %v2082, %v2090
  %v2093 = vmul.f32 %v2091, 1.442695
  %v2094 = vpow.pop %v2093
  %v2095 = vmul.f32 %v2092, 1.442695
  %v2096 = vpow.pop %v2095
  %v2097 = vsel %vm127, %v2094, 0.0
  %2098 = vadd.xlane.f32.xlu0 %v2097
  %v2099 = vpop.xlane.xlu0 %2098
  %v2100 = vsel %vm127, %v2096, 0.0
  %2101 = vadd.xlane.f32.xlu0 %v2100
  %v2102 = vpop.xlane.xlu0 %2101
  %v2103 = vrcp.pop %v2099
  %v2104 = vrcp.pop %v2102
  %v2105 = vmul.f32 %v2094, %v2103
  %v2106 = vmul.f32 %v2096, %v2104
  %v2107 = vpack.c.bf16 %v2106, %v2105
  %2108 = vrot.lane.b32.xlu0 %v1504, 40
  %v2109 = vpop.permute.xlu0 %2108
  %v2112 = vsel %vm127, %v2107, 0
  %2114 = vmatprep.subr.bf16.mxu0 0
  %2115 = vmatpush1.bf16.msra.mxu0 %v2109
  %2116 = vmatprep.subr.bf16.mxu0 0
  %2117 = vmatpush1.bf16.msra.mxu0 0
  %2118 = vmatprep.subr.bf16.mxu0 0
  %2119 = vmatpush1.bf16.msra.mxu0 0
  %2120 = vmatprep.subr.bf16.mxu0 0
  %2121 = vmatpush1.bf16.msra.mxu0 0
  %2122 = vmatprep.subr.bf16.mxu0 0
  %2123 = vmatpush1.bf16.msra.mxu0 0
  %2124 = vmatprep.subr.bf16.mxu0 0
  %2125 = vmatpush1.bf16.msra.mxu0 0
  %2126 = vmatprep.subr.bf16.mxu0 0
  %2127 = vmatpush1.bf16.msra.mxu0 0
  %2128 = vmatprep.subr.bf16.mxu0 0
  %2129 = vmatpush1.bf16.msra.mxu0 0
  %2130 = vmatprep.subr.bf16.mxu0 0
  %2131 = vmatpush1.bf16.msra.mxu0 0
  %2132 = vmatprep.subr.bf16.mxu0 0
  %2133 = vmatpush1.bf16.msra.mxu0 0
  %2134 = vmatprep.subr.bf16.mxu0 0
  %2135 = vmatpush1.bf16.msra.mxu0 0
  %2136 = vmatprep.subr.bf16.mxu0 0
  %2137 = vmatpush1.bf16.msra.mxu0 0
  %2138 = vmatprep.subr.bf16.mxu0 0
  %2139 = vmatpush1.bf16.msra.mxu0 0
  %2140 = vmatprep.subr.bf16.mxu0 0
  %2141 = vmatpush1.bf16.msra.mxu0 0
  %2142 = vmatprep.subr.bf16.mxu0 0
  %2143 = vmatpush1.bf16.msra.mxu0 0
  %2144 = vmatprep.subr.bf16.mxu0 0
  %2145 = vmatpush1.bf16.msra.mxu0 0
  %2146 = vmatprep.mubr.bf16.mxu0 0
  %2147 = vmatmul.mubr.bf16.gmra.mrb[0].mxu0 %v2112
  %v2148 = vpop.f32.mrb[0].mxu0
  %v2149 = vadd.f32 0.0, %v2148
  %v2150 = vpop.f32.mrb[0].mxu0
  %v2151 = vpop.f32.mrb[0].mxu0
  %v2152 = vadd.f32 0.0, %v2151
  %v2153 = vpop.f32.mrb[0].mxu0
  %2154 = vdwg.mxu0
  %v2155 = vpack.c.bf16 %v2152, %v2149
  %v2157 = vsel %vm475, %v2155, 0
  %v2160 = vsel %vm597, %v1509, 0
  %2162 = vmatprep.subr.bf16.mxu0 0
  %2163 = vmatpush1.bf16.msra.mxu0 %v2160
  %2164 = vmatprep.subr.bf16.mxu0 0
  %2165 = vmatpush1.bf16.msra.mxu0 0
  %2166 = vmatprep.subr.bf16.mxu0 0
  %2167 = vmatpush1.bf16.msra.mxu0 0
  %2168 = vmatprep.subr.bf16.mxu0 0
  %2169 = vmatpush1.bf16.msra.mxu0 0
  %2170 = vmatprep.subr.bf16.mxu0 0
  %2171 = vmatpush1.bf16.msra.mxu0 0
  %2172 = vmatprep.subr.bf16.mxu0 0
  %2173 = vmatpush1.bf16.msra.mxu0 0
  %2174 = vmatprep.subr.bf16.mxu0 0
  %2175 = vmatpush1.bf16.msra.mxu0 0
  %2176 = vmatprep.subr.bf16.mxu0 0
  %2177 = vmatpush1.bf16.msra.mxu0 0
  %2178 = vmatprep.subr.bf16.mxu0 0
  %2179 = vmatpush1.bf16.msra.mxu0 0
  %2180 = vmatprep.subr.bf16.mxu0 0
  %2181 = vmatpush1.bf16.msra.mxu0 0
  %2182 = vmatprep.subr.bf16.mxu0 0
  %2183 = vmatpush1.bf16.msra.mxu0 0
  %2184 = vmatprep.subr.bf16.mxu0 0
  %2185 = vmatpush1.bf16.msra.mxu0 0
  %2186 = vmatprep.subr.bf16.mxu0 0
  %2187 = vmatpush1.bf16.msra.mxu0 0
  %2188 = vmatprep.subr.bf16.mxu0 0
  %2189 = vmatpush1.bf16.msra.mxu0 0
  %2190 = vmatprep.subr.bf16.mxu0 0
  %2191 = vmatpush1.bf16.msra.mxu0 0
  %2192 = vmatprep.subr.bf16.mxu0 0
  %2193 = vmatpush1.bf16.msra.mxu0 0
  %2194 = vmatprep.mubr.bf16.mxu0 0
  %2195 = vmatmul.mubr.bf16.gmra.mrb[0].mxu0 %v2157
  %v2196 = vpop.f32.mrb[0].mxu0
  %v2197 = vadd.f32 0.0, %v2196
  %v2198 = vpop.f32.mrb[0].mxu0
  %v2199 = vpop.f32.mrb[0].mxu0
  %v2200 = vadd.f32 0.0, %v2199
  %v2201 = vpop.f32.mrb[0].mxu0
  %2202 = vdwg.mxu0
  %v2203 = vadd.f32 %v2032, %v2197
  %v2204 = vadd.f32 %v2033, %v2200
  %v2205 = vadd.f32 %v2203, %v1432
  %v2206 = vadd.f32 %v2204, %v1433
  %s2207 = scalar_lea.vmem %s13, 1
  %v2208 = vld [vmem:[%s2207] sm:$0x1]
  %s2209 = scalar_lea.vmem %s14, 1
  %v2210 = vld [vmem:[%s2209] sm:$0x1]
  %v2211 = vsel %vm308, %v2205, 0.0
  %2212 = vadd.xlane.f32.xlu0 %v2211
  %v2213 = vpop.xlane.xlu0 %2212
  %v2214 = vsel %vm308, %v2206, 0.0
  %2215 = vadd.xlane.f32.xlu0 %v2214
  %v2216 = vpop.xlane.xlu0 %2215
  %v2217 = vmul.f32 %v2213, %v315
  %v2218 = vmul.f32 %v2216, %v315
  %v2219 = vmul.f32 %v2205, %v2205
  %v2220 = vmul.f32 %v2206, %v2206
  %v2221 = vsel %vm308, %v2219, 0.0
  %2222 = vadd.xlane.f32.xlu0 %v2221
  %v2223 = vpop.xlane.xlu0 %2222
  %v2224 = vsel %vm308, %v2220, 0.0
  %2225 = vadd.xlane.f32.xlu0 %v2224
  %v2226 = vpop.xlane.xlu0 %2225
  %v2227 = vmul.f32 %v2223, %v315
  %v2228 = vmul.f32 %v2226, %v315
  %v2229 = vmul.f32 %v2217, %v2217
  %v2230 = vmul.f32 %v2218, %v2218
  %v2231 = vsub.f32 %v2227, %v2229
  %v2232 = vsub.f32 %v2228, %v2230
  %v2233 = vsub.f32 %v2205, %v2217
  %v2234 = vsub.f32 %v2206, %v2218
  %v2235 = vadd.f32 %v2231, 1e-12
  %v2236 = vadd.f32 %v2232, 1e-12
  %v2237 = vrsqrt.pop %v2235
  %v2238 = vrsqrt.pop %v2236
  %v2239 = vmul.f32 %v2233, %v2237
  %v2240 = vmul.f32 %v2234, %v2238
  %v2242 = vlaneseq
  %v2243 = vshrl.u32 %v2242, 7
  %v2244 = vsub.s32 0, %v2243
  %v2245 = vrot.slane %v2208, %v2244
  %v2247 = vmul.f32 %v2239, %v2245
  %v2248 = vmul.f32 %v2240, %v2245
  %v2250 = vlaneseq
  %v2251 = vshrl.u32 %v2250, 7
  %v2252 = vsub.s32 0, %v2251
  %v2253 = vrot.slane %v2210, %v2252
  %v2255 = vadd.f32 %v2247, %v2253
  %v2256 = vadd.f32 %v2248, %v2253
  %s2257 = scalar_lea.vmem %s15, 16
  %v2258 = vld [vmem:[%s2257] sm:$0xf]
  %v2259 = vld [vmem:[%s2257 + $0x4] sm:$0xf]
  %v2260 = vld [vmem:[%s2257 + $0x8] sm:$0xf]
  %v2261 = vld [vmem:[%s2257 + $0xc] sm:$0xf]
  %s2262 = scalar_lea.vmem %s16, 1
  %v2263 = vld [vmem:[%s2262] sm:$0x1]
  %v2264 = vpack.c.bf16 %v2256, %v2255
  %v2266 = vlaneseq
  %v2267 = vshrl.u32 %v2266, 7
  %v2268 = vsub.s32 0, %v2267
  %v2269 = vrot.slane %v2263, %v2268
  %v2275 = vunpack.c.l.b16 %v2258
  %v2276 = vunpack.c.l.b16 %v2259
  %v2277 = vunpack.c.l.b16 %v2260
  %v2278 = vunpack.c.l.b16 %v2261
  %v2279 = vpack.c.b16 %v2276, %v2275
  %v2280 = vpack.c.b16 %v2278, %v2277
  %v2284 = vsel %vm308, %v2264, 0
  %2286 = vmatprep.subr.bf16.mxu0 0
  %2287 = vmatpush1.bf16.msra.mxu0 %v2279
  %2288 = vmatprep.subr.bf16.mxu0 0
  %2289 = vmatpush1.bf16.msra.mxu0 %v2280
  %2290 = vmatprep.subr.bf16.mxu0 0
  %2291 = vmatpush1.bf16.msra.mxu0 0
  %2292 = vmatprep.subr.bf16.mxu0 0
  %2293 = vmatpush1.bf16.msra.mxu0 0
  %2294 = vmatprep.subr.bf16.mxu0 0
  %2295 = vmatpush1.bf16.msra.mxu0 0
  %2296 = vmatprep.subr.bf16.mxu0 0
  %2297 = vmatpush1.bf16.msra.mxu0 0
  %2298 = vmatprep.subr.bf16.mxu0 0
  %2299 = vmatpush1.bf16.msra.mxu0 0
  %2300 = vmatprep.subr.bf16.mxu0 0
  %2301 = vmatpush1.bf16.msra.mxu0 0
  %2302 = vmatprep.subr.bf16.mxu0 0
  %2303 = vmatpush1.bf16.msra.mxu0 0
  %2304 = vmatprep.subr.bf16.mxu0 0
  %2305 = vmatpush1.bf16.msra.mxu0 0
  %2306 = vmatprep.subr.bf16.mxu0 0
  %2307 = vmatpush1.bf16.msra.mxu0 0
  %2308 = vmatprep.subr.bf16.mxu0 0
  %2309 = vmatpush1.bf16.msra.mxu0 0
  %2310 = vmatprep.subr.bf16.mxu0 0
  %2311 = vmatpush1.bf16.msra.mxu0 0
  %2312 = vmatprep.subr.bf16.mxu0 0
  %2313 = vmatpush1.bf16.msra.mxu0 0
  %2314 = vmatprep.subr.bf16.mxu0 0
  %2315 = vmatpush1.bf16.msra.mxu0 0
  %2316 = vmatprep.subr.bf16.mxu0 0
  %2317 = vmatpush1.bf16.msra.mxu0 0
  %2318 = vmatprep.mubr.bf16.mxu0 0
  %2319 = vmatmul.mubr.bf16.gmra.mrb[0].mxu0 %v2284
  %v2320 = vpop.f32.mrb[0].mxu0
  %v2321 = vadd.f32 %v2269, %v2320
  %v2322 = vpop.f32.mrb[0].mxu0
  %v2323 = vpop.f32.mrb[0].mxu0
  %v2324 = vadd.f32 %v2269, %v2323
  %v2325 = vpop.f32.mrb[0].mxu0
  %2326 = vdwg.mxu0
  %v2327 = vmul.f32 %v2321, %v2321
  %v2328 = vmul.f32 %v2324, %v2324
  %v2329 = vmul.f32 %v2321, %v2327
  %v2330 = vmul.f32 %v2324, %v2328
  %v2331 = vmul.f32 %v2329, 0.044715
  %v2332 = vmul.f32 %v2330, 0.044715
  %v2333 = vadd.f32 %v2321, %v2331
  %v2334 = vadd.f32 %v2324, %v2332
  %v2335 = vmul.f32 %v2333, 0.7978846
  %v2336 = vmul.f32 %v2334, 0.7978846
  %v2337 = vtanh.pop %v2335
  %v2338 = vtanh.pop %v2336
  %v2339 = vadd.f32 %v2337, 1.0
  %v2340 = vadd.f32 %v2338, 1.0
  %v2341 = vmul.f32 %v2339, 0.5
  %v2342 = vmul.f32 %v2340, 0.5
  %v2343 = vmul.f32 %v2321, %v2341
  %v2344 = vmul.f32 %v2324, %v2342
  %s2345 = scalar_lea.vmem %s17, 32
  %v2346 = vld [vmem:[%s2345] sm:$0xf]
  %v2347 = vld [vmem:[%s2345 + $0x4] sm:$0xf]
  %v2348 = vld [vmem:[%s2345 + $0x8] sm:$0xf]
  %v2349 = vld [vmem:[%s2345 + $0xc] sm:$0xf]
  %v2350 = vld [vmem:[%s2345 + $0x10] sm:$0xf]
  %v2351 = vld [vmem:[%s2345 + $0x14] sm:$0xf]
  %v2352 = vld [vmem:[%s2345 + $0x18] sm:$0xf]
  %v2353 = vld [vmem:[%s2345 + $0x1c] sm:$0xf]
  %s2354 = scalar_lea.vmem %s18, 1
  %v2355 = vld [vmem:[%s2354] sm:$0x1]
  %v2356 = vpack.c.bf16 %v2344, %v2343
  %v2358 = vlaneseq
  %v2359 = vshrl.u32 %v2358, 7
  %v2360 = vsub.s32 0, %v2359
  %v2361 = vrot.slane %v2355, %v2360
  %v2371 = vunpack.c.l.b16 %v2346
  %v2372 = vunpack.c.l.b16 %v2347
  %v2373 = vunpack.c.l.b16 %v2348
  %v2374 = vunpack.c.l.b16 %v2349
  %v2375 = vunpack.c.l.b16 %v2350
  %v2376 = vunpack.c.l.b16 %v2351
  %v2377 = vunpack.c.l.b16 %v2352
  %v2378 = vunpack.c.l.b16 %v2353
  %v2379 = vpack.c.b16 %v2372, %v2371
  %v2380 = vpack.c.b16 %v2374, %v2373
  %v2381 = vpack.c.b16 %v2376, %v2375
  %v2382 = vpack.c.b16 %v2378, %v2377
  %v2388 = vsel %vm196, %v2356, 0
  %2390 = vmatprep.subr.bf16.mxu0 0
  %2391 = vmatpush1.bf16.msra.mxu0 %v2379
  %2392 = vmatprep.subr.bf16.mxu0 0
  %2393 = vmatpush1.bf16.msra.mxu0 %v2380
  %2394 = vmatprep.subr.bf16.mxu0 0
  %2395 = vmatpush1.bf16.msra.mxu0 %v2381
  %2396 = vmatprep.subr.bf16.mxu0 0
  %2397 = vmatpush1.bf16.msra.mxu0 %v2382
  %2398 = vmatprep.subr.bf16.mxu0 0
  %2399 = vmatpush1.bf16.msra.mxu0 0
  %2400 = vmatprep.subr.bf16.mxu0 0
  %2401 = vmatpush1.bf16.msra.mxu0 0
  %2402 = vmatprep.subr.bf16.mxu0 0
  %2403 = vmatpush1.bf16.msra.mxu0 0
  %2404 = vmatprep.subr.bf16.mxu0 0
  %2405 = vmatpush1.bf16.msra.mxu0 0
  %2406 = vmatprep.subr.bf16.mxu0 0
  %2407 = vmatpush1.bf16.msra.mxu0 0
  %2408 = vmatprep.subr.bf16.mxu0 0
  %2409 = vmatpush1.bf16.msra.mxu0 0
  %2410 = vmatprep.subr.bf16.mxu0 0
  %2411 = vmatpush1.bf16.msra.mxu0 0
  %2412 = vmatprep.subr.bf16.mxu0 0
  %2413 = vmatpush1.bf16.msra.mxu0 0
  %2414 = vmatprep.subr.bf16.mxu0 0
  %2415 = vmatpush1.bf16.msra.mxu0 0
  %2416 = vmatprep.subr.bf16.mxu0 0
  %2417 = vmatpush1.bf16.msra.mxu0 0
  %2418 = vmatprep.subr.bf16.mxu0 0
  %2419 = vmatpush1.bf16.msra.mxu0 0
  %2420 = vmatprep.subr.bf16.mxu0 0
  %2421 = vmatpush1.bf16.msra.mxu0 0
  %2422 = vmatprep.mubr.bf16.mxu0 0
  %2423 = vmatmul.mubr.bf16.gmra.mrb[0].mxu0 %v2388
  %v2424 = vpop.f32.mrb[0].mxu0
  %v2425 = vadd.f32 %v2361, %v2424
  %v2426 = vpop.f32.mrb[0].mxu0
  %v2427 = vpop.f32.mrb[0].mxu0
  %v2428 = vadd.f32 %v2361, %v2427
  %v2429 = vpop.f32.mrb[0].mxu0
  %2430 = vdwg.mxu0
  %v2431 = vadd.f32 %v2425, %v2255
  %v2432 = vadd.f32 %v2428, %v2256
  %s2433 = scalar_lea.vmem %s19, 1
  %v2434 = vld [vmem:[%s2433] sm:$0x1]
  %s2435 = scalar_lea.vmem %s20, 1
  %v2436 = vld [vmem:[%s2435] sm:$0x1]
  %v2437 = vsel %vm308, %v2431, 0.0
  %2438 = vadd.xlane.f32.xlu0 %v2437
  %v2439 = vpop.xlane.xlu0 %2438
  %v2440 = vsel %vm308, %v2432, 0.0
  %2441 = vadd.xlane.f32.xlu0 %v2440
  %v2442 = vpop.xlane.xlu0 %2441
  %v2443 = vmul.f32 %v2439, %v315
  %v2444 = vmul.f32 %v2442, %v315
  %v2445 = vmul.f32 %v2431, %v2431
  %v2446 = vmul.f32 %v2432, %v2432
  %v2447 = vsel %vm308, %v2445, 0.0
  %2448 = vadd.xlane.f32.xlu0 %v2447
  %v2449 = vpop.xlane.xlu0 %2448
  %v2450 = vsel %vm308, %v2446, 0.0
  %2451 = vadd.xlane.f32.xlu0 %v2450
  %v2452 = vpop.xlane.xlu0 %2451
  %v2453 = vmul.f32 %v2449, %v315
  %v2454 = vmul.f32 %v2452, %v315
  %v2455 = vmul.f32 %v2443, %v2443
  %v2456 = vmul.f32 %v2444, %v2444
  %v2457 = vsub.f32 %v2453, %v2455
  %v2458 = vsub.f32 %v2454, %v2456
  %v2459 = vsub.f32 %v2431, %v2443
  %v2460 = vsub.f32 %v2432, %v2444
  %v2461 = vadd.f32 %v2457, 1e-12
  %v2462 = vadd.f32 %v2458, 1e-12
  %v2463 = vrsqrt.pop %v2461
  %v2464 = vrsqrt.pop %v2462
  %v2465 = vmul.f32 %v2459, %v2463
  %v2466 = vmul.f32 %v2460, %v2464
  %v2468 = vlaneseq
  %v2469 = vshrl.u32 %v2468, 7
  %v2470 = vsub.s32 0, %v2469
  %v2471 = vrot.slane %v2434, %v2470
  %v2473 = vmul.f32 %v2465, %v2471
  %v2474 = vmul.f32 %v2466, %v2471
  %v2476 = vlaneseq
  %v2477 = vshrl.u32 %v2476, 7
  %v2478 = vsub.s32 0, %v2477
  %v2479 = vrot.slane %v2436, %v2478
  %v2481 = vadd.f32 %v2473, %v2479
  %v2482 = vadd.f32 %v2474, %v2479
  %v2483 = vmul.u32 %v357, 8
  %vm2484 = vcmp.eq.s32.totalorder %v86, %v2483
  %v2485 = vsel %vm2484, 1.0, 0.0
  %v2487 = vsel %vm127, %v2485, 0
  %2489 = vmatprep.subr.mxu0 0.0
  %2490 = vmatpush1.msra.mxu0 %v2481
  %2491 = vmatprep.subr.mxu0 0.0
  %2492 = vmatpush1.msra.mxu0 %v2482
  %2493 = vmatprep.subr.mxu0 0.0
  %2494 = vmatpush1.msra.mxu0 0.0
  %2495 = vmatprep.subr.mxu0 0.0
  %2496 = vmatpush1.msra.mxu0 0.0
  %2497 = vmatprep.subr.mxu0 0.0
  %2498 = vmatpush1.msra.mxu0 0.0
  %2499 = vmatprep.subr.mxu0 0.0
  %2500 = vmatpush1.msra.mxu0 0.0
  %2501 = vmatprep.subr.mxu0 0.0
  %2502 = vmatpush1.msra.mxu0 0.0
  %2503 = vmatprep.subr.mxu0 0.0
  %2504 = vmatpush1.msra.mxu0 0.0
  %2505 = vmatprep.subr.mxu0 0.0
  %2506 = vmatpush1.msra.mxu0 0.0
  %2507 = vmatprep.subr.mxu0 0.0
  %2508 = vmatpush1.msra.mxu0 0.0
  %2509 = vmatprep.subr.mxu0 0.0
  %2510 = vmatpush1.msra.mxu0 0.0
  %2511 = vmatprep.subr.mxu0 0.0
  %2512 = vmatpush1.msra.mxu0 0.0
  %2513 = vmatprep.subr.mxu0 0.0
  %2514 = vmatpush1.msra.mxu0 0.0
  %2515 = vmatprep.subr.mxu0 0.0
  %2516 = vmatpush1.msra.mxu0 0.0
  %2517 = vmatprep.subr.mxu0 0.0
  %2518 = vmatpush1.msra.mxu0 0.0
  %2519 = vmatprep.subr.mxu0 0.0
  %2520 = vmatpush1.msra.mxu0 0.0
  %2521 = vmatprep.subr.mxu0 0.0
  %2522 = vmatpush1.msra.mxu0 0.0
  %2523 = vmatprep.subr.mxu0 0.0
  %2524 = vmatpush1.msra.mxu0 0.0
  %2525 = vmatprep.subr.mxu0 0.0
  %2526 = vmatpush1.msra.mxu0 0.0
  %2527 = vmatprep.subr.mxu0 0.0
  %2528 = vmatpush1.msra.mxu0 0.0
  %2529 = vmatprep.subr.mxu0 0.0
  %2530 = vmatpush1.msra.mxu0 0.0
  %2531 = vmatprep.subr.mxu0 0.0
  %2532 = vmatpush1.msra.mxu0 0.0
  %2533 = vmatprep.subr.mxu0 0.0
  %2534 = vmatpush1.msra.mxu0 0.0
  %2535 = vmatprep.subr.mxu0 0.0
  %2536 = vmatpush1.msra.mxu0 0.0
  %2537 = vmatprep.subr.mxu0 0.0
  %2538 = vmatpush1.msra.mxu0 0.0
  %2539 = vmatprep.subr.mxu0 0.0
  %2540 = vmatpush1.msra.mxu0 0.0
  %2541 = vmatprep.subr.mxu0 0.0
  %2542 = vmatpush1.msra.mxu0 0.0
  %2543 = vmatprep.subr.mxu0 0.0
  %2544 = vmatpush1.msra.mxu0 0.0
  %2545 = vmatprep.subr.mxu0 0.0
  %2546 = vmatpush1.msra.mxu0 0.0
  %2547 = vmatprep.subr.mxu0 0.0
  %2548 = vmatpush1.msra.mxu0 0.0
  %2549 = vmatprep.subr.mxu0 0.0
  %2550 = vmatpush1.msra.mxu0 0.0
  %2551 = vmatprep.subr.mxu0 0.0
  %2552 = vmatpush1.msra.mxu0 0.0
  %2553 = vmatprep.mubr.f32.mxu0 0.0
  %2554 = vmatmul.mubr.f32.gmra.mrb[0].mxu0 %v2487
  %v2555 = vpop.f32.mrb[0].mxu0
  %v2556 = vadd.f32 0.0, %v2555
  %v2557 = vpop.f32.mrb[0].mxu0
  %2558 = vdwg.mxu0
  %v2559 = vld [vmem:[%s21] sm:$0xf]
  %v2560 = vld [vmem:[%s21 + $0x4] sm:$0xf]
  %v2561 = vld [vmem:[%s21 + $0x8] sm:$0xf]
  %v2562 = vld [vmem:[%s21 + $0xc] sm:$0xf]
  %v2563 = vld [vmem:[%s22] sm:$0x1]
  %v2564 = vpack.c.bf16 %v2556, %v2556
  %v2566 = vlaneseq
  %v2567 = vshrl.u32 %v2566, 7
  %v2568 = vsub.s32 0, %v2567
  %v2569 = vrot.slane %v2563, %v2568
  %v2575 = vunpack.c.l.b16 %v2559
  %v2576 = vunpack.c.l.b16 %v2560
  %v2577 = vunpack.c.l.b16 %v2561
  %v2578 = vunpack.c.l.b16 %v2562
  %v2579 = vpack.c.b16 %v2576, %v2575
  %v2580 = vpack.c.b16 %v2578, %v2577
  %v2584 = vsel %vm308, %v2564, 0
  %2586 = vmatprep.subr.bf16.mxu0 0
  %2587 = vmatpush1.bf16.msra.mxu0 %v2579
  %2588 = vmatprep.subr.bf16.mxu0 0
  %2589 = vmatpush1.bf16.msra.mxu0 %v2580
  %2590 = vmatprep.subr.bf16.mxu0 0
  %2591 = vmatpush1.bf16.msra.mxu0 0
  %2592 = vmatprep.subr.bf16.mxu0 0
  %2593 = vmatpush1.bf16.msra.mxu0 0
  %2594 = vmatprep.subr.bf16.mxu0 0
  %2595 = vmatpush1.bf16.msra.mxu0 0
  %2596 = vmatprep.subr.bf16.mxu0 0
  %2597 = vmatpush1.bf16.msra.mxu0 0
  %2598 = vmatprep.subr.bf16.mxu0 0
  %2599 = vmatpush1.bf16.msra.mxu0 0
  %2600 = vmatprep.subr.bf16.mxu0 0
  %2601 = vmatpush1.bf16.msra.mxu0 0
  %2602 = vmatprep.subr.bf16.mxu0 0
  %2603 = vmatpush1.bf16.msra.mxu0 0
  %2604 = vmatprep.subr.bf16.mxu0 0
  %2605 = vmatpush1.bf16.msra.mxu0 0
  %2606 = vmatprep.subr.bf16.mxu0 0
  %2607 = vmatpush1.bf16.msra.mxu0 0
  %2608 = vmatprep.subr.bf16.mxu0 0
  %2609 = vmatpush1.bf16.msra.mxu0 0
  %2610 = vmatprep.subr.bf16.mxu0 0
  %2611 = vmatpush1.bf16.msra.mxu0 0
  %2612 = vmatprep.subr.bf16.mxu0 0
  %2613 = vmatpush1.bf16.msra.mxu0 0
  %2614 = vmatprep.subr.bf16.mxu0 0
  %2615 = vmatpush1.bf16.msra.mxu0 0
  %2616 = vmatprep.subr.bf16.mxu0 0
  %2617 = vmatpush1.bf16.msra.mxu0 0
  %2618 = vmatprep.mubr.bf16.mxu0 0
  %2619 = vmatmul.mubr.bf16.gmra.mrb[0].mxu0 %v2584
  %v2620 = vpop.f32.mrb[0].mxu0
  %v2621 = vadd.f32 %v2569, %v2620
  %v2622 = vpop.f32.mrb[0].mxu0
  %v2623 = vpop.f32.mrb[0].mxu0
  %v2624 = vpop.f32.mrb[0].mxu0
  %2625 = vdwg.mxu0
  %v2626 = vmax.f32 %v2621, 0.0
  %v2627 = vld [vmem:[%s23] sm:$0xf]
  %v2628 = vld [vmem:[%s23 + $0x4] sm:$0xf]
  %v2629 = vld [vmem:[#allocation2] sm:$0x1]
  %v2630 = vpack.c.bf16 %v2626, %v2626
  %v2632 = vlaneseq
  %v2633 = vshrl.u32 %v2632, 7
  %v2634 = vsub.s32 0, %v2633
  %v2635 = vrot.slane %v2629, %v2634
  %v2639 = vunpack.c.l.b16 %v2627
  %v2640 = vunpack.c.l.b16 %v2628
  %v2641 = vpack.c.b16 %v2640, %v2639
  %v2644 = vsel %vm127, %v2630, 0
  %2646 = vmatprep.subr.bf16.mxu0 0
  %2647 = vmatpush1.bf16.msra.mxu0 %v2641
  %2648 = vmatprep.subr.bf16.mxu0 0
  %2649 = vmatpush1.bf16.msra.mxu0 0
  %2650 = vmatprep.subr.bf16.mxu0 0
  %2651 = vmatpush1.bf16.msra.mxu0 0
  %2652 = vmatprep.subr.bf16.mxu0 0
  %2653 = vmatpush1.bf16.msra.mxu0 0
  %2654 = vmatprep.subr.bf16.mxu0 0
  %2655 = vmatpush1.bf16.msra.mxu0 0
  %2656 = vmatprep.subr.bf16.mxu0 0
  %2657 = vmatpush1.bf16.msra.mxu0 0
  %2658 = vmatprep.subr.bf16.mxu0 0
  %2659 = vmatpush1.bf16.msra.mxu0 0
  %2660 = vmatprep.subr.bf16.mxu0 0
  %2661 = vmatpush1.bf16.msra.mxu0 0
  %2662 = vmatprep.subr.bf16.mxu0 0
  %2663 = vmatpush1.bf16.msra.mxu0 0
  %2664 = vmatprep.subr.bf16.mxu0 0
  %2665 = vmatpush1.bf16.msra.mxu0 0
  %2666 = vmatprep.subr.bf16.mxu0 0
  %2667 = vmatpush1.bf16.msra.mxu0 0
  %2668 = vmatprep.subr.bf16.mxu0 0
  %2669 = vmatpush1.bf16.msra.mxu0 0
  %2670 = vmatprep.subr.bf16.mxu0 0
  %2671 = vmatpush1.bf16.msra.mxu0 0
  %2672 = vmatprep.subr.bf16.mxu0 0
  %2673 = vmatpush1.bf16.msra.mxu0 0
  %2674 = vmatprep.subr.bf16.mxu0 0
  %2675 = vmatpush1.bf16.msra.mxu0 0
  %2676 = vmatprep.subr.bf16.mxu0 0
  %2677 = vmatpush1.bf16.msra.mxu0 0
  %2678 = vmatprep.mubr.bf16.mxu0 0
  %2679 = vmatmul.mubr.bf16.gmra.mrb[0].mxu0 %v2644
  %v2680 = vpop.f32.mrb[0].mxu0
  %v2681 = vadd.f32 %v2635, %v2680
  %v2682 = vpop.f32.mrb[0].mxu0
  %v2683 = vpop.f32.mrb[0].mxu0
  %v2684 = vpop.f32.mrb[0].mxu0
  %2685 = vdwg.mxu0
  %v2686 = vxor.u32 %v2681, 2147483648
  %v2687 = vmul.f32 %v2686, 1.442695
  %v2688 = vpow.pop %v2687
  %v2689 = vadd.f32 %v2688, 1.0
  %v2690 = vrcp.pop %v2689
  %v2691 = vmul.f32 1.0, %v2690
  %vm2692 = vcmask 1024
  %2693 = vst.msk [vmem:[%s25] sm:$0x3] %vm2692, %v2691
  // Predicated region
  $region102: #{tpu_custom_call.1} parent=0 // pred_check
    _
  $region103: #{tpu_custom_call.1} parent=0 // pred_check_branch
    %2695 = sbr.rel (0) target = $region105
  $region104: #{tpu_custom_call.1} parent=0 // pred_region
    _
  $region105: #{tpu_custom_call.1} parent=0 // pred_fallthru
    _
  // Predicated region
  $region106: #{tpu_custom_call.1} parent=0 // pred_check
    _
  $region107: #{tpu_custom_call.1} parent=0 // pred_check_branch
    %2697 = sbr.rel (0) target = $region109
  $region108: #{tpu_custom_call.1} parent=0 // pred_region
    _
  $region109: #{tpu_custom_call.1} parent=0 // pred_fallthru
    _

</llo_original>
